<compile_context>
chip_gen: v6e
topology: v6e:2x2x1
jax: 0.10.0
libtpu: 0.0.40
codegen_flags: <defaults>
</compile_context>

<pallas_src>
import functools

import jax
import jax.numpy as jnp
from jax.experimental import pallas as pl
from jax.experimental.pallas import tpu as pltpu

_NEG_INF = -1e30
_VMEM_LIMIT_BYTES = 64 * 1024 * 1024


# ----------------------------------------------------------------------------
# Pallas kernels
# ----------------------------------------------------------------------------
def _ppm_grouped_kernel(x_ref, w_ref, b_ref, o_ref):
    """One pool scale per grid step: 1x1 conv (BN scale folded) + bias + ReLU.

    x_ref: (1, r_max, fc_dim) bf16, w_ref: (1, fc_dim, ppm) bf16,
    b_ref: (1, 1, ppm) f32, o_ref: (1, r_max, ppm) f32.
    """
    y = jnp.dot(x_ref[0], w_ref[0], preferred_element_type=jnp.float32) + b_ref[0]
    o_ref[0] = jnp.maximum(y, 0.0).astype(o_ref.dtype)


def _head_kernel(x_ref, w1_ref, b1_ref, w2_ref, b2_ref, o_ref, acc_ref, *, wp, rows):
    """Fused 3x3 conv (+folded BN +ReLU) + 1x1 classifier + bias + log_softmax.

    Grid = (batch, K-chunks).  Per step:
      x_ref : (1, Hp*Wp, ck) f32   padded + flattened concat features (one image)
      w1_ref: (9, ck, mid)   bf16  3x3 conv weights (tap-major, BN scale folded)
      b1_ref: (1, mid)       f32   folded BN bias
      w2_ref: (mid, cp)      bf16  classifier weights (padded to lane-dense cp)
      b2_ref: (1, cp)        f32   classifier bias (-1e30 on padded classes)
      o_ref : (1, rows, cp)  f32   log-probabilities over flattened rows
      acc_ref:(rows, mid)    f32   conv accumulator, lives across the K axis
    """
    k = pl.program_id(1)
    nk = pl.num_programs(1)

    @pl.when(k == 0)
    def _init():
        acc_ref[...] = jnp.zeros_like(acc_ref)

    # 3x3 conv as 9 statically shifted matmuls over the flattened padded image:
    # output row q consumes input row q + kh*Wp + kw for tap (kh, kw).
    for t in range(9):
        kh, kw = divmod(t, 3)
        off = kh * wp + kw
        lhs = x_ref[0, off:off + rows, :].astype(jnp.bfloat16)        # (rows, ck)
        acc_ref[...] += jnp.dot(lhs, w1_ref[t],
                                preferred_element_type=jnp.float32)

    @pl.when(k == nk - 1)
    def _finalize():
        h = jnp.maximum(acc_ref[...] + b1_ref[...], 0.0)              # BN bias + ReLU
        logits = jnp.dot(h.astype(jnp.bfloat16), w2_ref[...],
                         preferred_element_type=jnp.float32) + b2_ref[...]
        m = jnp.max(logits, axis=-1, keepdims=True)
        z = logits - m
        lse = jnp.log(jnp.sum(jnp.exp(z), axis=-1, keepdims=True))
        o_ref[0] = (z - lse).astype(o_ref.dtype)


# ----------------------------------------------------------------------------
# Pallas wrappers
# ----------------------------------------------------------------------------
def _pick_k_tile(c):
    """Largest 128-multiple chunk (<=512) dividing C; keeps per-step VMEM small."""
    for ck in (512, 384, 256, 128):
        if c % ck == 0:
            return ck
    return c


def ppm_grouped_conv(x_stack, w_stack, b_stack):
    """All PPM branches in one launch.  x_stack: (S, r_max, fc) bf16."""
    n_scales, r_max, fc = x_stack.shape
    ppm = w_stack.shape[-1]
    return pl.pallas_call(
        _ppm_grouped_kernel,
        out_shape=jax.ShapeDtypeStruct((n_scales, r_max, ppm), jnp.float32),
        grid=(n_scales,),
        in_specs=[
            pl.BlockSpec((1, r_max, fc), lambda i: (i, 0, 0)),
            pl.BlockSpec((1, fc, ppm), lambda i: (i, 0, 0)),
            pl.BlockSpec((1, 1, ppm), lambda i: (i, 0, 0)),
        ],
        out_specs=pl.BlockSpec((1, r_max, ppm), lambda i: (i, 0, 0)),
        compiler_params=pltpu.CompilerParams(
            dimension_semantics=("parallel",),
            vmem_limit_bytes=_VMEM_LIMIT_BYTES),
    )(x_stack, w_stack, b_stack)


def pspnet_head(cat, w1, b1, w2, b2):
    """Fused conv_last: 3x3 conv + BN + ReLU + 1x1 classifier + log_softmax.

    cat: (N, H, W, Ccat) f32.  Returns (N, rows, cp) f32 log-probs over flattened
    padded rows, rows = H*(W+2) - 2; valid pixel (h, w) lives at row h*(W+2) + w.
    """
    n, height, width, c = cat.shape
    hp, wp = height + 2, width + 2
    rows = height * wp - 2
    mid = w1.shape[-1]
    cp = w2.shape[-1]
    ck = _pick_k_tile(c)
    kb = c // ck

    cat_pad = jnp.pad(cat, ((0, 0), (1, 1), (1, 1), (0, 0)))
    x_flat = cat_pad.reshape(n, hp * wp, c)       # f32; cast to bf16 inside the kernel

    kernel = functools.partial(_head_kernel, wp=wp, rows=rows)
    return pl.pallas_call(
        kernel,
        out_shape=jax.ShapeDtypeStruct((n, rows, cp), jnp.float32),
        grid=(n, kb),                             # batch (parallel) x K chunks (reduction)
        in_specs=[
            pl.BlockSpec((1, hp * wp, ck), lambda i, k: (i, 0, k)),
            pl.BlockSpec((9, ck, mid), lambda i, k: (0, k, 0)),
            pl.BlockSpec((1, mid), lambda i, k: (0, 0)),
            pl.BlockSpec((mid, cp), lambda i, k: (0, 0)),
            pl.BlockSpec((1, cp), lambda i, k: (0, 0)),
        ],
        out_specs=pl.BlockSpec((1, rows, cp), lambda i, k: (i, 0, 0)),
        scratch_shapes=[pltpu.VMEM((rows, mid), jnp.float32)],
        compiler_params=pltpu.CompilerParams(
            dimension_semantics=("parallel", "arbitrary"),
            vmem_limit_bytes=_VMEM_LIMIT_BYTES),
    )(x_flat, w1, b1, w2, b2)


# ----------------------------------------------------------------------------
# JAX glue (pooling / upsampling / layout)
# ----------------------------------------------------------------------------
def adaptive_avg_pool_nhwc(x, scale):
    """Matches AdaptiveAvgPool2d(scale) when H, W are divisible by scale."""
    n, h, w, c = x.shape
    x = x.reshape(n, scale, h // scale, scale, w // scale, c)
    return x.mean(axis=(2, 4))


def upsample_bilinear_align_corners(x, out_h, out_w):
    """x: (N, s, s, C) -> (N, out_h, out_w, C), bilinear, align_corners=True."""
    _, sh, sw, _ = x.shape

    def coords(out, src):
        if src == 1:
            z = jnp.zeros((out,), jnp.int32)
            return z, z, jnp.zeros((out,), jnp.float32)
        pos = jnp.arange(out, dtype=jnp.float32) * (src - 1) / (out - 1)
        i0 = jnp.clip(jnp.floor(pos).astype(jnp.int32), 0, src - 2)
        return i0, i0 + 1, pos - i0.astype(jnp.float32)

    y0, y1, fy = coords(out_h, sh)
    x0, x1, fx = coords(out_w, sw)
    fx_ = fx[None, None, :, None]
    fy_ = fy[None, :, None, None]

    rows0 = x[:, y0]
    rows1 = x[:, y1]
    top = rows0[:, :, x0] * (1.0 - fx_) + rows0[:, :, x1] * fx_
    bot = rows1[:, :, x0] * (1.0 - fx_) + rows1[:, :, x1] * fx_
    return top * (1.0 - fy_) + bot * fy_


def fold_bn(gamma, beta, mean, var, eps=1e-5):
    scale = gamma / jnp.sqrt(var + eps)
    return scale, beta - mean * scale


# ----------------------------------------------------------------------------
# Parameters (deterministic, synthetic) + host-side weight preparation
# ----------------------------------------------------------------------------
def init_params(key, fc_dim, ppm_dim, mid_dim, num_class, pool_scales):
    params = {"ppm": []}
    for _ in pool_scales:
        key, k1, k2, k3, k4, k5 = jax.random.split(key, 6)
        params["ppm"].append({
            "w": 0.05 * jax.random.normal(k1, (fc_dim, ppm_dim), jnp.float32),
            "gamma": 1.0 + 0.1 * jax.random.normal(k2, (ppm_dim,), jnp.float32),
            "beta": 0.1 * jax.random.normal(k3, (ppm_dim,), jnp.float32),
            "mean": 0.05 * jax.random.normal(k4, (ppm_dim,), jnp.float32),
            "var": 1.0 + 0.1 * jnp.abs(jax.random.normal(k5, (ppm_dim,), jnp.float32)),
        })
    cat_dim = fc_dim + len(pool_scales) * ppm_dim
    key, k1, k2, k3, k4, k5, k6, k7 = jax.random.split(key, 8)
    params["conv1_w"] = 0.05 * jax.random.normal(k1, (9, cat_dim, mid_dim), jnp.float32)
    params["bn1_gamma"] = 1.0 + 0.1 * jax.random.normal(k2, (mid_dim,), jnp.float32)
    params["bn1_beta"] = 0.1 * jax.random.normal(k3, (mid_dim,), jnp.float32)
    params["bn1_mean"] = 0.05 * jax.random.normal(k4, (mid_dim,), jnp.float32)
    params["bn1_var"] = 1.0 + 0.1 * jnp.abs(jax.random.normal(k5, (mid_dim,), jnp.float32))
    params["conv2_w"] = 0.05 * jax.random.normal(k6, (mid_dim, num_class), jnp.float32)
    params["conv2_b"] = 0.05 * jax.random.normal(k7, (num_class,), jnp.float32)
    return params


def prepare_params(params, num_class, c_pad):
    """Fold BN scale into weights, cast matmul operands to bf16, pad classifier
    to a lane-dense class dim (padded classes get a -1e30 bias)."""
    ppm_w, ppm_b = [], []
    for p in params["ppm"]:
        s, b = fold_bn(p["gamma"], p["beta"], p["mean"], p["var"])
        ppm_w.append((p["w"] * s[None, :]).astype(jnp.bfloat16))
        ppm_b.append(b.reshape(1, -1))
    s1, b1 = fold_bn(params["bn1_gamma"], params["bn1_beta"],
                     params["bn1_mean"], params["bn1_var"])
    w1 = (params["conv1_w"] * s1[None, None, :]).astype(jnp.bfloat16)   # (9, cat, mid)
    mid = params["conv2_w"].shape[0]
    w2 = jnp.zeros((mid, c_pad), jnp.float32).at[:, :num_class].set(
        params["conv2_w"]).astype(jnp.bfloat16)
    b2 = jnp.full((1, c_pad), _NEG_INF, jnp.float32).at[0, :num_class].set(
        params["conv2_b"])
    return {
        "ppm_w": jnp.stack(ppm_w, 0),          # (S, fc, ppm)  bf16
        "ppm_b": jnp.stack(ppm_b, 0),          # (S, 1, ppm)   f32
        "w1": w1,                              # (9, cat, mid) bf16
        "b1": b1.reshape(1, -1),               # (1, mid)      f32
        "w2": w2,                              # (mid, c_pad)  bf16
        "b2": b2,                              # (1, c_pad)    f32
    }


# ----------------------------------------------------------------------------
# Forward (mirrors SegmentationDecoder.forward, task_type='C')
# ----------------------------------------------------------------------------
@functools.partial(jax.jit, static_argnames=("pool_scales", "num_class"))
def segmentation_decoder_forward(conv_out, mask, prep, pool_scales, num_class):
    x = jnp.transpose(conv_out, (0, 2, 3, 1)).astype(jnp.float32)   # NCHW -> NHWC
    n, h, w, _ = x.shape
    ppm_dim = prep["ppm_w"].shape[-1]

    # ---- PPM branch: pool in JAX, all four 1x1 conv+BN+ReLU in ONE Pallas call ----
    r_max = n * max(s * s for s in pool_scales)
    pooled = []
    for s in pool_scales:
        p = adaptive_avg_pool_nhwc(x, s).reshape(n * s * s, -1)
        pooled.append(jnp.pad(p, ((0, r_max - p.shape[0]), (0, 0))))
    x_stack = jnp.stack(pooled, 0).astype(jnp.bfloat16)             # (S, r_max, fc)
    ppm_y = ppm_grouped_conv(x_stack, prep["ppm_w"], prep["ppm_b"])  # (S, r_max, ppm)

    feats = [x]
    for si, s in enumerate(pool_scales):
        y = ppm_y[si, :n * s * s].reshape(n, s, s, ppm_dim)
        feats.append(upsample_bilinear_align_corners(y, h, w))
    cat = jnp.concatenate(feats, axis=-1)                           # (N, H, W, Ccat)

    # ---- fused 3x3 conv + BN + ReLU + 1x1 classifier + log_softmax ----
    out_rows = pspnet_head(cat, prep["w1"], prep["b1"], prep["w2"], prep["b2"])

    # unflatten: valid pixel (hh, ww) sits at row hh*(W+2) + ww
    wp = w + 2
    rows = out_rows.shape[1]
    out = out_rows[:, :, :num_class]                                # drop padded classes
    out = jnp.pad(out, ((0, 0), (0, h * wp - rows), (0, 0)))
    out = out.reshape(n, h, wp, num_class)[:, :, :w, :]
    out = jnp.transpose(out, (0, 3, 1, 2))                          # NHWC -> NCHW
    return out, mask


# ----------------------------------------------------------------------------
# Pure-JAX reference (same folded / bf16-rounded weights) for validation
# ----------------------------------------------------------------------------
def reference_forward(conv_out, prep, pool_scales, num_class):
    hi = jax.lax.Precision.HIGHEST
    x = jnp.transpose(conv_out, (0, 2, 3, 1)).astype(jnp.float32)
    n, h, w, _ = x.shape
    feats = [x]
    for si, s in enumerate(pool_scales):
        lhs = adaptive_avg_pool_nhwc(x, s).reshape(n * s * s, -1)
        lhs = lhs.astype(jnp.bfloat16).astype(jnp.float32)
        ww = prep["ppm_w"][si].astype(jnp.float32)
        y = jnp.maximum(jnp.dot(lhs, ww, precision=hi) + prep["ppm_b"][si], 0.0)
        feats.append(upsample_bilinear_align_corners(y.reshape(n, s, s, -1), h, w))
    cat = jnp.concatenate(feats, axis=-1)
    cat_pad = jnp.pad(cat, ((0, 0), (1, 1), (1, 1), (0, 0)))
    cat_pad = cat_pad.astype(jnp.bfloat16).astype(jnp.float32)
    w1 = prep["w1"].astype(jnp.float32)
    conv = 0.0
    for t in range(9):
        kh, kw = divmod(t, 3)
        patch = cat_pad[:, kh:kh + h, kw:kw + w, :]
        conv = conv + jnp.einsum("nhwc,cm->nhwm", patch, w1[t], precision=hi)
    hid = jnp.maximum(conv + prep["b1"][0], 0.0)
    hid = hid.astype(jnp.bfloat16).astype(jnp.float32)
    w2 = prep["w2"].astype(jnp.float32)[:, :num_class]
    logits = jnp.einsum("nhwm,mc->nhwc", hid, w2, precision=hi) + prep["b2"][0, :num_class]
    out = jax.nn.log_softmax(logits, axis=-1)
    return jnp.transpose(out, (0, 3, 1, 2))


# ----------------------------------------------------------------------------
if __name__ == "__main__":
    # Small shapes consistent with the module (fc_dim scaled down, H=W divisible
    # by pool scales 1,2,3,6).  Ccat=640 -> 5 K-chunks of 128, exercising the
    # accumulator path.
    batch, fc_dim, H, W = 2, 128, 12, 12
    ppm_dim, mid_dim, num_class = 128, 128, 21
    pool_scales = (1, 2, 3, 6)

    key = jax.random.PRNGKey(0)
    key, kx, km = jax.random.split(key, 3)
    conv_out = jax.random.normal(kx, (batch, fc_dim, H, W), jnp.float32)   # NCHW
    mask = jax.random.normal(km, (batch, H, W), jnp.float32)

    params = init_params(key, fc_dim, ppm_dim, mid_dim, num_class, pool_scales)
    c_pad = ((num_class + 127) // 128) * 128
    prep = prepare_params(params, num_class, c_pad)

    out, mask_out = segmentation_decoder_forward(
        conv_out, mask, prep, pool_scales=pool_scales, num_class=num_class)
    out = jax.block_until_ready(out)
    mask_out = jax.block_until_ready(mask_out)

    assert out.shape == (batch, num_class, H, W)
    # log_softmax sanity: exp(out) sums to ~1 over the class dim
    assert jnp.allclose(jnp.exp(out).sum(axis=1), 1.0, atol=1e-4)

    # pure-JAX reference on identically folded / bf16-rounded weights
    ref = reference_forward(conv_out, prep, pool_scales, num_class)
    err = float(jnp.abs(out - ref).max())
    assert jnp.allclose(out, ref, atol=3e-2, rtol=0.0), err

    print("KERNEL_OK")
</pallas_src>

<mosaic_0001>
module attributes {stable_mosaic.version = 11 : i64} {
  func.func @_ppm_grouped_kernel(%arg0: i32, %arg1: memref<1x72x128xbf16, #tpu.memory_space<vmem>>, %arg2: memref<1x128x128xbf16, #tpu.memory_space<vmem>>, %arg3: memref<1x1x128xf32, #tpu.memory_space<vmem>>, %arg4: memref<1x72x128xf32, #tpu.memory_space<vmem>>) attributes {dimension_semantics = [#tpu.dimension_semantics<parallel>], iteration_bounds = array<i64: 4>, scalar_prefetch = 0 : i64, scratch_operands = 0 : i64, tpu.core_type = #tpu.core_type<tc>, window_params = [{transform_indices = @transform_0, window_bounds = array<i64: 1, 72, 128>}, {transform_indices = @transform_1, window_bounds = array<i64: 1, 128, 128>}, {transform_indices = @transform_2, window_bounds = array<i64: 1, 1, 128>}, {transform_indices = @transform_3, window_bounds = array<i64: 1, 72, 128>}]} {
    %c0 = arith.constant 0 : index
    %c0_0 = arith.constant 0 : index
    %c0_1 = arith.constant 0 : index
    %0 = vector.load %arg1[%c0, %c0_0, %c0_1] : memref<1x72x128xbf16, #tpu.memory_space<vmem>>, vector<1x72x128xbf16>
    %1 = vector.shape_cast %0 : vector<1x72x128xbf16> to vector<72x128xbf16>
    %c0_2 = arith.constant 0 : index
    %c0_3 = arith.constant 0 : index
    %c0_4 = arith.constant 0 : index
    %2 = vector.load %arg2[%c0_2, %c0_3, %c0_4] : memref<1x128x128xbf16, #tpu.memory_space<vmem>>, vector<1x128x128xbf16>
    %3 = vector.shape_cast %2 : vector<1x128x128xbf16> to vector<128x128xbf16>
    %cst = arith.constant dense<0.000000e+00> : vector<72x128xf32>
    %4 = tpu.matmul %1, %3, %cst {dimension_numbers = #tpu.dot_dimension_numbers<[1], [0], [0], [1], [0, 0, 1, 1], [], []>} : vector<72x128xbf16>, vector<128x128xbf16>, vector<72x128xf32> -> vector<72x128xf32>
    %c0_5 = arith.constant 0 : index
    %c0_6 = arith.constant 0 : index
    %c0_7 = arith.constant 0 : index
    %5 = vector.load %arg3[%c0_5, %c0_6, %c0_7] : memref<1x1x128xf32, #tpu.memory_space<vmem>>, vector<1x1x128xf32>
    %6 = vector.shape_cast %5 : vector<1x1x128xf32> to vector<1x128xf32>
    %7 = vector.broadcast %6 : vector<1x128xf32> to vector<72x128xf32>
    %8 = arith.addf %4, %7 : vector<72x128xf32>
    %cst_8 = arith.constant 0.000000e+00 : f32
    %9 = vector.broadcast %cst_8 : f32 to vector<72x128xf32>
    %10 = arith.maximumf %8, %9 : vector<72x128xf32>
    %c0_9 = arith.constant 0 : index
    %c0_10 = arith.constant 0 : index
    %c0_11 = arith.constant 0 : index
    %11 = vector.load %arg4[%c0_9, %c0_10, %c0_11] : memref<1x72x128xf32, #tpu.memory_space<vmem>>, vector<1x72x128xf32>
    %12 = vector.shape_cast %11 : vector<1x72x128xf32> to vector<72x128xf32>
    %13 = vector.shape_cast %10 : vector<72x128xf32> to vector<1x72x128xf32>
    tpu.vector_store %arg4[%c0_9, %c0_10, %c0_11], %13 {strides = array<i32>} : memref<1x72x128xf32, #tpu.memory_space<vmem>>, vector<1x72x128xf32>,
    return
  }
  func.func @transform_0(%arg0: i32) -> (i32, i32, i32) {
    %c0_i32 = arith.constant 0 : i32
    %c0_i32_0 = arith.constant 0 : i32
    %c0_i32_1 = arith.constant 0 : i32
    return %arg0, %c0_i32, %c0_i32_0 : i32, i32, i32
  }
  func.func @transform_1(%arg0: i32) -> (i32, i32, i32) {
    %c0_i32 = arith.constant 0 : i32
    %c0_i32_0 = arith.constant 0 : i32
    %c0_i32_1 = arith.constant 0 : i32
    return %arg0, %c0_i32, %c0_i32_0 : i32, i32, i32
  }
  func.func @transform_2(%arg0: i32) -> (i32, i32, i32) {
    %c0_i32 = arith.constant 0 : i32
    %c0_i32_0 = arith.constant 0 : i32
    %c0_i32_1 = arith.constant 0 : i32
    return %arg0, %c0_i32, %c0_i32_0 : i32, i32, i32
  }
  func.func @transform_3(%arg0: i32) -> (i32, i32, i32) {
    %c0_i32 = arith.constant 0 : i32
    %c0_i32_0 = arith.constant 0 : i32
    %c0_i32_1 = arith.constant 0 : i32
    return %arg0, %c0_i32, %c0_i32_0 : i32, i32, i32
  }
}

module attributes {stable_mosaic.version = 11 : i64} {
  func.func @_head_kernel(%arg0: i32, %arg1: i32, %arg2: memref<1x196x128xf32, #tpu.memory_space<vmem>>, %arg3: memref<9x128x128xbf16, #tpu.memory_space<vmem>>, %arg4: memref<1x128xf32, #tpu.memory_space<vmem>>, %arg5: memref<128x128xbf16, #tpu.memory_space<vmem>>, %arg6: memref<1x128xf32, #tpu.memory_space<vmem>>, %arg7: memref<1x166x128xf32, #tpu.memory_space<vmem>>, %arg8: memref<166x128xf32, #tpu.memory_space<vmem>>) attributes {dimension_semantics = [#tpu.dimension_semantics<parallel>, #tpu.dimension_semantics<arbitrary>], iteration_bounds = array<i64: 2, 5>, scalar_prefetch = 0 : i64, scratch_operands = 1 : i64, tpu.core_type = #tpu.core_type<tc>, window_params = [{transform_indices = @transform_0, window_bounds = array<i64: 1, 196, 128>}, {transform_indices = @transform_1, window_bounds = array<i64: 9, 128, 128>}, {pipeline_mode = #tpu.pipeline_mode<synchronous>, transform_indices = @transform_2, window_bounds = array<i64: 1, 128>}, {pipeline_mode = #tpu.pipeline_mode<synchronous>, transform_indices = @transform_3, window_bounds = array<i64: 128, 128>}, {pipeline_mode = #tpu.pipeline_mode<synchronous>, transform_indices = @transform_4, window_bounds = array<i64: 1, 128>}, {transform_indices = @transform_5, window_bounds = array<i64: 1, 166, 128>}]} {
    %c0_i32 = arith.constant 0 : i32
    %0 = arith.cmpi eq, %arg1, %c0_i32 : i32
    %1 = arith.extui %0 : i1 to i32
    %c0_i32_0 = arith.constant 0 : i32
    %2 = arith.cmpi ne, %1, %c0_i32_0 : i32
    scf.if %2 {
      %cst_85 = arith.constant 0.000000e+00 : f32
      %87 = vector.broadcast %cst_85 : f32 to vector<166x128xf32>
      %c0_86 = arith.constant 0 : index
      %c0_87 = arith.constant 0 : index
      %88 = vector.load %arg8[%c0_86, %c0_87] : memref<166x128xf32, #tpu.memory_space<vmem>>, vector<166x128xf32>
      tpu.vector_store %arg8[%c0_86, %c0_87], %87 {strides = array<i32>} : memref<166x128xf32, #tpu.memory_space<vmem>>, vector<166x128xf32>,
    } else {
    }
    %c0 = arith.constant 0 : index
    %c0_1 = arith.constant 0 : index
    %c0_2 = arith.constant 0 : index
    %3 = vector.load %arg2[%c0, %c0_1, %c0_2] : memref<1x196x128xf32, #tpu.memory_space<vmem>>, vector<1x166x128xf32>
    %4 = vector.shape_cast %3 : vector<1x166x128xf32> to vector<166x128xf32>
    %5 = arith.truncf %4 : vector<166x128xf32> to vector<166x128xbf16>
    %c0_3 = arith.constant 0 : index
    %c0_4 = arith.constant 0 : index
    %6 = vector.load %arg8[%c0_3, %c0_4] : memref<166x128xf32, #tpu.memory_space<vmem>>, vector<166x128xf32>
    %c0_5 = arith.constant 0 : index
    %c0_6 = arith.constant 0 : index
    %c0_7 = arith.constant 0 : index
    %7 = vector.load %arg3[%c0_5, %c0_6, %c0_7] : memref<9x128x128xbf16, #tpu.memory_space<vmem>>, vector<1x128x128xbf16>
    %8 = vector.shape_cast %7 : vector<1x128x128xbf16> to vector<128x128xbf16>
    %cst = arith.constant dense<0.000000e+00> : vector<166x128xf32>
    %9 = tpu.matmul %5, %8, %cst {dimension_numbers = #tpu.dot_dimension_numbers<[1], [0], [0], [1], [0, 0, 1, 1], [], []>} : vector<166x128xbf16>, vector<128x128xbf16>, vector<166x128xf32> -> vector<166x128xf32>
    %10 = arith.addf %6, %9 : vector<166x128xf32>
    %c0_8 = arith.constant 0 : index
    %c0_9 = arith.constant 0 : index
    %11 = vector.load %arg8[%c0_8, %c0_9] : memref<166x128xf32, #tpu.memory_space<vmem>>, vector<166x128xf32>
    tpu.vector_store %arg8[%c0_8, %c0_9], %10 {strides = array<i32>} : memref<166x128xf32, #tpu.memory_space<vmem>>, vector<166x128xf32>,
    %c0_10 = arith.constant 0 : index
    %c1 = arith.constant 1 : index
    %c0_11 = arith.constant 0 : index
    %12 = vector.load %arg2[%c0_10, %c1, %c0_11] : memref<1x196x128xf32, #tpu.memory_space<vmem>>, vector<1x166x128xf32>
    %13 = vector.shape_cast %12 : vector<1x166x128xf32> to vector<166x128xf32>
    %14 = arith.truncf %13 : vector<166x128xf32> to vector<166x128xbf16>
    %c0_12 = arith.constant 0 : index
    %c0_13 = arith.constant 0 : index
    %15 = vector.load %arg8[%c0_12, %c0_13] : memref<166x128xf32, #tpu.memory_space<vmem>>, vector<166x128xf32>
    %c1_14 = arith.constant 1 : index
    %c0_15 = arith.constant 0 : index
    %c0_16 = arith.constant 0 : index
    %16 = vector.load %arg3[%c1_14, %c0_15, %c0_16] : memref<9x128x128xbf16, #tpu.memory_space<vmem>>, vector<1x128x128xbf16>
    %17 = vector.shape_cast %16 : vector<1x128x128xbf16> to vector<128x128xbf16>
    %cst_17 = arith.constant dense<0.000000e+00> : vector<166x128xf32>
    %18 = tpu.matmul %14, %17, %cst_17 {dimension_numbers = #tpu.dot_dimension_numbers<[1], [0], [0], [1], [0, 0, 1, 1], [], []>} : vector<166x128xbf16>, vector<128x128xbf16>, vector<166x128xf32> -> vector<166x128xf32>
    %19 = arith.addf %15, %18 : vector<166x128xf32>
    %c0_18 = arith.constant 0 : index
    %c0_19 = arith.constant 0 : index
    %20 = vector.load %arg8[%c0_18, %c0_19] : memref<166x128xf32, #tpu.memory_space<vmem>>, vector<166x128xf32>
    tpu.vector_store %arg8[%c0_18, %c0_19], %19 {strides = array<i32>} : memref<166x128xf32, #tpu.memory_space<vmem>>, vector<166x128xf32>,
    %c0_20 = arith.constant 0 : index
    %c2 = arith.constant 2 : index
    %c0_21 = arith.constant 0 : index
    %21 = vector.load %arg2[%c0_20, %c2, %c0_21] : memref<1x196x128xf32, #tpu.memory_space<vmem>>, vector<1x166x128xf32>
    %22 = vector.shape_cast %21 : vector<1x166x128xf32> to vector<166x128xf32>
    %23 = arith.truncf %22 : vector<166x128xf32> to vector<166x128xbf16>
    %c0_22 = arith.constant 0 : index
    %c0_23 = arith.constant 0 : index
    %24 = vector.load %arg8[%c0_22, %c0_23] : memref<166x128xf32, #tpu.memory_space<vmem>>, vector<166x128xf32>
    %c2_24 = arith.constant 2 : index
    %c0_25 = arith.constant 0 : index
    %c0_26 = arith.constant 0 : index
    %25 = vector.load %arg3[%c2_24, %c0_25, %c0_26] : memref<9x128x128xbf16, #tpu.memory_space<vmem>>, vector<1x128x128xbf16>
    %26 = vector.shape_cast %25 : vector<1x128x128xbf16> to vector<128x128xbf16>
    %cst_27 = arith.constant dense<0.000000e+00> : vector<166x128xf32>
    %27 = tpu.matmul %23, %26, %cst_27 {dimension_numbers = #tpu.dot_dimension_numbers<[1], [0], [0], [1], [0, 0, 1, 1], [], []>} : vector<166x128xbf16>, vector<128x128xbf16>, vector<166x128xf32> -> vector<166x128xf32>
    %28 = arith.addf %24, %27 : vector<166x128xf32>
    %c0_28 = arith.constant 0 : index
    %c0_29 = arith.constant 0 : index
    %29 = vector.load %arg8[%c0_28, %c0_29] : memref<166x128xf32, #tpu.memory_space<vmem>>, vector<166x128xf32>
    tpu.vector_store %arg8[%c0_28, %c0_29], %28 {strides = array<i32>} : memref<166x128xf32, #tpu.memory_space<vmem>>, vector<166x128xf32>,
    %c0_30 = arith.constant 0 : index
    %c14 = arith.constant 14 : index
    %c0_31 = arith.constant 0 : index
    %30 = vector.load %arg2[%c0_30, %c14, %c0_31] : memref<1x196x128xf32, #tpu.memory_space<vmem>>, vector<1x166x128xf32>
    %31 = vector.shape_cast %30 : vector<1x166x128xf32> to vector<166x128xf32>
    %32 = arith.truncf %31 : vector<166x128xf32> to vector<166x128xbf16>
    %c0_32 = arith.constant 0 : index
    %c0_33 = arith.constant 0 : index
    %33 = vector.load %arg8[%c0_32, %c0_33] : memref<166x128xf32, #tpu.memory_space<vmem>>, vector<166x128xf32>
    %c3 = arith.constant 3 : index
    %c0_34 = arith.constant 0 : index
    %c0_35 = arith.constant 0 : index
    %34 = vector.load %arg3[%c3, %c0_34, %c0_35] : memref<9x128x128xbf16, #tpu.memory_space<vmem>>, vector<1x128x128xbf16>
    %35 = vector.shape_cast %34 : vector<1x128x128xbf16> to vector<128x128xbf16>
    %cst_36 = arith.constant dense<0.000000e+00> : vector<166x128xf32>
    %36 = tpu.matmul %32, %35, %cst_36 {dimension_numbers = #tpu.dot_dimension_numbers<[1], [0], [0], [1], [0, 0, 1, 1], [], []>} : vector<166x128xbf16>, vector<128x128xbf16>, vector<166x128xf32> -> vector<166x128xf32>
    %37 = arith.addf %33, %36 : vector<166x128xf32>
    %c0_37 = arith.constant 0 : index
    %c0_38 = arith.constant 0 : index
    %38 = vector.load %arg8[%c0_37, %c0_38] : memref<166x128xf32, #tpu.memory_space<vmem>>, vector<166x128xf32>
    tpu.vector_store %arg8[%c0_37, %c0_38], %37 {strides = array<i32>} : memref<166x128xf32, #tpu.memory_space<vmem>>, vector<166x128xf32>,
    %c0_39 = arith.constant 0 : index
    %c15 = arith.constant 15 : index
    %c0_40 = arith.constant 0 : index
    %39 = vector.load %arg2[%c0_39, %c15, %c0_40] : memref<1x196x128xf32, #tpu.memory_space<vmem>>, vector<1x166x128xf32>
    %40 = vector.shape_cast %39 : vector<1x166x128xf32> to vector<166x128xf32>
    %41 = arith.truncf %40 : vector<166x128xf32> to vector<166x128xbf16>
    %c0_41 = arith.constant 0 : index
    %c0_42 = arith.constant 0 : index
    %42 = vector.load %arg8[%c0_41, %c0_42] : memref<166x128xf32, #tpu.memory_space<vmem>>, vector<166x128xf32>
    %c4 = arith.constant 4 : index
    %c0_43 = arith.constant 0 : index
    %c0_44 = arith.constant 0 : index
    %43 = vector.load %arg3[%c4, %c0_43, %c0_44] : memref<9x128x128xbf16, #tpu.memory_space<vmem>>, vector<1x128x128xbf16>
    %44 = vector.shape_cast %43 : vector<1x128x128xbf16> to vector<128x128xbf16>
    %cst_45 = arith.constant dense<0.000000e+00> : vector<166x128xf32>
    %45 = tpu.matmul %41, %44, %cst_45 {dimension_numbers = #tpu.dot_dimension_numbers<[1], [0], [0], [1], [0, 0, 1, 1], [], []>} : vector<166x128xbf16>, vector<128x128xbf16>, vector<166x128xf32> -> vector<166x128xf32>
    %46 = arith.addf %42, %45 : vector<166x128xf32>
    %c0_46 = arith.constant 0 : index
    %c0_47 = arith.constant 0 : index
    %47 = vector.load %arg8[%c0_46, %c0_47] : memref<166x128xf32, #tpu.memory_space<vmem>>, vector<166x128xf32>
    tpu.vector_store %arg8[%c0_46, %c0_47], %46 {strides = array<i32>} : memref<166x128xf32, #tpu.memory_space<vmem>>, vector<166x128xf32>,
    %c0_48 = arith.constant 0 : index
    %c16 = arith.constant 16 : index
    %c0_49 = arith.constant 0 : index
    %48 = vector.load %arg2[%c0_48, %c16, %c0_49] : memref<1x196x128xf32, #tpu.memory_space<vmem>>, vector<1x166x128xf32>
    %49 = vector.shape_cast %48 : vector<1x166x128xf32> to vector<166x128xf32>
    %50 = arith.truncf %49 : vector<166x128xf32> to vector<166x128xbf16>
    %c0_50 = arith.constant 0 : index
    %c0_51 = arith.constant 0 : index
    %51 = vector.load %arg8[%c0_50, %c0_51] : memref<166x128xf32, #tpu.memory_space<vmem>>, vector<166x128xf32>
    %c5 = arith.constant 5 : index
    %c0_52 = arith.constant 0 : index
    %c0_53 = arith.constant 0 : index
    %52 = vector.load %arg3[%c5, %c0_52, %c0_53] : memref<9x128x128xbf16, #tpu.memory_space<vmem>>, vector<1x128x128xbf16>
    %53 = vector.shape_cast %52 : vector<1x128x128xbf16> to vector<128x128xbf16>
    %cst_54 = arith.constant dense<0.000000e+00> : vector<166x128xf32>
    %54 = tpu.matmul %50, %53, %cst_54 {dimension_numbers = #tpu.dot_dimension_numbers<[1], [0], [0], [1], [0, 0, 1, 1], [], []>} : vector<166x128xbf16>, vector<128x128xbf16>, vector<166x128xf32> -> vector<166x128xf32>
    %55 = arith.addf %51, %54 : vector<166x128xf32>
    %c0_55 = arith.constant 0 : index
    %c0_56 = arith.constant 0 : index
    %56 = vector.load %arg8[%c0_55, %c0_56] : memref<166x128xf32, #tpu.memory_space<vmem>>, vector<166x128xf32>
    tpu.vector_store %arg8[%c0_55, %c0_56], %55 {strides = array<i32>} : memref<166x128xf32, #tpu.memory_space<vmem>>, vector<166x128xf32>,
    %c0_57 = arith.constant 0 : index
    %c28 = arith.constant 28 : index
    %c0_58 = arith.constant 0 : index
    %57 = vector.load %arg2[%c0_57, %c28, %c0_58] : memref<1x196x128xf32, #tpu.memory_space<vmem>>, vector<1x166x128xf32>
    %58 = vector.shape_cast %57 : vector<1x166x128xf32> to vector<166x128xf32>
    %59 = arith.truncf %58 : vector<166x128xf32> to vector<166x128xbf16>
    %c0_59 = arith.constant 0 : index
    %c0_60 = arith.constant 0 : index
    %60 = vector.load %arg8[%c0_59, %c0_60] : memref<166x128xf32, #tpu.memory_space<vmem>>, vector<166x128xf32>
    %c6 = arith.constant 6 : index
    %c0_61 = arith.constant 0 : index
    %c0_62 = arith.constant 0 : index
    %61 = vector.load %arg3[%c6, %c0_61, %c0_62] : memref<9x128x128xbf16, #tpu.memory_space<vmem>>, vector<1x128x128xbf16>
    %62 = vector.shape_cast %61 : vector<1x128x128xbf16> to vector<128x128xbf16>
    %cst_63 = arith.constant dense<0.000000e+00> : vector<166x128xf32>
    %63 = tpu.matmul %59, %62, %cst_63 {dimension_numbers = #tpu.dot_dimension_numbers<[1], [0], [0], [1], [0, 0, 1, 1], [], []>} : vector<166x128xbf16>, vector<128x128xbf16>, vector<166x128xf32> -> vector<166x128xf32>
    %64 = arith.addf %60, %63 : vector<166x128xf32>
    %c0_64 = arith.constant 0 : index
    %c0_65 = arith.constant 0 : index
    %65 = vector.load %arg8[%c0_64, %c0_65] : memref<166x128xf32, #tpu.memory_space<vmem>>, vector<166x128xf32>
    tpu.vector_store %arg8[%c0_64, %c0_65], %64 {strides = array<i32>} : memref<166x128xf32, #tpu.memory_space<vmem>>, vector<166x128xf32>,
    %c0_66 = arith.constant 0 : index
    %c29 = arith.constant 29 : index
    %c0_67 = arith.constant 0 : index
    %66 = vector.load %arg2[%c0_66, %c29, %c0_67] : memref<1x196x128xf32, #tpu.memory_space<vmem>>, vector<1x166x128xf32>
    %67 = vector.shape_cast %66 : vector<1x166x128xf32> to vector<166x128xf32>
    %68 = arith.truncf %67 : vector<166x128xf32> to vector<166x128xbf16>
    %c0_68 = arith.constant 0 : index
    %c0_69 = arith.constant 0 : index
    %69 = vector.load %arg8[%c0_68, %c0_69] : memref<166x128xf32, #tpu.memory_space<vmem>>, vector<166x128xf32>
    %c7 = arith.constant 7 : index
    %c0_70 = arith.constant 0 : index
    %c0_71 = arith.constant 0 : index
    %70 = vector.load %arg3[%c7, %c0_70, %c0_71] : memref<9x128x128xbf16, #tpu.memory_space<vmem>>, vector<1x128x128xbf16>
    %71 = vector.shape_cast %70 : vector<1x128x128xbf16> to vector<128x128xbf16>
    %cst_72 = arith.constant dense<0.000000e+00> : vector<166x128xf32>
    %72 = tpu.matmul %68, %71, %cst_72 {dimension_numbers = #tpu.dot_dimension_numbers<[1], [0], [0], [1], [0, 0, 1, 1], [], []>} : vector<166x128xbf16>, vector<128x128xbf16>, vector<166x128xf32> -> vector<166x128xf32>
    %73 = arith.addf %69, %72 : vector<166x128xf32>
    %c0_73 = arith.constant 0 : index
    %c0_74 = arith.constant 0 : index
    %74 = vector.load %arg8[%c0_73, %c0_74] : memref<166x128xf32, #tpu.memory_space<vmem>>, vector<166x128xf32>
    tpu.vector_store %arg8[%c0_73, %c0_74], %73 {strides = array<i32>} : memref<166x128xf32, #tpu.memory_space<vmem>>, vector<166x128xf32>,
    %c0_75 = arith.constant 0 : index
    %c30 = arith.constant 30 : index
    %c0_76 = arith.constant 0 : index
    %75 = vector.load %arg2[%c0_75, %c30, %c0_76] : memref<1x196x128xf32, #tpu.memory_space<vmem>>, vector<1x166x128xf32>
    %76 = vector.shape_cast %75 : vector<1x166x128xf32> to vector<166x128xf32>
    %77 = arith.truncf %76 : vector<166x128xf32> to vector<166x128xbf16>
    %c0_77 = arith.constant 0 : index
    %c0_78 = arith.constant 0 : index
    %78 = vector.load %arg8[%c0_77, %c0_78] : memref<166x128xf32, #tpu.memory_space<vmem>>, vector<166x128xf32>
    %c8 = arith.constant 8 : index
    %c0_79 = arith.constant 0 : index
    %c0_80 = arith.constant 0 : index
    %79 = vector.load %arg3[%c8, %c0_79, %c0_80] : memref<9x128x128xbf16, #tpu.memory_space<vmem>>, vector<1x128x128xbf16>
    %80 = vector.shape_cast %79 : vector<1x128x128xbf16> to vector<128x128xbf16>
    %cst_81 = arith.constant dense<0.000000e+00> : vector<166x128xf32>
    %81 = tpu.matmul %77, %80, %cst_81 {dimension_numbers = #tpu.dot_dimension_numbers<[1], [0], [0], [1], [0, 0, 1, 1], [], []>} : vector<166x128xbf16>, vector<128x128xbf16>, vector<166x128xf32> -> vector<166x128xf32>
    %82 = arith.addf %78, %81 : vector<166x128xf32>
    %c0_82 = arith.constant 0 : index
    %c0_83 = arith.constant 0 : index
    %83 = vector.load %arg8[%c0_82, %c0_83] : memref<166x128xf32, #tpu.memory_space<vmem>>, vector<166x128xf32>
    tpu.vector_store %arg8[%c0_82, %c0_83], %82 {strides = array<i32>} : memref<166x128xf32, #tpu.memory_space<vmem>>, vector<166x128xf32>,
    %c4_i32 = arith.constant 4 : i32
    %84 = arith.cmpi eq, %arg1, %c4_i32 : i32
    %85 = arith.extui %84 : i1 to i32
    %c0_i32_84 = arith.constant 0 : i32
    %86 = arith.cmpi ne, %85, %c0_i32_84 : i32
    scf.if %86 {
      %c0_85 = arith.constant 0 : index
      %c0_86 = arith.constant 0 : index
      %87 = vector.load %arg8[%c0_85, %c0_86] : memref<166x128xf32, #tpu.memory_space<vmem>>, vector<166x128xf32>
      %c0_87 = arith.constant 0 : index
      %c0_88 = arith.constant 0 : index
      %88 = vector.load %arg4[%c0_87, %c0_88] : memref<1x128xf32, #tpu.memory_space<vmem>>, vector<1x128xf32>
      %89 = vector.broadcast %88 : vector<1x128xf32> to vector<166x128xf32>
      %90 = arith.addf %87, %89 : vector<166x128xf32>
      %cst_89 = arith.constant 0.000000e+00 : f32
      %91 = vector.broadcast %cst_89 : f32 to vector<166x128xf32>
      %92 = arith.maximumf %90, %91 : vector<166x128xf32>
      %93 = arith.truncf %92 : vector<166x128xf32> to vector<166x128xbf16>
      %c0_90 = arith.constant 0 : index
      %c0_91 = arith.constant 0 : index
      %94 = vector.load %arg5[%c0_90, %c0_91] : memref<128x128xbf16, #tpu.memory_space<vmem>>, vector<128x128xbf16>
      %cst_92 = arith.constant dense<0.000000e+00> : vector<166x128xf32>
      %95 = tpu.matmul %93, %94, %cst_92 {dimension_numbers = #tpu.dot_dimension_numbers<[1], [0], [0], [1], [0, 0, 1, 1], [], []>} : vector<166x128xbf16>, vector<128x128xbf16>, vector<166x128xf32> -> vector<166x128xf32>
      %c0_93 = arith.constant 0 : index
      %c0_94 = arith.constant 0 : index
      %96 = vector.load %arg6[%c0_93, %c0_94] : memref<1x128xf32, #tpu.memory_space<vmem>>, vector<1x128xf32>
      %97 = vector.broadcast %96 : vector<1x128xf32> to vector<166x128xf32>
      %98 = arith.addf %95, %97 : vector<166x128xf32>
      %cst_95 = arith.constant dense<0xFF800000> : vector<166xf32>
      %99 = vector.multi_reduction <maximumf>, %98, %cst_95 [1] : vector<166x128xf32> to vector<166xf32>
      %100 = vector.shape_cast %99 : vector<166xf32> to vector<166x1xf32>
      %101 = vector.broadcast %100 : vector<166x1xf32> to vector<166x128xf32>
      %102 = arith.subf %98, %101 : vector<166x128xf32>
      %103 = math.exp %102 : vector<166x128xf32>
      %cst_96 = arith.constant dense<0.000000e+00> : vector<166xf32>
      %104 = vector.multi_reduction <add>, %103, %cst_96 [1] : vector<166x128xf32> to vector<166xf32>
      %105 = vector.shape_cast %104 : vector<166xf32> to vector<166x1xf32>
      %106 = math.log %105 : vector<166x1xf32>
      %107 = vector.broadcast %106 : vector<166x1xf32> to vector<166x128xf32>
      %108 = arith.subf %102, %107 : vector<166x128xf32>
      %c0_97 = arith.constant 0 : index
      %c0_98 = arith.constant 0 : index
      %c0_99 = arith.constant 0 : index
      %109 = vector.load %arg7[%c0_97, %c0_98, %c0_99] : memref<1x166x128xf32, #tpu.memory_space<vmem>>, vector<1x166x128xf32>
      %110 = vector.shape_cast %109 : vector<1x166x128xf32> to vector<166x128xf32>
      %111 = vector.shape_cast %108 : vector<166x128xf32> to vector<1x166x128xf32>
      tpu.vector_store %arg7[%c0_97, %c0_98, %c0_99], %111 {strides = array<i32>} : memref<1x166x128xf32, #tpu.memory_space<vmem>>, vector<1x166x128xf32>,
    } else {
    }
    return
  }
  func.func @transform_0(%arg0: i32, %arg1: i32) -> (i32, i32, i32) {
    %c0_i32 = arith.constant 0 : i32
    %c0_i32_0 = arith.constant 0 : i32
    return %arg0, %c0_i32, %arg1 : i32, i32, i32
  }
  func.func @transform_1(%arg0: i32, %arg1: i32) -> (i32, i32, i32) {
    %c0_i32 = arith.constant 0 : i32
    %c0_i32_0 = arith.constant 0 : i32
    %c0_i32_1 = arith.constant 0 : i32
    return %c0_i32, %arg1, %c0_i32_0 : i32, i32, i32
  }
  func.func @transform_2(%arg0: i32, %arg1: i32) -> (i32, i32) {
    %c0_i32 = arith.constant 0 : i32
    %c0_i32_0 = arith.constant 0 : i32
    %c0_i32_1 = arith.constant 0 : i32
    return %c0_i32, %c0_i32_0 : i32, i32
  }
  func.func @transform_3(%arg0: i32, %arg1: i32) -> (i32, i32) {
    %c0_i32 = arith.constant 0 : i32
    %c0_i32_0 = arith.constant 0 : i32
    %c0_i32_1 = arith.constant 0 : i32
    return %c0_i32, %c0_i32_0 : i32, i32
  }
  func.func @transform_4(%arg0: i32, %arg1: i32) -> (i32, i32) {
    %c0_i32 = arith.constant 0 : i32
    %c0_i32_0 = arith.constant 0 : i32
    %c0_i32_1 = arith.constant 0 : i32
    return %c0_i32, %c0_i32_0 : i32, i32
  }
  func.func @transform_5(%arg0: i32, %arg1: i32) -> (i32, i32, i32) {
    %c0_i32 = arith.constant 0 : i32
    %c0_i32_0 = arith.constant 0 : i32
    %c0_i32_1 = arith.constant 0 : i32
    return %arg0, %c0_i32, %c0_i32_0 : i32, i32, i32
  }
}

</mosaic_0001>

<llo_original>
// kernel: squeeze.6
$region0: #{squeeze.6}
  %s0 = inlined_call_operand.vmem [shape: f32[1,18,128], index: 0, kind: input, shape index: {}]
  %s1 = inlined_call_operand.vmem [shape: f32[2,3,3,128], index: 1, kind: output, shape index: {}]
  $region1: #{squeeze.6} parent=0
    #allocation0 [shape = 'u8[24576]{0}', space=vmem, size = 0x6000, scoped, tag = 'scoped mem for output reshape']
    %v2 = vld [vmem:[%s0] sm:$0xff]
    %3 = vst [vmem:[#allocation0] sm:$0x7] %v2
    %s4 = scalar_lea.vmem [#allocation0], 5
    %5 = vst [vmem:[%s4] sm:$0x38] %v2
    %s6 = scalar_lea.vmem [#allocation0], 10
    %7 = vst [vmem:[%s6] sm:$0xc0] %v2
    %s8 = scalar_lea.vmem %s0, 8
    %v9 = vld [vmem:[%s8] sm:$0xff]
    %s10 = scalar_lea.vmem [#allocation0], 18
    %11 = vst [vmem:[%s10] ss:$6 sm:$0x3] %v9
    %s12 = scalar_lea.vmem [#allocation0], 23
    %13 = vst [vmem:[%s12] sm:$0xc] %v9
    %s14 = scalar_lea.vmem [#allocation0], 28
    %15 = vst [vmem:[%s14] sm:$0x70] %v9
    %s16 = scalar_lea.vmem [#allocation0], 33
    %17 = vst [vmem:[%s16] sm:$0x80] %v9
    %s18 = scalar_lea.vmem %s0, 16
    %v19 = vld [vmem:[%s18] sm:$0x3]
    %s20 = scalar_lea.vmem [#allocation0], 41
    %21 = vst [vmem:[%s20] sm:$0x3] %v19
    %s23 = sshll.u32 1, 4
    %s24 = ssub.s32 %s23, 1
    %v26 = vld [vmem:[#allocation0] sm:%s24]
    %s27 = sshll.u32 1, 4
    %s28 = ssub.s32 %s27, 1
    %29 = vst [vmem:[%s1] sm:%s28] %v26
    %s30 = scalar_lea.vmem [#allocation0], 8
    %v31 = vld [vmem:[%s30] sm:%s24]
    %s32 = sshll.u32 1, 4
    %s33 = ssub.s32 %s32, 1
    %s34 = scalar_lea.vmem %s1, 4
    %35 = vst [vmem:[%s34] sm:%s33] %v31
    %s36 = scalar_lea.vmem [#allocation0], 16
    %v37 = vld [vmem:[%s36] sm:%s24]
    %s38 = sshll.u32 1, 4
    %s39 = ssub.s32 %s38, 1
    %s40 = smul.addr 4, 2
    %s41 = scalar_lea.vmem %s1, %s40
    %42 = vst [vmem:[%s41] sm:%s39] %v37
    %s43 = scalar_lea.vmem [#allocation0], 24
    %v44 = vld [vmem:[%s43] sm:%s24]
    %s45 = sshll.u32 1, 4
    %s46 = ssub.s32 %s45, 1
    %s47 = smul.addr 4, 3
    %s48 = scalar_lea.vmem %s1, %s47
    %49 = vst [vmem:[%s48] sm:%s46] %v44
    %s50 = scalar_lea.vmem [#allocation0], 32
    %v51 = vld [vmem:[%s50] sm:%s24]
    %s52 = sshll.u32 1, 4
    %s53 = ssub.s32 %s52, 1
    %s54 = smul.addr 4, 4
    %s55 = scalar_lea.vmem %s1, %s54
    %56 = vst [vmem:[%s55] sm:%s53] %v51
    %s57 = scalar_lea.vmem [#allocation0], 40
    %v58 = vld [vmem:[%s57] sm:%s24]
    %s59 = sshll.u32 1, 4
    %s60 = ssub.s32 %s59, 1
    %s61 = smul.addr 4, 5
    %s62 = scalar_lea.vmem %s1, %s61
    %63 = vst [vmem:[%s62] sm:%s60] %v58

// kernel: segmentation_decoder_forward.2
$region0: #{segmentation_decoder_forward.2}
  #allocation0 [shape = 'u32[]', space=smem, size = 0x4, offset = 0x4, fixed_abs, tag = 'smem constant byte address 0x4 - core index']
  #allocation1 [shape = 'u32[144,128]{1,0:T(1,128)}', space=vmem, size = 0x12000, scoped, tag = 'internal scratch']
  %s0 = inlined_call_operand.vmem [shape: bf16[4,72,128], index: 0, kind: input, shape index: {}]
  %s1 = inlined_call_operand.vmem [shape: bf16[4,128,128], index: 1, kind: input, shape index: {}]
  %s2 = inlined_call_operand.vmem [shape: f32[4,1,128], index: 2, kind: input, shape index: {}]
  %s3 = inlined_call_operand.vmem [shape: f32[4,72,128], index: 3, kind: output, shape index: {}]
  %s4 = sld [smem:[#allocation0]]
  $region45: #{segmentation_decoder_forward.2} parent=0
    _
  %s6 = ssub.s32 1, %s4
  %s7 = scalar_select 0, %s6, %s4
  loop: start=0, step=1, limit=6
  $region2: #{segmentation_decoder_forward.2} parent=0 // loop_pre_header
    _
  $region3: #{segmentation_decoder_forward.2} parent=0 // loop_header
    %s9 = sphi 0, %s13
    %p10 = scmp.ge.s32.totalorder %s9, 6
    %s19 = sphi 0, %s21
    %s22 = sphi 0, %s19
    %s23 = sphi 0, %s22
    %s39 = sphi 0, %s23
    %s45 = sphi 0, %s47
    %s48 = sphi 0, %s45
    %s49 = sphi 0, %s48
    %s65 = sphi 0, %s49
    %s71 = sphi 0, %s73
    %s74 = sphi 0, %s71
    %s75 = sphi 0, %s74
    %s91 = sphi 0, %s75
    %s97 = sphi 0, %s99
    %s100 = sphi 0, %s97
    %s101 = sphi 0, %s100
    %s117 = sphi 0, %s101
  $region4: #{segmentation_decoder_forward.2} parent=0 // loop_header_branch
    %12 = sbr.rel (%p10) target = $region8
  $region5: #{segmentation_decoder_forward.2} parent=0 // loop_body
    %s14 = ssub.s32 %s9, 1
    %s15 = ssub.s32 %s9, 2
    %s16 = sadd.s32 %s9, 1
    %s17 = ssub.s32 %s9, %s16
    %p18 = scmp.eq.s32.totalorder %s17, 0
    %s20 = sadd.s32 %s19, 1
    %s21 = scalar_select %p18, %s19, %s20
    %p24 = pneg %p18
    %p25 = scmp.eq.s32.totalorder %s9, 3
    %p26 = por %p24, %p25
    %p27 = scmp.ne.s32.totalorder %s19, %s22
    %p28 = scmp.eq.s32.totalorder %s9, 0
    %p29 = por %p27, %p28
    %p30 = scmp.ne.s32.totalorder %s19, %s22
    %p31 = scmp.eq.s32.totalorder %s14, 3
    %p32 = por %p30, %p31
    %p33 = scmp.ne.s32.totalorder %s22, %s23
    %p34 = scmp.eq.s32.totalorder %s14, 0
    %p35 = por %p33, %p34
    %p36 = scmp.ne.s32.totalorder %s22, %s23
    %p37 = scmp.eq.s32.totalorder %s15, 3
    %p38 = por %p36, %p37
    %p40 = scmp.ne.s32.totalorder %s23, %s39
    %p41 = scmp.eq.s32.totalorder %s15, 0
    %p42 = por %p40, %p41
    %s43 = ssub.s32 %s9, %s16
    %p44 = scmp.eq.s32.totalorder %s43, 0
    %s46 = sadd.s32 %s45, 1
    %s47 = scalar_select %p44, %s45, %s46
    %p50 = pneg %p44
    %p51 = scmp.eq.s32.totalorder %s9, 3
    %p52 = por %p50, %p51
    %p53 = scmp.ne.s32.totalorder %s45, %s48
    %p54 = scmp.eq.s32.totalorder %s9, 0
    %p55 = por %p53, %p54
    %p56 = scmp.ne.s32.totalorder %s45, %s48
    %p57 = scmp.eq.s32.totalorder %s14, 3
    %p58 = por %p56, %p57
    %p59 = scmp.ne.s32.totalorder %s48, %s49
    %p60 = scmp.eq.s32.totalorder %s14, 0
    %p61 = por %p59, %p60
    %p62 = scmp.ne.s32.totalorder %s48, %s49
    %p63 = scmp.eq.s32.totalorder %s15, 3
    %p64 = por %p62, %p63
    %p66 = scmp.ne.s32.totalorder %s49, %s65
    %p67 = scmp.eq.s32.totalorder %s15, 0
    %p68 = por %p66, %p67
    %s69 = ssub.s32 %s9, %s16
    %p70 = scmp.eq.s32.totalorder %s69, 0
    %s72 = sadd.s32 %s71, 1
    %s73 = scalar_select %p70, %s71, %s72
    %p76 = pneg %p70
    %p77 = scmp.eq.s32.totalorder %s9, 3
    %p78 = por %p76, %p77
    %p79 = scmp.ne.s32.totalorder %s71, %s74
    %p80 = scmp.eq.s32.totalorder %s9, 0
    %p81 = por %p79, %p80
    %p82 = scmp.ne.s32.totalorder %s71, %s74
    %p83 = scmp.eq.s32.totalorder %s14, 3
    %p84 = por %p82, %p83
    %p85 = scmp.ne.s32.totalorder %s74, %s75
    %p86 = scmp.eq.s32.totalorder %s14, 0
    %p87 = por %p85, %p86
    %p88 = scmp.ne.s32.totalorder %s74, %s75
    %p89 = scmp.eq.s32.totalorder %s15, 3
    %p90 = por %p88, %p89
    %p92 = scmp.ne.s32.totalorder %s75, %s91
    %p93 = scmp.eq.s32.totalorder %s15, 0
    %p94 = por %p92, %p93
    %s95 = ssub.s32 %s9, %s16
    %p96 = scmp.eq.s32.totalorder %s95, 0
    %s98 = sadd.s32 %s97, 1
    %s99 = scalar_select %p96, %s97, %s98
    %p102 = pneg %p96
    %p103 = scmp.eq.s32.totalorder %s9, 3
    %p104 = por %p102, %p103
    %p105 = scmp.ne.s32.totalorder %s97, %s100
    %p106 = scmp.eq.s32.totalorder %s9, 0
    %p107 = por %p105, %p106
    %p108 = scmp.ne.s32.totalorder %s97, %s100
    %p109 = scmp.eq.s32.totalorder %s14, 3
    %p110 = por %p108, %p109
    %p111 = scmp.ne.s32.totalorder %s100, %s101
    %p112 = scmp.eq.s32.totalorder %s14, 0
    %p113 = por %p111, %p112
    %p114 = scmp.ne.s32.totalorder %s100, %s101
    %p115 = scmp.eq.s32.totalorder %s15, 3
    %p116 = por %p114, %p115
    %p118 = scmp.ne.s32.totalorder %s101, %s117
    %p119 = scmp.eq.s32.totalorder %s15, 0
    %p120 = por %p118, %p119
    %p121 = scmp.le.s32.totalorder 1, %s9
    %p122 = scmp.lt.s32.totalorder %s9, 5
    %p123 = pnand %p121, %p122
    %p124 = pneg %p123
    // Predicated region
    $region9: #{segmentation_decoder_forward.2} parent=5 // pred_check
      _
    $region10: #{segmentation_decoder_forward.2} parent=5 // pred_check_branch
      %126 = sbr.rel (%p123) target = $region12
    $region11: #{segmentation_decoder_forward.2} parent=5 // pred_region
      %s127 = ssub.s32 %s9, 1
    $region12: #{segmentation_decoder_forward.2} parent=5 // pred_fallthru
      _
    %p128 = scmp.lt.s32.totalorder %s9, 4
    // Predicated region
    $region13: #{segmentation_decoder_forward.2} parent=5 // pred_check
      %p129 = pneg %p128
    $region14: #{segmentation_decoder_forward.2} parent=5 // pred_check_branch
      %131 = sbr.rel (%p129) target = $region16
    $region15: #{segmentation_decoder_forward.2} parent=5 // pred_region
      // Predicated region
      $region17: #{segmentation_decoder_forward.2} parent=15 // pred_check
        %p132 = pneg %p29
      $region18: #{segmentation_decoder_forward.2} parent=15 // pred_check_branch
        %134 = sbr.rel (%p132) target = $region20
      $region19: #{segmentation_decoder_forward.2} parent=15 // pred_region
        %p135 = scmp.lt.s32.totalorder %s9, 3
        %s136 = scalar_select %p135, %s9, 3
        %s137 = smul.addr %s136, 9
        %s138 = smul.addr %s137, 4
        %s139 = scalar_lea.vmem %s0, %s138
      $region20: #{segmentation_decoder_forward.2} parent=15 // pred_fallthru
        _
      // Predicated region
      $region21: #{segmentation_decoder_forward.2} parent=15 // pred_check
        %p140 = pneg %p55
      $region22: #{segmentation_decoder_forward.2} parent=15 // pred_check_branch
        %142 = sbr.rel (%p140) target = $region24
      $region23: #{segmentation_decoder_forward.2} parent=15 // pred_region
        %p143 = scmp.lt.s32.totalorder %s9, 3
        %s144 = scalar_select %p143, %s9, 3
        %s145 = smul.addr %s144, 16
        %s146 = smul.addr %s145, 4
        %s147 = scalar_lea.vmem %s1, %s146
      $region24: #{segmentation_decoder_forward.2} parent=15 // pred_fallthru
        _
      // Predicated region
      $region25: #{segmentation_decoder_forward.2} parent=15 // pred_check
        %p148 = pneg %p81
      $region26: #{segmentation_decoder_forward.2} parent=15 // pred_check_branch
        %150 = sbr.rel (%p148) target = $region28
      $region27: #{segmentation_decoder_forward.2} parent=15 // pred_region
        %p151 = scmp.lt.s32.totalorder %s9, 3
        %s152 = scalar_select %p151, %s9, 3
        %s153 = scalar_lea.vmem %s2, %s152
      $region28: #{segmentation_decoder_forward.2} parent=15 // pred_fallthru
        _
    $region16: #{segmentation_decoder_forward.2} parent=5 // pred_fallthru
      _
    %p154 = scmp.le.s32.totalorder 1, %s9
    %p155 = scmp.lt.s32.totalorder %s9, 5
    %p156 = pnand %p154, %p155
    %p157 = pneg %p156
    // Predicated region
    $region29: #{segmentation_decoder_forward.2} parent=5 // pred_check
      _
    $region30: #{segmentation_decoder_forward.2} parent=5 // pred_check_branch
      %159 = sbr.rel (%p156) target = $region32
    $region31: #{segmentation_decoder_forward.2} parent=5 // pred_region
      %s160 = ssub.s32 %s9, 1
      %p161 = scmp.lt.s32.totalorder %s14, 3
      %s162 = scalar_select %p161, %s14, 3
      %s163 = smul.addr %s162, 9
      %s164 = smul.addr %s163, 4
      %s165 = scalar_lea.vmem %s0, %s164
      %p166 = pneg %p35
      %p167 = pneg %p32
      %p168 = scmp.lt.s32.totalorder %s14, 3
      %s169 = scalar_select %p168, %s14, 3
      %s170 = smul.addr %s169, 16
      %s171 = smul.addr %s170, 4
      %s172 = scalar_lea.vmem %s1, %s171
      %p173 = pneg %p61
      %p174 = pneg %p58
      %p175 = scmp.lt.s32.totalorder %s14, 3
      %s176 = scalar_select %p175, %s14, 3
      %s177 = scalar_lea.vmem %s2, %s176
      %p178 = pneg %p87
      %p179 = pneg %p84
      %p180 = pneg %p113
      %p181 = pneg %p110
      %p182 = scmp.lt.s32.totalorder %s14, 3
      %s183 = scalar_select %p182, %s14, 3
      %s184 = smul.addr %s183, 9
      %s185 = smul.addr %s184, 8
      %s186 = scalar_lea.vmem %s3, %s185
      %p187 = scmp.lt.s32.totalorder %s14, 3
      %s188 = scalar_select %p187, %s14, 3
      %s189 = smul.addr %s188, 9
      %s190 = smul.addr %s189, 4
      %s191 = scalar_lea.vmem %s0, %s190
      %p192 = scmp.lt.s32.totalorder %s14, 3
      %s193 = scalar_select %p192, %s14, 3
      %s194 = smul.addr %s193, 16
      %s195 = smul.addr %s194, 4
      %s196 = scalar_lea.vmem %s1, %s195
      %p197 = scmp.lt.s32.totalorder %s14, 3
      %s198 = scalar_select %p197, %s14, 3
      %s199 = scalar_lea.vmem %s2, %s198
      %p200 = scmp.lt.s32.totalorder %s14, 3
      %s201 = scalar_select %p200, %s14, 3
      %s202 = smul.addr %s201, 9
      %s203 = smul.addr %s202, 8
      %s204 = scalar_lea.vmem %s3, %s203
      %v206 = vld [vmem:[%s191] sm:$0xf]
      %v207 = vld [vmem:[%s191 + $0x4] sm:$0xf]
      %v208 = vld [vmem:[%s191 + $0x8] sm:$0xf]
      %v209 = vld [vmem:[%s191 + $0xc] sm:$0xf]
      %v210 = vld [vmem:[%s191 + $0x10] sm:$0xf]
      %v211 = vld [vmem:[%s191 + $0x14] sm:$0xf]
      %v212 = vld [vmem:[%s191 + $0x18] sm:$0xf]
      %v213 = vld [vmem:[%s191 + $0x1c] sm:$0xf]
      %v214 = vld [vmem:[%s191 + $0x20] sm:$0xf]
      %v215 = vld [vmem:[%s196] sm:$0xf]
      %v216 = vld [vmem:[%s196 + $0x4] sm:$0xf]
      %v217 = vld [vmem:[%s196 + $0x8] sm:$0xf]
      %v218 = vld [vmem:[%s196 + $0xc] sm:$0xf]
      %v219 = vld [vmem:[%s196 + $0x10] sm:$0xf]
      %v220 = vld [vmem:[%s196 + $0x14] sm:$0xf]
      %v221 = vld [vmem:[%s196 + $0x18] sm:$0xf]
      %v222 = vld [vmem:[%s196 + $0x1c] sm:$0xf]
      %v223 = vld [vmem:[%s196 + $0x20] sm:$0xf]
      %v224 = vld [vmem:[%s196 + $0x24] sm:$0xf]
      %v225 = vld [vmem:[%s196 + $0x28] sm:$0xf]
      %v226 = vld [vmem:[%s196 + $0x2c] sm:$0xf]
      %v227 = vld [vmem:[%s196 + $0x30] sm:$0xf]
      %v228 = vld [vmem:[%s196 + $0x34] sm:$0xf]
      %v229 = vld [vmem:[%s196 + $0x38] sm:$0xf]
      %v230 = vld [vmem:[%s196 + $0x3c] sm:$0xf]
      %v231 = vld [vmem:[%s199] sm:$0x1]
      %v233 = vlaneseq
      %v234 = vshrl.u32 %v233, 7
      %v235 = vsub.s32 0, %v234
      %v236 = vrot.slane %v231, %v235
      %v247 = vunpack.c.l.b16 %v206
      %v248 = vunpack.c.l.b16 %v207
      %v249 = vunpack.c.l.b16 %v208
      %v250 = vunpack.c.l.b16 %v209
      %v251 = vunpack.c.l.b16 %v210
      %v252 = vunpack.c.l.b16 %v211
      %v253 = vunpack.c.l.b16 %v212
      %v254 = vunpack.c.l.b16 %v213
      %v255 = vunpack.c.l.b16 %v214
      %v256 = vpack.c.b16 %v248, %v247
      %v257 = vpack.c.b16 %v250, %v249
      %v258 = vpack.c.b16 %v252, %v251
      %v259 = vpack.c.b16 %v254, %v253
      %v260 = vpack.c.b16 %v255, %v255
      %v282 = vunpack.c.l.b16 %v215
      %v283 = vunpack.c.l.b16 %v216
      %v284 = vunpack.c.l.b16 %v217
      %v285 = vunpack.c.l.b16 %v218
      %v286 = vunpack.c.l.b16 %v219
      %v287 = vunpack.c.l.b16 %v220
      %v288 = vunpack.c.l.b16 %v221
      %v289 = vunpack.c.l.b16 %v222
      %v290 = vunpack.c.l.b16 %v223
      %v291 = vunpack.c.l.b16 %v224
      %v292 = vunpack.c.l.b16 %v225
      %v293 = vunpack.c.l.b16 %v226
      %v294 = vunpack.c.l.b16 %v227
      %v295 = vunpack.c.l.b16 %v228
      %v296 = vunpack.c.l.b16 %v229
      %v297 = vunpack.c.l.b16 %v230
      %v298 = vpack.c.b16 %v283, %v282
      %v299 = vpack.c.b16 %v285, %v284
      %v300 = vpack.c.b16 %v287, %v286
      %v301 = vpack.c.b16 %v289, %v288
      %v302 = vpack.c.b16 %v291, %v290
      %v303 = vpack.c.b16 %v293, %v292
      %v304 = vpack.c.b16 %v295, %v294
      %v305 = vpack.c.b16 %v297, %v296
      %314 = vmatprep.subr.bf16.mxu0 0
      %315 = vmatpush1.bf16.msra.mxu0 %v305
      %316 = vmatprep.subr.bf16.mxu0 0
      %317 = vmatpush1.bf16.msra.mxu0 %v304
      %318 = vmatprep.subr.bf16.mxu0 0
      %319 = vmatpush1.bf16.msra.mxu0 %v303
      %320 = vmatprep.subr.bf16.mxu0 0
      %321 = vmatpush1.bf16.msra.mxu0 %v302
      %322 = vmatprep.subr.bf16.mxu0 0
      %323 = vmatpush1.bf16.msra.mxu0 %v301
      %324 = vmatprep.subr.bf16.mxu0 0
      %325 = vmatpush1.bf16.msra.mxu0 %v300
      %326 = vmatprep.subr.bf16.mxu0 0
      %327 = vmatpush1.bf16.msra.mxu0 %v299
      %328 = vmatprep.subr.bf16.mxu0 0
      %329 = vmatpush1.bf16.msra.mxu0 %v298
      %330 = vmatprep.subr.bf16.mxu0 0
      %331 = vmatpush2.bf16.msra.mxu0 0
      %332 = vmatprep.subr.bf16.mxu0 0
      %333 = vmatpush2.bf16.msra.mxu0 0
      %334 = vmatprep.subr.bf16.mxu0 0
      %335 = vmatpush2.bf16.msra.mxu0 0
      %336 = vmatprep.subr.bf16.mxu0 0
      %337 = vmatpush2.bf16.msra.mxu0 0
      %338 = vmatprep.subr.bf16.mxu0 0
      %339 = vmatpush2.bf16.msra.mxu0 0
      %340 = vmatprep.subr.bf16.mxu0 0
      %341 = vmatpush2.bf16.msra.mxu0 0
      %342 = vmatprep.subr.bf16.mxu0 0
      %343 = vmatpush2.bf16.msra.mxu0 0
      %344 = vmatprep.subr.bf16.mxu0 0
      %345 = vmatpush2.bf16.msra.mxu0 0
      %346 = vmatprep.mubr.bf16.mxu0 0
      %347 = vmatmul.mubr.bf16.gmra.mxu0 %v256
      %v348 = vpop.f32.mrf.mxu0
      %v349 = vadd.f32 %v236, %v348
      %v350 = vpop.f32.mrf.mxu0
      %v351 = vpop.f32.mrf.mxu0
      %v352 = vadd.f32 %v236, %v351
      %v353 = vpop.f32.mrf.mxu0
      %354 = vmatprep.mubr.bf16.mxu0 0
      %355 = vmatmul.mubr.bf16.gmra.mxu0 %v257
      %v356 = vpop.f32.mrf.mxu0
      %v357 = vadd.f32 %v236, %v356
      %v358 = vpop.f32.mrf.mxu0
      %v359 = vpop.f32.mrf.mxu0
      %v360 = vadd.f32 %v236, %v359
      %v361 = vpop.f32.mrf.mxu0
      %362 = vmatprep.mubr.bf16.mxu0 0
      %363 = vmatmul.mubr.bf16.gmra.mxu0 %v258
      %v364 = vpop.f32.mrf.mxu0
      %v365 = vadd.f32 %v236, %v364
      %v366 = vpop.f32.mrf.mxu0
      %v367 = vpop.f32.mrf.mxu0
      %v368 = vadd.f32 %v236, %v367
      %v369 = vpop.f32.mrf.mxu0
      %370 = vmatprep.mubr.bf16.mxu0 0
      %371 = vmatmul.mubr.bf16.gmra.mxu0 %v259
      %v372 = vpop.f32.mrf.mxu0
      %v373 = vadd.f32 %v236, %v372
      %v374 = vpop.f32.mrf.mxu0
      %v375 = vpop.f32.mrf.mxu0
      %v376 = vadd.f32 %v236, %v375
      %v377 = vpop.f32.mrf.mxu0
      %378 = vmatprep.mubr.bf16.mxu0 0
      %379 = vmatmul.mubr.bf16.gmra.mxu0 %v260
      %v380 = vpop.f32.mrf.mxu0
      %v381 = vadd.f32 %v236, %v380
      %v382 = vpop.f32.mrf.mxu0
      %v383 = vpop.f32.mrf.mxu0
      %v384 = vpop.f32.mrf.mxu0
      %385 = vdwg.mxu0
      %v386 = vmax.f32 %v349, 0.0
      %v387 = vmax.f32 %v352, 0.0
      %v388 = vmax.f32 %v357, 0.0
      %v389 = vmax.f32 %v360, 0.0
      %v390 = vmax.f32 %v365, 0.0
      %v391 = vmax.f32 %v368, 0.0
      %v392 = vmax.f32 %v373, 0.0
      %v393 = vmax.f32 %v376, 0.0
      %v394 = vmax.f32 %v381, 0.0
      %395 = vst [vmem:[%s204] sm:$0xff] %v386
      %396 = vst [vmem:[%s204 + $0x8] sm:$0xff] %v387
      %397 = vst [vmem:[%s204 + $0x10] sm:$0xff] %v388
      %398 = vst [vmem:[%s204 + $0x18] sm:$0xff] %v389
      %399 = vst [vmem:[%s204 + $0x20] sm:$0xff] %v390
      %400 = vst [vmem:[%s204 + $0x28] sm:$0xff] %v391
      %401 = vst [vmem:[%s204 + $0x30] sm:$0xff] %v392
      %402 = vst [vmem:[%s204 + $0x38] sm:$0xff] %v393
      %403 = vst [vmem:[%s204 + $0x40] sm:$0xff] %v394
      %p404 = scmp.lt.s32.totalorder %s14, 3
      %s405 = scalar_select %p404, %s14, 3
      %s406 = smul.addr %s405, 9
      %s407 = smul.addr %s406, 8
      %s408 = scalar_lea.vmem %s3, %s407
      // Predicated region
      $region33: #{segmentation_decoder_forward.2} parent=31 // pred_check
        %p409 = pneg %p110
      $region34: #{segmentation_decoder_forward.2} parent=31 // pred_check_branch
        %411 = sbr.rel (%p409) target = $region36
      $region35: #{segmentation_decoder_forward.2} parent=31 // pred_region
        _
      $region36: #{segmentation_decoder_forward.2} parent=31 // pred_fallthru
        _
    $region32: #{segmentation_decoder_forward.2} parent=5 // pred_fallthru
      _
    %p412 = scmp.le.s32.totalorder 2, %s9
    // Predicated region
    $region37: #{segmentation_decoder_forward.2} parent=5 // pred_check
      %p413 = pneg %p412
    $region38: #{segmentation_decoder_forward.2} parent=5 // pred_check_branch
      %415 = sbr.rel (%p413) target = $region40
    $region39: #{segmentation_decoder_forward.2} parent=5 // pred_region
      %s416 = ssub.s32 %s9, 2
      // Predicated region
      $region41: #{segmentation_decoder_forward.2} parent=39 // pred_check
        %p417 = pneg %p116
      $region42: #{segmentation_decoder_forward.2} parent=39 // pred_check_branch
        %419 = sbr.rel (%p417) target = $region44
      $region43: #{segmentation_decoder_forward.2} parent=39 // pred_region
        %p420 = scmp.lt.s32.totalorder %s15, 3
        %s421 = scalar_select %p420, %s15, 3
        %s422 = smul.addr %s421, 9
        %s423 = smul.addr %s422, 8
        %s424 = scalar_lea.vmem %s3, %s423
      $region44: #{segmentation_decoder_forward.2} parent=39 // pred_fallthru
        _
    $region40: #{segmentation_decoder_forward.2} parent=5 // pred_fallthru
      _
  $region6: #{segmentation_decoder_forward.2} parent=0 // loop_footer
    %s13 = sadd.s32 1, %s9
  $region7: #{segmentation_decoder_forward.2} parent=0 // loop_footer_branch
    %8 = sbr.rel target = $region3
  $region8: #{segmentation_decoder_forward.2} parent=0 // loop_exit
    _

// kernel: squeeze.7
$region0: #{squeeze.7}
  %s0 = inlined_call_operand.vmem [shape: f32[1,72,128], index: 0, kind: input, shape index: {}]
  %s1 = inlined_call_operand.vmem [shape: f32[2,6,6,128], index: 1, kind: output, shape index: {}]
  %v2 = vld [vmem:[%s0] sm:$0xff]
  %3 = vst [vmem:[%s1] sm:$0x3f] %v2
  %s4 = scalar_lea.vmem %s1, 2
  %5 = vst [vmem:[%s4] sm:$0xc0] %v2
  %s6 = scalar_lea.vmem %s0, 8
  %v7 = vld [vmem:[%s6] sm:$0xff]
  %s8 = scalar_lea.vmem %s1, 10
  %9 = vst [vmem:[%s8] sm:$0xf] %v7
  %s10 = scalar_lea.vmem %s1, 12
  %11 = vst [vmem:[%s10] sm:$0xf0] %v7
  %s12 = scalar_lea.vmem %s0, 16
  %v13 = vld [vmem:[%s12] sm:$0xff]
  %s14 = scalar_lea.vmem %s1, 20
  %15 = vst [vmem:[%s14] sm:$0x3] %v13
  %s16 = scalar_lea.vmem %s1, 22
  %17 = vst [vmem:[%s16] sm:$0xfc] %v13
  %s18 = scalar_lea.vmem %s0, 24
  %v19 = vld [vmem:[%s18] sm:$0xff]
  %s20 = scalar_lea.vmem %s1, 32
  %21 = vst [vmem:[%s20] sm:$0x3f] %v19
  %s22 = scalar_lea.vmem %s1, 34
  %23 = vst [vmem:[%s22] sm:$0xc0] %v19
  %s24 = scalar_lea.vmem %s0, 32
  %v25 = vld [vmem:[%s24] sm:$0xff]
  %s26 = scalar_lea.vmem %s1, 42
  %27 = vst [vmem:[%s26] sm:$0xf] %v25
  %s28 = scalar_lea.vmem %s1, 44
  %29 = vst [vmem:[%s28] sm:$0xf0] %v25
  %s30 = scalar_lea.vmem %s0, 40
  %v31 = vld [vmem:[%s30] sm:$0xff]
  %s32 = scalar_lea.vmem %s1, 52
  %33 = vst [vmem:[%s32] sm:$0x3] %v31
  %s34 = scalar_lea.vmem %s1, 54
  %35 = vst [vmem:[%s34] sm:$0xfc] %v31
  %s36 = scalar_lea.vmem %s0, 48
  %v37 = vld [vmem:[%s36] sm:$0xff]
  %s38 = scalar_lea.vmem %s1, 64
  %39 = vst [vmem:[%s38] sm:$0x3f] %v37
  %s40 = scalar_lea.vmem %s1, 66
  %41 = vst [vmem:[%s40] sm:$0xc0] %v37
  %s42 = scalar_lea.vmem %s0, 56
  %v43 = vld [vmem:[%s42] sm:$0xff]
  %s44 = scalar_lea.vmem %s1, 74
  %45 = vst [vmem:[%s44] sm:$0xf] %v43
  %s46 = scalar_lea.vmem %s1, 76
  %47 = vst [vmem:[%s46] sm:$0xf0] %v43
  %s48 = scalar_lea.vmem %s0, 64
  %v49 = vld [vmem:[%s48] sm:$0xff]
  %s50 = scalar_lea.vmem %s1, 84
  %51 = vst [vmem:[%s50] sm:$0x3] %v49
  %s52 = scalar_lea.vmem %s1, 86
  %53 = vst [vmem:[%s52] sm:$0xfc] %v49

// kernel: segmentation_decoder_forward.3
$region0: #{segmentation_decoder_forward.3}
  #allocation0 [shape = 'u32[]', space=smem, size = 0x4, offset = 0x4, fixed_abs, tag = 'smem constant byte address 0x4 - core index']
  #allocation1 [shape = 'u32[144,128]{1,0:T(1,128)}', space=vmem, size = 0x12000, scoped, tag = 'internal scratch']
  #allocation2 [shape = 'f32[166,128]{1,0:T(8,128)}', space=vmem, size = 0x15000, scoped, tag = 'scratch operand']
  %s0 = inlined_call_operand.vmem [shape: f32[2,196,640], index: 0, kind: input, shape index: {}]
  %s1 = inlined_call_operand.vmem [shape: bf16[9,640,128], index: 1, kind: input, shape index: {}]
  %s2 = inlined_call_operand.vmem [shape: f32[1,128], index: 2, kind: input, shape index: {}]
  %s3 = inlined_call_operand.vmem [shape: bf16[128,128], index: 3, kind: input, shape index: {}]
  %s4 = inlined_call_operand.vmem [shape: f32[1,128], index: 4, kind: input, shape index: {}]
  %s5 = inlined_call_operand.vmem [shape: f32[2,166,128], index: 5, kind: output, shape index: {}]
  %s6 = sld [smem:[#allocation0]]
  $region140: #{segmentation_decoder_forward.3} parent=0
    _
  %s8 = ssub.s32 1, %s6
  %s9 = scalar_select 0, %s8, %s6
  $region1: #{segmentation_decoder_forward.3} parent=0
    #allocation3 [shape = 'u8[204800]{0}', space=vmem, size = 0x32000, scoped, tag = 'input window, operand 0']
    #allocation4 [shape = 'u8[589824]{0}', space=vmem, size = 0x90000, scoped, tag = 'input window, operand 1']
    loop: start=0, step=1, limit=12
    $region2: #{segmentation_decoder_forward.3} parent=1 // loop_pre_header
      _
    $region3: #{segmentation_decoder_forward.3} parent=1 // loop_header
      %s11 = sphi 0, %s15
      %p12 = scmp.ge.s32.totalorder %s11, 12
      %s18 = sphi 0, %s30
      %s19 = sphi 0, %s26
      %s20 = sphi 0, %s18
      %s21 = sphi 0, %s19
      %s22 = sphi 0, %s20
      %s23 = sphi 0, %s21
      %s35 = sphi 0, %s37
      %s38 = sphi 0, %s35
      %s39 = sphi 0, %s38
      %s55 = sphi 0, %s39
      %s61 = sphi 0, %s63
      %s64 = sphi 0, %s61
      %s65 = sphi 0, %s64
      %s81 = sphi 0, %s65
      %s85 = sphi 0, %s85
      %s87 = sphi 0, %s85
      %s88 = sphi 0, %s87
      %s102 = sphi 0, %s88
      %s106 = sphi 0, %s106
      %s108 = sphi 0, %s106
      %s109 = sphi 0, %s108
      %s123 = sphi 0, %s109
      %s127 = sphi 0, %s127
      %s129 = sphi 0, %s127
      %s130 = sphi 0, %s129
      %s144 = sphi 0, %s130
      %s150 = sphi 0, %s152
      %s153 = sphi 0, %s150
      %s154 = sphi 0, %s153
      %s170 = sphi 0, %s154
    $region4: #{segmentation_decoder_forward.3} parent=1 // loop_header_branch
      %14 = sbr.rel (%p12) target = $region8
    $region5: #{segmentation_decoder_forward.3} parent=1 // loop_body
      %s16 = ssub.s32 %s11, 1
      %s17 = ssub.s32 %s11, 2
      %s24 = sadd.s32 1, %s19
      %p25 = scmp.ge.s32.totalorder %s24, 5
      %s26 = scalar_select %p25, 0, %s24
      %s27 = sadd.s32 1, %s18
      %s28 = scalar_select %p25, %s27, %s18
      %p29 = scmp.ge.s32.totalorder %s28, 2
      %s30 = scalar_select %p29, 0, %s28
      %s31 = ssub.s32 %s18, %s30
      %s32 = ssub.s32 %s19, %s26
      %s33 = sor.u32 %s31, %s32
      %p34 = scmp.eq.s32.totalorder %s33, 0
      %s36 = sadd.s32 %s35, 1
      %s37 = scalar_select %p34, %s35, %s36
      %p40 = pneg %p34
      %p41 = scmp.eq.s32.totalorder %s11, 9
      %p42 = por %p40, %p41
      %p43 = scmp.ne.s32.totalorder %s35, %s38
      %p44 = scmp.eq.s32.totalorder %s11, 0
      %p45 = por %p43, %p44
      %p46 = scmp.ne.s32.totalorder %s35, %s38
      %p47 = scmp.eq.s32.totalorder %s16, 9
      %p48 = por %p46, %p47
      %p49 = scmp.ne.s32.totalorder %s38, %s39
      %p50 = scmp.eq.s32.totalorder %s16, 0
      %p51 = por %p49, %p50
      %p52 = scmp.ne.s32.totalorder %s38, %s39
      %p53 = scmp.eq.s32.totalorder %s17, 9
      %p54 = por %p52, %p53
      %p56 = scmp.ne.s32.totalorder %s39, %s55
      %p57 = scmp.eq.s32.totalorder %s17, 0
      %p58 = por %p56, %p57
      %s59 = ssub.s32 %s19, %s26
      %p60 = scmp.eq.s32.totalorder %s59, 0
      %s62 = sadd.s32 %s61, 1
      %s63 = scalar_select %p60, %s61, %s62
      %p66 = pneg %p60
      %p67 = scmp.eq.s32.totalorder %s11, 9
      %p68 = por %p66, %p67
      %p69 = scmp.ne.s32.totalorder %s61, %s64
      %p70 = scmp.eq.s32.totalorder %s11, 0
      %p71 = por %p69, %p70
      %p72 = scmp.ne.s32.totalorder %s61, %s64
      %p73 = scmp.eq.s32.totalorder %s16, 9
      %p74 = por %p72, %p73
      %p75 = scmp.ne.s32.totalorder %s64, %s65
      %p76 = scmp.eq.s32.totalorder %s16, 0
      %p77 = por %p75, %p76
      %p78 = scmp.ne.s32.totalorder %s64, %s65
      %p79 = scmp.eq.s32.totalorder %s17, 9
      %p80 = por %p78, %p79
      %p82 = scmp.ne.s32.totalorder %s65, %s81
      %p83 = scmp.eq.s32.totalorder %s17, 0
      %p84 = por %p82, %p83
      %s86 = sadd.s32 %s85, 1
      %p89 = scmp.eq.s32.totalorder %s11, 9
      %p90 = scmp.ne.s32.totalorder %s85, %s87
      %p91 = scmp.eq.s32.totalorder %s11, 0
      %p92 = por %p90, %p91
      %p93 = scmp.ne.s32.totalorder %s85, %s87
      %p94 = scmp.eq.s32.totalorder %s16, 9
      %p95 = por %p93, %p94
      %p96 = scmp.ne.s32.totalorder %s87, %s88
      %p97 = scmp.eq.s32.totalorder %s16, 0
      %p98 = por %p96, %p97
      %p99 = scmp.ne.s32.totalorder %s87, %s88
      %p100 = scmp.eq.s32.totalorder %s17, 9
      %p101 = por %p99, %p100
      %p103 = scmp.ne.s32.totalorder %s88, %s102
      %p104 = scmp.eq.s32.totalorder %s17, 0
      %p105 = por %p103, %p104
      %s107 = sadd.s32 %s106, 1
      %p110 = scmp.eq.s32.totalorder %s11, 9
      %p111 = scmp.ne.s32.totalorder %s106, %s108
      %p112 = scmp.eq.s32.totalorder %s11, 0
      %p113 = por %p111, %p112
      %p114 = scmp.ne.s32.totalorder %s106, %s108
      %p115 = scmp.eq.s32.totalorder %s16, 9
      %p116 = por %p114, %p115
      %p117 = scmp.ne.s32.totalorder %s108, %s109
      %p118 = scmp.eq.s32.totalorder %s16, 0
      %p119 = por %p117, %p118
      %p120 = scmp.ne.s32.totalorder %s108, %s109
      %p121 = scmp.eq.s32.totalorder %s17, 9
      %p122 = por %p120, %p121
      %p124 = scmp.ne.s32.totalorder %s109, %s123
      %p125 = scmp.eq.s32.totalorder %s17, 0
      %p126 = por %p124, %p125
      %s128 = sadd.s32 %s127, 1
      %p131 = scmp.eq.s32.totalorder %s11, 9
      %p132 = scmp.ne.s32.totalorder %s127, %s129
      %p133 = scmp.eq.s32.totalorder %s11, 0
      %p134 = por %p132, %p133
      %p135 = scmp.ne.s32.totalorder %s127, %s129
      %p136 = scmp.eq.s32.totalorder %s16, 9
      %p137 = por %p135, %p136
      %p138 = scmp.ne.s32.totalorder %s129, %s130
      %p139 = scmp.eq.s32.totalorder %s16, 0
      %p140 = por %p138, %p139
      %p141 = scmp.ne.s32.totalorder %s129, %s130
      %p142 = scmp.eq.s32.totalorder %s17, 9
      %p143 = por %p141, %p142
      %p145 = scmp.ne.s32.totalorder %s130, %s144
      %p146 = scmp.eq.s32.totalorder %s17, 0
      %p147 = por %p145, %p146
      %s148 = ssub.s32 %s18, %s30
      %p149 = scmp.eq.s32.totalorder %s148, 0
      %s151 = sadd.s32 %s150, 1
      %s152 = scalar_select %p149, %s150, %s151
      %p155 = pneg %p149
      %p156 = scmp.eq.s32.totalorder %s11, 9
      %p157 = por %p155, %p156
      %p158 = scmp.ne.s32.totalorder %s150, %s153
      %p159 = scmp.eq.s32.totalorder %s11, 0
      %p160 = por %p158, %p159
      %p161 = scmp.ne.s32.totalorder %s150, %s153
      %p162 = scmp.eq.s32.totalorder %s16, 9
      %p163 = por %p161, %p162
      %p164 = scmp.ne.s32.totalorder %s153, %s154
      %p165 = scmp.eq.s32.totalorder %s16, 0
      %p166 = por %p164, %p165
      %p167 = scmp.ne.s32.totalorder %s153, %s154
      %p168 = scmp.eq.s32.totalorder %s17, 9
      %p169 = por %p167, %p168
      %p171 = scmp.ne.s32.totalorder %s154, %s170
      %p172 = scmp.eq.s32.totalorder %s17, 0
      %p173 = por %p171, %p172
      %p174 = scmp.le.s32.totalorder 1, %s11
      %p175 = scmp.lt.s32.totalorder %s11, 11
      %p176 = pnand %p174, %p175
      %p177 = pneg %p176
      // Predicated region
      $region9: #{segmentation_decoder_forward.3} parent=5 // pred_check
        _
      $region10: #{segmentation_decoder_forward.3} parent=5 // pred_check_branch
        %179 = sbr.rel (%p176) target = $region12
      $region11: #{segmentation_decoder_forward.3} parent=5 // pred_region
        %s180 = ssub.s32 %s11, 1
        // Predicated region
        $region13: #{segmentation_decoder_forward.3} parent=11 // pred_check
          %p181 = pneg %p98
        $region14: #{segmentation_decoder_forward.3} parent=11 // pred_check_branch
          %183 = sbr.rel (%p181) target = $region16
        $region15: #{segmentation_decoder_forward.3} parent=11 // pred_region
          _
        $region16: #{segmentation_decoder_forward.3} parent=11 // pred_fallthru
          _
        // Predicated region
        $region17: #{segmentation_decoder_forward.3} parent=11 // pred_check
          %p184 = pneg %p119
        $region18: #{segmentation_decoder_forward.3} parent=11 // pred_check_branch
          %186 = sbr.rel (%p184) target = $region20
        $region19: #{segmentation_decoder_forward.3} parent=11 // pred_region
          _
        $region20: #{segmentation_decoder_forward.3} parent=11 // pred_fallthru
          _
        // Predicated region
        $region21: #{segmentation_decoder_forward.3} parent=11 // pred_check
          %p187 = pneg %p140
        $region22: #{segmentation_decoder_forward.3} parent=11 // pred_check_branch
          %189 = sbr.rel (%p187) target = $region24
        $region23: #{segmentation_decoder_forward.3} parent=11 // pred_region
          _
        $region24: #{segmentation_decoder_forward.3} parent=11 // pred_fallthru
          _
      $region12: #{segmentation_decoder_forward.3} parent=5 // pred_fallthru
        _
      %p190 = scmp.lt.s32.totalorder %s11, 10
      // Predicated region
      $region25: #{segmentation_decoder_forward.3} parent=5 // pred_check
        %p191 = pneg %p190
      $region26: #{segmentation_decoder_forward.3} parent=5 // pred_check_branch
        %193 = sbr.rel (%p191) target = $region28
      $region27: #{segmentation_decoder_forward.3} parent=5 // pred_region
        // Predicated region
        $region29: #{segmentation_decoder_forward.3} parent=27 // pred_check
          %p194 = pneg %p45
        $region30: #{segmentation_decoder_forward.3} parent=27 // pred_check_branch
          %196 = sbr.rel (%p194) target = $region32
        $region31: #{segmentation_decoder_forward.3} parent=27 // pred_region
          %s197 = sand.u32 %s35, 1
          %s198 = sand.u32 %s35, 1
          %s199 = smul.addr %s198, 200
          %s200 = scalar_lea.vmem [#allocation3], %s199
          %s201 = smul.addr %s18, 125
          %s202 = sadd.s32 %s19, %s201
          %s203 = smul.addr %s202, 8
          %s204 = scalar_lea.vmem %s0, %s203
          // Predicated region
          $region33: #{segmentation_decoder_forward.3} parent=31 // pred_check
            _
          $region34: #{segmentation_decoder_forward.3} parent=31 // pred_check_branch
            %206 = sbr.rel (0) target = $region36
          $region35: #{segmentation_decoder_forward.3} parent=31 // pred_region
            // Predicated region
            $region37: #{segmentation_decoder_forward.3} parent=35 // pred_check
              _
            $region38: #{segmentation_decoder_forward.3} parent=35 // pred_check_branch
              %208 = sbr.rel (0) target = $region40
            $region39: #{segmentation_decoder_forward.3} parent=35 // pred_region
              // Predicated region
              $region52: #{segmentation_decoder_forward.3} parent=39 // pred_check
                _
              $region53: #{segmentation_decoder_forward.3} parent=39 // pred_check_branch
                %272 = sbr.rel (0) target = $region55
              $region54: #{segmentation_decoder_forward.3} parent=39 // pred_region
                loop: start=0, step=1, limit=1
                $region56: #{segmentation_decoder_forward.3} parent=54 // loop_pre_header
                  _
                $region57: #{segmentation_decoder_forward.3} parent=54 // loop_header
                  %s274 = sphi 0, %s278
                  %p275 = scmp.ge.s32.totalorder %s274, 1
                  %s279 = sphi %s204, %s204
                  %s280 = sphi %s200, %s200
                $region58: #{segmentation_decoder_forward.3} parent=54 // loop_header_branch
                  %277 = sbr.rel (%p275) target = $region62
                $region59: #{segmentation_decoder_forward.3} parent=54 // loop_body
                  %v281 = vld [vmem:[%s279] sm:$0xff]
                  %282 = vst [vmem:[%s280] sm:$0xff] %v281
                  %v283 = vld [vmem:[%s279 + $0x28] sm:$0xff]
                  %284 = vst [vmem:[%s280 + $0x8] sm:$0xff] %v283
                  %v285 = vld [vmem:[%s279 + $0x50] sm:$0xff]
                  %286 = vst [vmem:[%s280 + $0x10] sm:$0xff] %v285
                  %v287 = vld [vmem:[%s279 + $0x78] sm:$0xff]
                  %288 = vst [vmem:[%s280 + $0x18] sm:$0xff] %v287
                  %v289 = vld [vmem:[%s279 + $0xa0] sm:$0xff]
                  %290 = vst [vmem:[%s280 + $0x20] sm:$0xff] %v289
                  %v291 = vld [vmem:[%s279 + $0xc8] sm:$0xff]
                  %292 = vst [vmem:[%s280 + $0x28] sm:$0xff] %v291
                  %v293 = vld [vmem:[%s279 + $0xf0] sm:$0xff]
                  %294 = vst [vmem:[%s280 + $0x30] sm:$0xff] %v293
                  %v295 = vld [vmem:[%s279 + $0x118] sm:$0xff]
                  %296 = vst [vmem:[%s280 + $0x38] sm:$0xff] %v295
                  %v297 = vld [vmem:[%s279 + $0x140] sm:$0xff]
                  %298 = vst [vmem:[%s280 + $0x40] sm:$0xff] %v297
                  %v299 = vld [vmem:[%s279 + $0x168] sm:$0xff]
                  %300 = vst [vmem:[%s280 + $0x48] sm:$0xff] %v299
                  %v301 = vld [vmem:[%s279 + $0x190] sm:$0xff]
                  %302 = vst [vmem:[%s280 + $0x50] sm:$0xff] %v301
                  %v303 = vld [vmem:[%s279 + $0x1b8] sm:$0xff]
                  %304 = vst [vmem:[%s280 + $0x58] sm:$0xff] %v303
                  %v305 = vld [vmem:[%s279 + $0x1e0] sm:$0xff]
                  %306 = vst [vmem:[%s280 + $0x60] sm:$0xff] %v305
                  %v307 = vld [vmem:[%s279 + $0x208] sm:$0xff]
                  %308 = vst [vmem:[%s280 + $0x68] sm:$0xff] %v307
                  %v309 = vld [vmem:[%s279 + $0x230] sm:$0xff]
                  %310 = vst [vmem:[%s280 + $0x70] sm:$0xff] %v309
                  %v311 = vld [vmem:[%s279 + $0x258] sm:$0xff]
                  %312 = vst [vmem:[%s280 + $0x78] sm:$0xff] %v311
                  %v313 = vld [vmem:[%s279 + $0x280] sm:$0xff]
                  %314 = vst [vmem:[%s280 + $0x80] sm:$0xff] %v313
                  %v315 = vld [vmem:[%s279 + $0x2a8] sm:$0xff]
                  %316 = vst [vmem:[%s280 + $0x88] sm:$0xff] %v315
                  %v317 = vld [vmem:[%s279 + $0x2d0] sm:$0xff]
                  %318 = vst [vmem:[%s280 + $0x90] sm:$0xff] %v317
                  %v319 = vld [vmem:[%s279 + $0x2f8] sm:$0xff]
                  %320 = vst [vmem:[%s280 + $0x98] sm:$0xff] %v319
                  %v321 = vld [vmem:[%s279 + $0x320] sm:$0xff]
                  %322 = vst [vmem:[%s280 + $0xa0] sm:$0xff] %v321
                  %v323 = vld [vmem:[%s279 + $0x348] sm:$0xff]
                  %324 = vst [vmem:[%s280 + $0xa8] sm:$0xff] %v323
                  %v325 = vld [vmem:[%s279 + $0x370] sm:$0xff]
                  %326 = vst [vmem:[%s280 + $0xb0] sm:$0xff] %v325
                  %v327 = vld [vmem:[%s279 + $0x398] sm:$0xff]
                  %328 = vst [vmem:[%s280 + $0xb8] sm:$0xff] %v327
                  %v329 = vld [vmem:[%s279 + $0x3c0] sm:$0xff]
                  %330 = vst [vmem:[%s280 + $0xc0] sm:$0xff] %v329
                $region60: #{segmentation_decoder_forward.3} parent=54 // loop_footer
                  %s278 = sadd.s32 1, %s274
                $region61: #{segmentation_decoder_forward.3} parent=54 // loop_footer_branch
                  %273 = sbr.rel target = $region57
                $region62: #{segmentation_decoder_forward.3} parent=54 // loop_exit
                  _
              $region55: #{segmentation_decoder_forward.3} parent=39 // pred_fallthru
                _
              // Predicated region
              $region63: #{segmentation_decoder_forward.3} parent=39 // pred_check
                _
              $region64: #{segmentation_decoder_forward.3} parent=39 // pred_check_branch
                %332 = sbr.rel target = $region66
              $region65: #{segmentation_decoder_forward.3} parent=39 // pred_region
                _
              $region66: #{segmentation_decoder_forward.3} parent=39 // pred_fallthru
                _
            $region40: #{segmentation_decoder_forward.3} parent=35 // pred_fallthru
              _
            // Predicated region
            $region41: #{segmentation_decoder_forward.3} parent=35 // pred_check
              _
            $region42: #{segmentation_decoder_forward.3} parent=35 // pred_check_branch
              %210 = sbr.rel target = $region44
            $region43: #{segmentation_decoder_forward.3} parent=35 // pred_region
              %s212 = ssub.s32 256, 1
              loop: start=0, step=1, limit=1
              $region45: #{segmentation_decoder_forward.3} parent=43 // loop_pre_header
                _
              $region46: #{segmentation_decoder_forward.3} parent=43 // loop_header
                %s214 = sphi 0, %s218
                %p215 = scmp.ge.s32.totalorder %s214, 1
                %s219 = sphi %s204, %s204
                %s220 = sphi %s200, %s200
              $region47: #{segmentation_decoder_forward.3} parent=43 // loop_header_branch
                %217 = sbr.rel (%p215) target = $region51
              $region48: #{segmentation_decoder_forward.3} parent=43 // loop_body
                %v221 = vld [vmem:[%s219] sm:%s212]
                %222 = vst [vmem:[%s220] sm:%s212] %v221
                %v223 = vld [vmem:[%s219 + $0x28] sm:%s212]
                %224 = vst [vmem:[%s220 + $0x8] sm:%s212] %v223
                %v225 = vld [vmem:[%s219 + $0x50] sm:%s212]
                %226 = vst [vmem:[%s220 + $0x10] sm:%s212] %v225
                %v227 = vld [vmem:[%s219 + $0x78] sm:%s212]
                %228 = vst [vmem:[%s220 + $0x18] sm:%s212] %v227
                %v229 = vld [vmem:[%s219 + $0xa0] sm:%s212]
                %230 = vst [vmem:[%s220 + $0x20] sm:%s212] %v229
                %v231 = vld [vmem:[%s219 + $0xc8] sm:%s212]
                %232 = vst [vmem:[%s220 + $0x28] sm:%s212] %v231
                %v233 = vld [vmem:[%s219 + $0xf0] sm:%s212]
                %234 = vst [vmem:[%s220 + $0x30] sm:%s212] %v233
                %v235 = vld [vmem:[%s219 + $0x118] sm:%s212]
                %236 = vst [vmem:[%s220 + $0x38] sm:%s212] %v235
                %v237 = vld [vmem:[%s219 + $0x140] sm:%s212]
                %238 = vst [vmem:[%s220 + $0x40] sm:%s212] %v237
                %v239 = vld [vmem:[%s219 + $0x168] sm:%s212]
                %240 = vst [vmem:[%s220 + $0x48] sm:%s212] %v239
                %v241 = vld [vmem:[%s219 + $0x190] sm:%s212]
                %242 = vst [vmem:[%s220 + $0x50] sm:%s212] %v241
                %v243 = vld [vmem:[%s219 + $0x1b8] sm:%s212]
                %244 = vst [vmem:[%s220 + $0x58] sm:%s212] %v243
                %v245 = vld [vmem:[%s219 + $0x1e0] sm:%s212]
                %246 = vst [vmem:[%s220 + $0x60] sm:%s212] %v245
                %v247 = vld [vmem:[%s219 + $0x208] sm:%s212]
                %248 = vst [vmem:[%s220 + $0x68] sm:%s212] %v247
                %v249 = vld [vmem:[%s219 + $0x230] sm:%s212]
                %250 = vst [vmem:[%s220 + $0x70] sm:%s212] %v249
                %v251 = vld [vmem:[%s219 + $0x258] sm:%s212]
                %252 = vst [vmem:[%s220 + $0x78] sm:%s212] %v251
                %v253 = vld [vmem:[%s219 + $0x280] sm:%s212]
                %254 = vst [vmem:[%s220 + $0x80] sm:%s212] %v253
                %v255 = vld [vmem:[%s219 + $0x2a8] sm:%s212]
                %256 = vst [vmem:[%s220 + $0x88] sm:%s212] %v255
                %v257 = vld [vmem:[%s219 + $0x2d0] sm:%s212]
                %258 = vst [vmem:[%s220 + $0x90] sm:%s212] %v257
                %v259 = vld [vmem:[%s219 + $0x2f8] sm:%s212]
                %260 = vst [vmem:[%s220 + $0x98] sm:%s212] %v259
                %v261 = vld [vmem:[%s219 + $0x320] sm:%s212]
                %262 = vst [vmem:[%s220 + $0xa0] sm:%s212] %v261
                %v263 = vld [vmem:[%s219 + $0x348] sm:%s212]
                %264 = vst [vmem:[%s220 + $0xa8] sm:%s212] %v263
                %v265 = vld [vmem:[%s219 + $0x370] sm:%s212]
                %266 = vst [vmem:[%s220 + $0xb0] sm:%s212] %v265
                %v267 = vld [vmem:[%s219 + $0x398] sm:%s212]
                %268 = vst [vmem:[%s220 + $0xb8] sm:%s212] %v267
                %v269 = vld [vmem:[%s219 + $0x3c0] sm:%s212]
                %270 = vst [vmem:[%s220 + $0xc0] sm:%s212] %v269
              $region49: #{segmentation_decoder_forward.3} parent=43 // loop_footer
                %s218 = sadd.s32 1, %s214
              $region50: #{segmentation_decoder_forward.3} parent=43 // loop_footer_branch
                %213 = sbr.rel target = $region46
              $region51: #{segmentation_decoder_forward.3} parent=43 // loop_exit
                _
            $region44: #{segmentation_decoder_forward.3} parent=35 // pred_fallthru
              _
          $region36: #{segmentation_decoder_forward.3} parent=31 // pred_fallthru
            _
          %333 = vnop
        $region32: #{segmentation_decoder_forward.3} parent=27 // pred_fallthru
          _
        // Predicated region
        $region67: #{segmentation_decoder_forward.3} parent=27 // pred_check
          %p334 = pneg %p71
        $region68: #{segmentation_decoder_forward.3} parent=27 // pred_check_branch
          %336 = sbr.rel (%p334) target = $region70
        $region69: #{segmentation_decoder_forward.3} parent=27 // pred_region
          %s337 = sand.u32 %s61, 1
          %s338 = sand.u32 %s61, 1
          %s339 = smul.addr %s338, 576
          %s340 = scalar_lea.vmem [#allocation4], %s339
          %s341 = smul.u32 16, %s19
          %s342 = smul.addr %s341, 4
          %s343 = scalar_lea.vmem %s1, %s342
          // Predicated region
          $region71: #{segmentation_decoder_forward.3} parent=69 // pred_check
            _
          $region72: #{segmentation_decoder_forward.3} parent=69 // pred_check_branch
            %345 = sbr.rel (0) target = $region74
          $region73: #{segmentation_decoder_forward.3} parent=69 // pred_region
            // Predicated region
            $region75: #{segmentation_decoder_forward.3} parent=73 // pred_check
              _
            $region76: #{segmentation_decoder_forward.3} parent=73 // pred_check_branch
              %347 = sbr.rel target = $region78
            $region77: #{segmentation_decoder_forward.3} parent=73 // pred_region
              // Predicated region
              $region90: #{segmentation_decoder_forward.3} parent=77 // pred_check
                _
              $region91: #{segmentation_decoder_forward.3} parent=77 // pred_check_branch
                %649 = sbr.rel (0) target = $region93
              $region92: #{segmentation_decoder_forward.3} parent=77 // pred_region
                loop: start=0, step=1, limit=1
                $region94: #{segmentation_decoder_forward.3} parent=92 // loop_pre_header
                  _
                $region95: #{segmentation_decoder_forward.3} parent=92 // loop_header
                  %s651 = sphi 0, %s655
                  %p652 = scmp.ge.s32.totalorder %s651, 1
                  %s656 = sphi %s343, %s343
                  %s657 = sphi %s340, %s340
                $region96: #{segmentation_decoder_forward.3} parent=92 // loop_header_branch
                  %654 = sbr.rel (%p652) target = $region100
                $region97: #{segmentation_decoder_forward.3} parent=92 // loop_body
                  _
                $region98: #{segmentation_decoder_forward.3} parent=92 // loop_footer
                  %s655 = sadd.s32 1, %s651
                $region99: #{segmentation_decoder_forward.3} parent=92 // loop_footer_branch
                  %650 = sbr.rel target = $region95
                $region100: #{segmentation_decoder_forward.3} parent=92 // loop_exit
                  _
                %s659 = ssub.s32 16, 1
                loop: start=0, step=1, limit=1
                $region101: #{segmentation_decoder_forward.3} parent=92 // loop_pre_header
                  _
                $region102: #{segmentation_decoder_forward.3} parent=92 // loop_header
                  %s661 = sphi 0, %s665
                  %p662 = scmp.ge.s32.totalorder %s661, 1
                  %s666 = sphi %s343, %s343
                  %s667 = sphi %s340, %s340
                $region103: #{segmentation_decoder_forward.3} parent=92 // loop_header_branch
                  %664 = sbr.rel (%p662) target = $region107
                $region104: #{segmentation_decoder_forward.3} parent=92 // loop_body
                  %v668 = vld [vmem:[%s666] sm:%s659]
                  %669 = vst [vmem:[%s667] sm:%s659] %v668
                  %v670 = vld [vmem:[%s666 + $0x4] sm:%s659]
                  %671 = vst [vmem:[%s667 + $0x4] sm:%s659] %v670
                  %v672 = vld [vmem:[%s666 + $0x8] sm:%s659]
                  %673 = vst [vmem:[%s667 + $0x8] sm:%s659] %v672
                  %v674 = vld [vmem:[%s666 + $0xc] sm:%s659]
                  %675 = vst [vmem:[%s667 + $0xc] sm:%s659] %v674
                  %v676 = vld [vmem:[%s666 + $0x10] sm:%s659]
                  %677 = vst [vmem:[%s667 + $0x10] sm:%s659] %v676
                  %v678 = vld [vmem:[%s666 + $0x14] sm:%s659]
                  %679 = vst [vmem:[%s667 + $0x14] sm:%s659] %v678
                  %v680 = vld [vmem:[%s666 + $0x18] sm:%s659]
                  %681 = vst [vmem:[%s667 + $0x18] sm:%s659] %v680
                  %v682 = vld [vmem:[%s666 + $0x1c] sm:%s659]
                  %683 = vst [vmem:[%s667 + $0x1c] sm:%s659] %v682
                  %v684 = vld [vmem:[%s666 + $0x20] sm:%s659]
                  %685 = vst [vmem:[%s667 + $0x20] sm:%s659] %v684
                  %v686 = vld [vmem:[%s666 + $0x24] sm:%s659]
                  %687 = vst [vmem:[%s667 + $0x24] sm:%s659] %v686
                  %v688 = vld [vmem:[%s666 + $0x28] sm:%s659]
                  %689 = vst [vmem:[%s667 + $0x28] sm:%s659] %v688
                  %v690 = vld [vmem:[%s666 + $0x2c] sm:%s659]
                  %691 = vst [vmem:[%s667 + $0x2c] sm:%s659] %v690
                  %v692 = vld [vmem:[%s666 + $0x30] sm:%s659]
                  %693 = vst [vmem:[%s667 + $0x30] sm:%s659] %v692
                  %v694 = vld [vmem:[%s666 + $0x34] sm:%s659]
                  %695 = vst [vmem:[%s667 + $0x34] sm:%s659] %v694
                  %v696 = vld [vmem:[%s666 + $0x38] sm:%s659]
                  %697 = vst [vmem:[%s667 + $0x38] sm:%s659] %v696
                  %v698 = vld [vmem:[%s666 + $0x3c] sm:%s659]
                  %699 = vst [vmem:[%s667 + $0x3c] sm:%s659] %v698
                  %v700 = vld [vmem:[%s666 + $0x140] sm:%s659]
                  %701 = vst [vmem:[%s667 + $0x40] sm:%s659] %v700
                  %v702 = vld [vmem:[%s666 + $0x144] sm:%s659]
                  %703 = vst [vmem:[%s667 + $0x44] sm:%s659] %v702
                  %v704 = vld [vmem:[%s666 + $0x148] sm:%s659]
                  %705 = vst [vmem:[%s667 + $0x48] sm:%s659] %v704
                  %v706 = vld [vmem:[%s666 + $0x14c] sm:%s659]
                  %707 = vst [vmem:[%s667 + $0x4c] sm:%s659] %v706
                  %v708 = vld [vmem:[%s666 + $0x150] sm:%s659]
                  %709 = vst [vmem:[%s667 + $0x50] sm:%s659] %v708
                  %v710 = vld [vmem:[%s666 + $0x154] sm:%s659]
                  %711 = vst [vmem:[%s667 + $0x54] sm:%s659] %v710
                  %v712 = vld [vmem:[%s666 + $0x158] sm:%s659]
                  %713 = vst [vmem:[%s667 + $0x58] sm:%s659] %v712
                  %v714 = vld [vmem:[%s666 + $0x15c] sm:%s659]
                  %715 = vst [vmem:[%s667 + $0x5c] sm:%s659] %v714
                  %v716 = vld [vmem:[%s666 + $0x160] sm:%s659]
                  %717 = vst [vmem:[%s667 + $0x60] sm:%s659] %v716
                  %v718 = vld [vmem:[%s666 + $0x164] sm:%s659]
                  %719 = vst [vmem:[%s667 + $0x64] sm:%s659] %v718
                  %v720 = vld [vmem:[%s666 + $0x168] sm:%s659]
                  %721 = vst [vmem:[%s667 + $0x68] sm:%s659] %v720
                  %v722 = vld [vmem:[%s666 + $0x16c] sm:%s659]
                  %723 = vst [vmem:[%s667 + $0x6c] sm:%s659] %v722
                  %v724 = vld [vmem:[%s666 + $0x170] sm:%s659]
                  %725 = vst [vmem:[%s667 + $0x70] sm:%s659] %v724
                  %v726 = vld [vmem:[%s666 + $0x174] sm:%s659]
                  %727 = vst [vmem:[%s667 + $0x74] sm:%s659] %v726
                  %v728 = vld [vmem:[%s666 + $0x178] sm:%s659]
                  %729 = vst [vmem:[%s667 + $0x78] sm:%s659] %v728
                  %v730 = vld [vmem:[%s666 + $0x17c] sm:%s659]
                  %731 = vst [vmem:[%s667 + $0x7c] sm:%s659] %v730
                  %v732 = vld [vmem:[%s666 + $0x280] sm:%s659]
                  %733 = vst [vmem:[%s667 + $0x80] sm:%s659] %v732
                  %v734 = vld [vmem:[%s666 + $0x284] sm:%s659]
                  %735 = vst [vmem:[%s667 + $0x84] sm:%s659] %v734
                  %v736 = vld [vmem:[%s666 + $0x288] sm:%s659]
                  %737 = vst [vmem:[%s667 + $0x88] sm:%s659] %v736
                  %v738 = vld [vmem:[%s666 + $0x28c] sm:%s659]
                  %739 = vst [vmem:[%s667 + $0x8c] sm:%s659] %v738
                  %v740 = vld [vmem:[%s666 + $0x290] sm:%s659]
                  %741 = vst [vmem:[%s667 + $0x90] sm:%s659] %v740
                  %v742 = vld [vmem:[%s666 + $0x294] sm:%s659]
                  %743 = vst [vmem:[%s667 + $0x94] sm:%s659] %v742
                  %v744 = vld [vmem:[%s666 + $0x298] sm:%s659]
                  %745 = vst [vmem:[%s667 + $0x98] sm:%s659] %v744
                  %v746 = vld [vmem:[%s666 + $0x29c] sm:%s659]
                  %747 = vst [vmem:[%s667 + $0x9c] sm:%s659] %v746
                  %v748 = vld [vmem:[%s666 + $0x2a0] sm:%s659]
                  %749 = vst [vmem:[%s667 + $0xa0] sm:%s659] %v748
                  %v750 = vld [vmem:[%s666 + $0x2a4] sm:%s659]
                  %751 = vst [vmem:[%s667 + $0xa4] sm:%s659] %v750
                  %v752 = vld [vmem:[%s666 + $0x2a8] sm:%s659]
                  %753 = vst [vmem:[%s667 + $0xa8] sm:%s659] %v752
                  %v754 = vld [vmem:[%s666 + $0x2ac] sm:%s659]
                  %755 = vst [vmem:[%s667 + $0xac] sm:%s659] %v754
                  %v756 = vld [vmem:[%s666 + $0x2b0] sm:%s659]
                  %757 = vst [vmem:[%s667 + $0xb0] sm:%s659] %v756
                  %v758 = vld [vmem:[%s666 + $0x2b4] sm:%s659]
                  %759 = vst [vmem:[%s667 + $0xb4] sm:%s659] %v758
                  %v760 = vld [vmem:[%s666 + $0x2b8] sm:%s659]
                  %761 = vst [vmem:[%s667 + $0xb8] sm:%s659] %v760
                  %v762 = vld [vmem:[%s666 + $0x2bc] sm:%s659]
                  %763 = vst [vmem:[%s667 + $0xbc] sm:%s659] %v762
                  %v764 = vld [vmem:[%s666 + $0x3c0] sm:%s659]
                  %765 = vst [vmem:[%s667 + $0xc0] sm:%s659] %v764
                  %v766 = vld [vmem:[%s666 + $0x3c4] sm:%s659]
                  %767 = vst [vmem:[%s667 + $0xc4] sm:%s659] %v766
                  %v768 = vld [vmem:[%s666 + $0x3c8] sm:%s659]
                  %769 = vst [vmem:[%s667 + $0xc8] sm:%s659] %v768
                  %v770 = vld [vmem:[%s666 + $0x3cc] sm:%s659]
                  %771 = vst [vmem:[%s667 + $0xcc] sm:%s659] %v770
                  %v772 = vld [vmem:[%s666 + $0x3d0] sm:%s659]
                  %773 = vst [vmem:[%s667 + $0xd0] sm:%s659] %v772
                  %v774 = vld [vmem:[%s666 + $0x3d4] sm:%s659]
                  %775 = vst [vmem:[%s667 + $0xd4] sm:%s659] %v774
                  %v776 = vld [vmem:[%s666 + $0x3d8] sm:%s659]
                  %777 = vst [vmem:[%s667 + $0xd8] sm:%s659] %v776
                  %v778 = vld [vmem:[%s666 + $0x3dc] sm:%s659]
                  %779 = vst [vmem:[%s667 + $0xdc] sm:%s659] %v778
                  %v780 = vld [vmem:[%s666 + $0x3e0] sm:%s659]
                  %781 = vst [vmem:[%s667 + $0xe0] sm:%s659] %v780
                  %v782 = vld [vmem:[%s666 + $0x3e4] sm:%s659]
                  %783 = vst [vmem:[%s667 + $0xe4] sm:%s659] %v782
                  %v784 = vld [vmem:[%s666 + $0x3e8] sm:%s659]
                  %785 = vst [vmem:[%s667 + $0xe8] sm:%s659] %v784
                  %v786 = vld [vmem:[%s666 + $0x3ec] sm:%s659]
                  %787 = vst [vmem:[%s667 + $0xec] sm:%s659] %v786
                  %v788 = vld [vmem:[%s666 + $0x3f0] sm:%s659]
                  %789 = vst [vmem:[%s667 + $0xf0] sm:%s659] %v788
                  %v790 = vld [vmem:[%s666 + $0x3f4] sm:%s659]
                  %791 = vst [vmem:[%s667 + $0xf4] sm:%s659] %v790
                  %v792 = vld [vmem:[%s666 + $0x3f8] sm:%s659]
                  %793 = vst [vmem:[%s667 + $0xf8] sm:%s659] %v792
                  %v794 = vld [vmem:[%s666 + $0x3fc] sm:%s659]
                  %795 = vst [vmem:[%s667 + $0xfc] sm:%s659] %v794
                  %v796 = vld [vmem:[%s666 + $0x500] sm:%s659]
                  %797 = vst [vmem:[%s667 + $0x100] sm:%s659] %v796
                  %v798 = vld [vmem:[%s666 + $0x504] sm:%s659]
                  %799 = vst [vmem:[%s667 + $0x104] sm:%s659] %v798
                  %v800 = vld [vmem:[%s666 + $0x508] sm:%s659]
                  %801 = vst [vmem:[%s667 + $0x108] sm:%s659] %v800
                  %v802 = vld [vmem:[%s666 + $0x50c] sm:%s659]
                  %803 = vst [vmem:[%s667 + $0x10c] sm:%s659] %v802
                  %v804 = vld [vmem:[%s666 + $0x510] sm:%s659]
                  %805 = vst [vmem:[%s667 + $0x110] sm:%s659] %v804
                  %v806 = vld [vmem:[%s666 + $0x514] sm:%s659]
                  %807 = vst [vmem:[%s667 + $0x114] sm:%s659] %v806
                  %v808 = vld [vmem:[%s666 + $0x518] sm:%s659]
                  %809 = vst [vmem:[%s667 + $0x118] sm:%s659] %v808
                  %v810 = vld [vmem:[%s666 + $0x51c] sm:%s659]
                  %811 = vst [vmem:[%s667 + $0x11c] sm:%s659] %v810
                  %v812 = vld [vmem:[%s666 + $0x520] sm:%s659]
                  %813 = vst [vmem:[%s667 + $0x120] sm:%s659] %v812
                  %v814 = vld [vmem:[%s666 + $0x524] sm:%s659]
                  %815 = vst [vmem:[%s667 + $0x124] sm:%s659] %v814
                  %v816 = vld [vmem:[%s666 + $0x528] sm:%s659]
                  %817 = vst [vmem:[%s667 + $0x128] sm:%s659] %v816
                  %v818 = vld [vmem:[%s666 + $0x52c] sm:%s659]
                  %819 = vst [vmem:[%s667 + $0x12c] sm:%s659] %v818
                  %v820 = vld [vmem:[%s666 + $0x530] sm:%s659]
                  %821 = vst [vmem:[%s667 + $0x130] sm:%s659] %v820
                  %v822 = vld [vmem:[%s666 + $0x534] sm:%s659]
                  %823 = vst [vmem:[%s667 + $0x134] sm:%s659] %v822
                  %v824 = vld [vmem:[%s666 + $0x538] sm:%s659]
                  %825 = vst [vmem:[%s667 + $0x138] sm:%s659] %v824
                  %v826 = vld [vmem:[%s666 + $0x53c] sm:%s659]
                  %827 = vst [vmem:[%s667 + $0x13c] sm:%s659] %v826
                  %v828 = vld [vmem:[%s666 + $0x640] sm:%s659]
                  %829 = vst [vmem:[%s667 + $0x140] sm:%s659] %v828
                  %v830 = vld [vmem:[%s666 + $0x644] sm:%s659]
                  %831 = vst [vmem:[%s667 + $0x144] sm:%s659] %v830
                  %v832 = vld [vmem:[%s666 + $0x648] sm:%s659]
                  %833 = vst [vmem:[%s667 + $0x148] sm:%s659] %v832
                  %v834 = vld [vmem:[%s666 + $0x64c] sm:%s659]
                  %835 = vst [vmem:[%s667 + $0x14c] sm:%s659] %v834
                  %v836 = vld [vmem:[%s666 + $0x650] sm:%s659]
                  %837 = vst [vmem:[%s667 + $0x150] sm:%s659] %v836
                  %v838 = vld [vmem:[%s666 + $0x654] sm:%s659]
                  %839 = vst [vmem:[%s667 + $0x154] sm:%s659] %v838
                  %v840 = vld [vmem:[%s666 + $0x658] sm:%s659]
                  %841 = vst [vmem:[%s667 + $0x158] sm:%s659] %v840
                  %v842 = vld [vmem:[%s666 + $0x65c] sm:%s659]
                  %843 = vst [vmem:[%s667 + $0x15c] sm:%s659] %v842
                  %v844 = vld [vmem:[%s666 + $0x660] sm:%s659]
                  %845 = vst [vmem:[%s667 + $0x160] sm:%s659] %v844
                  %v846 = vld [vmem:[%s666 + $0x664] sm:%s659]
                  %847 = vst [vmem:[%s667 + $0x164] sm:%s659] %v846
                  %v848 = vld [vmem:[%s666 + $0x668] sm:%s659]
                  %849 = vst [vmem:[%s667 + $0x168] sm:%s659] %v848
                  %v850 = vld [vmem:[%s666 + $0x66c] sm:%s659]
                  %851 = vst [vmem:[%s667 + $0x16c] sm:%s659] %v850
                  %v852 = vld [vmem:[%s666 + $0x670] sm:%s659]
                  %853 = vst [vmem:[%s667 + $0x170] sm:%s659] %v852
                  %v854 = vld [vmem:[%s666 + $0x674] sm:%s659]
                  %855 = vst [vmem:[%s667 + $0x174] sm:%s659] %v854
                  %v856 = vld [vmem:[%s666 + $0x678] sm:%s659]
                  %857 = vst [vmem:[%s667 + $0x178] sm:%s659] %v856
                  %v858 = vld [vmem:[%s666 + $0x67c] sm:%s659]
                  %859 = vst [vmem:[%s667 + $0x17c] sm:%s659] %v858
                  %v860 = vld [vmem:[%s666 + $0x780] sm:%s659]
                  %861 = vst [vmem:[%s667 + $0x180] sm:%s659] %v860
                  %v862 = vld [vmem:[%s666 + $0x784] sm:%s659]
                  %863 = vst [vmem:[%s667 + $0x184] sm:%s659] %v862
                  %v864 = vld [vmem:[%s666 + $0x788] sm:%s659]
                  %865 = vst [vmem:[%s667 + $0x188] sm:%s659] %v864
                  %v866 = vld [vmem:[%s666 + $0x78c] sm:%s659]
                  %867 = vst [vmem:[%s667 + $0x18c] sm:%s659] %v866
                  %v868 = vld [vmem:[%s666 + $0x790] sm:%s659]
                  %869 = vst [vmem:[%s667 + $0x190] sm:%s659] %v868
                  %v870 = vld [vmem:[%s666 + $0x794] sm:%s659]
                  %871 = vst [vmem:[%s667 + $0x194] sm:%s659] %v870
                  %v872 = vld [vmem:[%s666 + $0x798] sm:%s659]
                  %873 = vst [vmem:[%s667 + $0x198] sm:%s659] %v872
                  %v874 = vld [vmem:[%s666 + $0x79c] sm:%s659]
                  %875 = vst [vmem:[%s667 + $0x19c] sm:%s659] %v874
                  %v876 = vld [vmem:[%s666 + $0x7a0] sm:%s659]
                  %877 = vst [vmem:[%s667 + $0x1a0] sm:%s659] %v876
                  %v878 = vld [vmem:[%s666 + $0x7a4] sm:%s659]
                  %879 = vst [vmem:[%s667 + $0x1a4] sm:%s659] %v878
                  %v880 = vld [vmem:[%s666 + $0x7a8] sm:%s659]
                  %881 = vst [vmem:[%s667 + $0x1a8] sm:%s659] %v880
                  %v882 = vld [vmem:[%s666 + $0x7ac] sm:%s659]
                  %883 = vst [vmem:[%s667 + $0x1ac] sm:%s659] %v882
                  %v884 = vld [vmem:[%s666 + $0x7b0] sm:%s659]
                  %885 = vst [vmem:[%s667 + $0x1b0] sm:%s659] %v884
                  %v886 = vld [vmem:[%s666 + $0x7b4] sm:%s659]
                  %887 = vst [vmem:[%s667 + $0x1b4] sm:%s659] %v886
                  %v888 = vld [vmem:[%s666 + $0x7b8] sm:%s659]
                  %889 = vst [vmem:[%s667 + $0x1b8] sm:%s659] %v888
                  %v890 = vld [vmem:[%s666 + $0x7bc] sm:%s659]
                  %891 = vst [vmem:[%s667 + $0x1bc] sm:%s659] %v890
                  %v892 = vld [vmem:[%s666 + $0x8c0] sm:%s659]
                  %893 = vst [vmem:[%s667 + $0x1c0] sm:%s659] %v892
                  %v894 = vld [vmem:[%s666 + $0x8c4] sm:%s659]
                  %895 = vst [vmem:[%s667 + $0x1c4] sm:%s659] %v894
                  %v896 = vld [vmem:[%s666 + $0x8c8] sm:%s659]
                  %897 = vst [vmem:[%s667 + $0x1c8] sm:%s659] %v896
                  %v898 = vld [vmem:[%s666 + $0x8cc] sm:%s659]
                  %899 = vst [vmem:[%s667 + $0x1cc] sm:%s659] %v898
                  %v900 = vld [vmem:[%s666 + $0x8d0] sm:%s659]
                  %901 = vst [vmem:[%s667 + $0x1d0] sm:%s659] %v900
                  %v902 = vld [vmem:[%s666 + $0x8d4] sm:%s659]
                  %903 = vst [vmem:[%s667 + $0x1d4] sm:%s659] %v902
                  %v904 = vld [vmem:[%s666 + $0x8d8] sm:%s659]
                  %905 = vst [vmem:[%s667 + $0x1d8] sm:%s659] %v904
                  %v906 = vld [vmem:[%s666 + $0x8dc] sm:%s659]
                  %907 = vst [vmem:[%s667 + $0x1dc] sm:%s659] %v906
                  %v908 = vld [vmem:[%s666 + $0x8e0] sm:%s659]
                  %909 = vst [vmem:[%s667 + $0x1e0] sm:%s659] %v908
                  %v910 = vld [vmem:[%s666 + $0x8e4] sm:%s659]
                  %911 = vst [vmem:[%s667 + $0x1e4] sm:%s659] %v910
                  %v912 = vld [vmem:[%s666 + $0x8e8] sm:%s659]
                  %913 = vst [vmem:[%s667 + $0x1e8] sm:%s659] %v912
                  %v914 = vld [vmem:[%s666 + $0x8ec] sm:%s659]
                  %915 = vst [vmem:[%s667 + $0x1ec] sm:%s659] %v914
                  %v916 = vld [vmem:[%s666 + $0x8f0] sm:%s659]
                  %917 = vst [vmem:[%s667 + $0x1f0] sm:%s659] %v916
                  %v918 = vld [vmem:[%s666 + $0x8f4] sm:%s659]
                  %919 = vst [vmem:[%s667 + $0x1f4] sm:%s659] %v918
                  %v920 = vld [vmem:[%s666 + $0x8f8] sm:%s659]
                  %921 = vst [vmem:[%s667 + $0x1f8] sm:%s659] %v920
                  %v922 = vld [vmem:[%s666 + $0x8fc] sm:%s659]
                  %923 = vst [vmem:[%s667 + $0x1fc] sm:%s659] %v922
                  %v924 = vld [vmem:[%s666 + $0xa00] sm:%s659]
                  %925 = vst [vmem:[%s667 + $0x200] sm:%s659] %v924
                  %v926 = vld [vmem:[%s666 + $0xa04] sm:%s659]
                  %927 = vst [vmem:[%s667 + $0x204] sm:%s659] %v926
                  %v928 = vld [vmem:[%s666 + $0xa08] sm:%s659]
                  %929 = vst [vmem:[%s667 + $0x208] sm:%s659] %v928
                  %v930 = vld [vmem:[%s666 + $0xa0c] sm:%s659]
                  %931 = vst [vmem:[%s667 + $0x20c] sm:%s659] %v930
                  %v932 = vld [vmem:[%s666 + $0xa10] sm:%s659]
                  %933 = vst [vmem:[%s667 + $0x210] sm:%s659] %v932
                  %v934 = vld [vmem:[%s666 + $0xa14] sm:%s659]
                  %935 = vst [vmem:[%s667 + $0x214] sm:%s659] %v934
                  %v936 = vld [vmem:[%s666 + $0xa18] sm:%s659]
                  %937 = vst [vmem:[%s667 + $0x218] sm:%s659] %v936
                  %v938 = vld [vmem:[%s666 + $0xa1c] sm:%s659]
                  %939 = vst [vmem:[%s667 + $0x21c] sm:%s659] %v938
                  %v940 = vld [vmem:[%s666 + $0xa20] sm:%s659]
                  %941 = vst [vmem:[%s667 + $0x220] sm:%s659] %v940
                  %v942 = vld [vmem:[%s666 + $0xa24] sm:%s659]
                  %943 = vst [vmem:[%s667 + $0x224] sm:%s659] %v942
                  %v944 = vld [vmem:[%s666 + $0xa28] sm:%s659]
                  %945 = vst [vmem:[%s667 + $0x228] sm:%s659] %v944
                  %v946 = vld [vmem:[%s666 + $0xa2c] sm:%s659]
                  %947 = vst [vmem:[%s667 + $0x22c] sm:%s659] %v946
                  %v948 = vld [vmem:[%s666 + $0xa30] sm:%s659]
                  %949 = vst [vmem:[%s667 + $0x230] sm:%s659] %v948
                  %v950 = vld [vmem:[%s666 + $0xa34] sm:%s659]
                  %951 = vst [vmem:[%s667 + $0x234] sm:%s659] %v950
                  %v952 = vld [vmem:[%s666 + $0xa38] sm:%s659]
                  %953 = vst [vmem:[%s667 + $0x238] sm:%s659] %v952
                  %v954 = vld [vmem:[%s666 + $0xa3c] sm:%s659]
                  %955 = vst [vmem:[%s667 + $0x23c] sm:%s659] %v954
                $region105: #{segmentation_decoder_forward.3} parent=92 // loop_footer
                  %s665 = sadd.s32 1, %s661
                $region106: #{segmentation_decoder_forward.3} parent=92 // loop_footer_branch
                  %660 = sbr.rel target = $region102
                $region107: #{segmentation_decoder_forward.3} parent=92 // loop_exit
                  _
              $region93: #{segmentation_decoder_forward.3} parent=77 // pred_fallthru
                _
            $region78: #{segmentation_decoder_forward.3} parent=73 // pred_fallthru
              _
            // Predicated region
            $region79: #{segmentation_decoder_forward.3} parent=73 // pred_check
              _
            $region80: #{segmentation_decoder_forward.3} parent=73 // pred_check_branch
              %349 = sbr.rel (0) target = $region82
            $region81: #{segmentation_decoder_forward.3} parent=73 // pred_region
              %s351 = ssub.s32 16, 1
              loop: start=0, step=1, limit=1
              $region83: #{segmentation_decoder_forward.3} parent=81 // loop_pre_header
                _
              $region84: #{segmentation_decoder_forward.3} parent=81 // loop_header
                %s353 = sphi 0, %s357
                %p354 = scmp.ge.s32.totalorder %s353, 1
                %s358 = sphi %s343, %s343
                %s359 = sphi %s340, %s340
              $region85: #{segmentation_decoder_forward.3} parent=81 // loop_header_branch
                %356 = sbr.rel (%p354) target = $region89
              $region86: #{segmentation_decoder_forward.3} parent=81 // loop_body
                %v360 = vld [vmem:[%s358] sm:%s351]
                %361 = vst [vmem:[%s359] sm:%s351] %v360
                %v362 = vld [vmem:[%s358 + $0x4] sm:%s351]
                %363 = vst [vmem:[%s359 + $0x4] sm:%s351] %v362
                %v364 = vld [vmem:[%s358 + $0x8] sm:%s351]
                %365 = vst [vmem:[%s359 + $0x8] sm:%s351] %v364
                %v366 = vld [vmem:[%s358 + $0xc] sm:%s351]
                %367 = vst [vmem:[%s359 + $0xc] sm:%s351] %v366
                %v368 = vld [vmem:[%s358 + $0x10] sm:%s351]
                %369 = vst [vmem:[%s359 + $0x10] sm:%s351] %v368
                %v370 = vld [vmem:[%s358 + $0x14] sm:%s351]
                %371 = vst [vmem:[%s359 + $0x14] sm:%s351] %v370
                %v372 = vld [vmem:[%s358 + $0x18] sm:%s351]
                %373 = vst [vmem:[%s359 + $0x18] sm:%s351] %v372
                %v374 = vld [vmem:[%s358 + $0x1c] sm:%s351]
                %375 = vst [vmem:[%s359 + $0x1c] sm:%s351] %v374
                %v376 = vld [vmem:[%s358 + $0x20] sm:%s351]
                %377 = vst [vmem:[%s359 + $0x20] sm:%s351] %v376
                %v378 = vld [vmem:[%s358 + $0x24] sm:%s351]
                %379 = vst [vmem:[%s359 + $0x24] sm:%s351] %v378
                %v380 = vld [vmem:[%s358 + $0x28] sm:%s351]
                %381 = vst [vmem:[%s359 + $0x28] sm:%s351] %v380
                %v382 = vld [vmem:[%s358 + $0x2c] sm:%s351]
                %383 = vst [vmem:[%s359 + $0x2c] sm:%s351] %v382
                %v384 = vld [vmem:[%s358 + $0x30] sm:%s351]
                %385 = vst [vmem:[%s359 + $0x30] sm:%s351] %v384
                %v386 = vld [vmem:[%s358 + $0x34] sm:%s351]
                %387 = vst [vmem:[%s359 + $0x34] sm:%s351] %v386
                %v388 = vld [vmem:[%s358 + $0x38] sm:%s351]
                %389 = vst [vmem:[%s359 + $0x38] sm:%s351] %v388
                %v390 = vld [vmem:[%s358 + $0x3c] sm:%s351]
                %391 = vst [vmem:[%s359 + $0x3c] sm:%s351] %v390
                %v392 = vld [vmem:[%s358 + $0x140] sm:%s351]
                %393 = vst [vmem:[%s359 + $0x40] sm:%s351] %v392
                %v394 = vld [vmem:[%s358 + $0x144] sm:%s351]
                %395 = vst [vmem:[%s359 + $0x44] sm:%s351] %v394
                %v396 = vld [vmem:[%s358 + $0x148] sm:%s351]
                %397 = vst [vmem:[%s359 + $0x48] sm:%s351] %v396
                %v398 = vld [vmem:[%s358 + $0x14c] sm:%s351]
                %399 = vst [vmem:[%s359 + $0x4c] sm:%s351] %v398
                %v400 = vld [vmem:[%s358 + $0x150] sm:%s351]
                %401 = vst [vmem:[%s359 + $0x50] sm:%s351] %v400
                %v402 = vld [vmem:[%s358 + $0x154] sm:%s351]
                %403 = vst [vmem:[%s359 + $0x54] sm:%s351] %v402
                %v404 = vld [vmem:[%s358 + $0x158] sm:%s351]
                %405 = vst [vmem:[%s359 + $0x58] sm:%s351] %v404
                %v406 = vld [vmem:[%s358 + $0x15c] sm:%s351]
                %407 = vst [vmem:[%s359 + $0x5c] sm:%s351] %v406
                %v408 = vld [vmem:[%s358 + $0x160] sm:%s351]
                %409 = vst [vmem:[%s359 + $0x60] sm:%s351] %v408
                %v410 = vld [vmem:[%s358 + $0x164] sm:%s351]
                %411 = vst [vmem:[%s359 + $0x64] sm:%s351] %v410
                %v412 = vld [vmem:[%s358 + $0x168] sm:%s351]
                %413 = vst [vmem:[%s359 + $0x68] sm:%s351] %v412
                %v414 = vld [vmem:[%s358 + $0x16c] sm:%s351]
                %415 = vst [vmem:[%s359 + $0x6c] sm:%s351] %v414
                %v416 = vld [vmem:[%s358 + $0x170] sm:%s351]
                %417 = vst [vmem:[%s359 + $0x70] sm:%s351] %v416
                %v418 = vld [vmem:[%s358 + $0x174] sm:%s351]
                %419 = vst [vmem:[%s359 + $0x74] sm:%s351] %v418
                %v420 = vld [vmem:[%s358 + $0x178] sm:%s351]
                %421 = vst [vmem:[%s359 + $0x78] sm:%s351] %v420
                %v422 = vld [vmem:[%s358 + $0x17c] sm:%s351]
                %423 = vst [vmem:[%s359 + $0x7c] sm:%s351] %v422
                %v424 = vld [vmem:[%s358 + $0x280] sm:%s351]
                %425 = vst [vmem:[%s359 + $0x80] sm:%s351] %v424
                %v426 = vld [vmem:[%s358 + $0x284] sm:%s351]
                %427 = vst [vmem:[%s359 + $0x84] sm:%s351] %v426
                %v428 = vld [vmem:[%s358 + $0x288] sm:%s351]
                %429 = vst [vmem:[%s359 + $0x88] sm:%s351] %v428
                %v430 = vld [vmem:[%s358 + $0x28c] sm:%s351]
                %431 = vst [vmem:[%s359 + $0x8c] sm:%s351] %v430
                %v432 = vld [vmem:[%s358 + $0x290] sm:%s351]
                %433 = vst [vmem:[%s359 + $0x90] sm:%s351] %v432
                %v434 = vld [vmem:[%s358 + $0x294] sm:%s351]
                %435 = vst [vmem:[%s359 + $0x94] sm:%s351] %v434
                %v436 = vld [vmem:[%s358 + $0x298] sm:%s351]
                %437 = vst [vmem:[%s359 + $0x98] sm:%s351] %v436
                %v438 = vld [vmem:[%s358 + $0x29c] sm:%s351]
                %439 = vst [vmem:[%s359 + $0x9c] sm:%s351] %v438
                %v440 = vld [vmem:[%s358 + $0x2a0] sm:%s351]
                %441 = vst [vmem:[%s359 + $0xa0] sm:%s351] %v440
                %v442 = vld [vmem:[%s358 + $0x2a4] sm:%s351]
                %443 = vst [vmem:[%s359 + $0xa4] sm:%s351] %v442
                %v444 = vld [vmem:[%s358 + $0x2a8] sm:%s351]
                %445 = vst [vmem:[%s359 + $0xa8] sm:%s351] %v444
                %v446 = vld [vmem:[%s358 + $0x2ac] sm:%s351]
                %447 = vst [vmem:[%s359 + $0xac] sm:%s351] %v446
                %v448 = vld [vmem:[%s358 + $0x2b0] sm:%s351]
                %449 = vst [vmem:[%s359 + $0xb0] sm:%s351] %v448
                %v450 = vld [vmem:[%s358 + $0x2b4] sm:%s351]
                %451 = vst [vmem:[%s359 + $0xb4] sm:%s351] %v450
                %v452 = vld [vmem:[%s358 + $0x2b8] sm:%s351]
                %453 = vst [vmem:[%s359 + $0xb8] sm:%s351] %v452
                %v454 = vld [vmem:[%s358 + $0x2bc] sm:%s351]
                %455 = vst [vmem:[%s359 + $0xbc] sm:%s351] %v454
                %v456 = vld [vmem:[%s358 + $0x3c0] sm:%s351]
                %457 = vst [vmem:[%s359 + $0xc0] sm:%s351] %v456
                %v458 = vld [vmem:[%s358 + $0x3c4] sm:%s351]
                %459 = vst [vmem:[%s359 + $0xc4] sm:%s351] %v458
                %v460 = vld [vmem:[%s358 + $0x3c8] sm:%s351]
                %461 = vst [vmem:[%s359 + $0xc8] sm:%s351] %v460
                %v462 = vld [vmem:[%s358 + $0x3cc] sm:%s351]
                %463 = vst [vmem:[%s359 + $0xcc] sm:%s351] %v462
                %v464 = vld [vmem:[%s358 + $0x3d0] sm:%s351]
                %465 = vst [vmem:[%s359 + $0xd0] sm:%s351] %v464
                %v466 = vld [vmem:[%s358 + $0x3d4] sm:%s351]
                %467 = vst [vmem:[%s359 + $0xd4] sm:%s351] %v466
                %v468 = vld [vmem:[%s358 + $0x3d8] sm:%s351]
                %469 = vst [vmem:[%s359 + $0xd8] sm:%s351] %v468
                %v470 = vld [vmem:[%s358 + $0x3dc] sm:%s351]
                %471 = vst [vmem:[%s359 + $0xdc] sm:%s351] %v470
                %v472 = vld [vmem:[%s358 + $0x3e0] sm:%s351]
                %473 = vst [vmem:[%s359 + $0xe0] sm:%s351] %v472
                %v474 = vld [vmem:[%s358 + $0x3e4] sm:%s351]
                %475 = vst [vmem:[%s359 + $0xe4] sm:%s351] %v474
                %v476 = vld [vmem:[%s358 + $0x3e8] sm:%s351]
                %477 = vst [vmem:[%s359 + $0xe8] sm:%s351] %v476
                %v478 = vld [vmem:[%s358 + $0x3ec] sm:%s351]
                %479 = vst [vmem:[%s359 + $0xec] sm:%s351] %v478
                %v480 = vld [vmem:[%s358 + $0x3f0] sm:%s351]
                %481 = vst [vmem:[%s359 + $0xf0] sm:%s351] %v480
                %v482 = vld [vmem:[%s358 + $0x3f4] sm:%s351]
                %483 = vst [vmem:[%s359 + $0xf4] sm:%s351] %v482
                %v484 = vld [vmem:[%s358 + $0x3f8] sm:%s351]
                %485 = vst [vmem:[%s359 + $0xf8] sm:%s351] %v484
                %v486 = vld [vmem:[%s358 + $0x3fc] sm:%s351]
                %487 = vst [vmem:[%s359 + $0xfc] sm:%s351] %v486
                %v488 = vld [vmem:[%s358 + $0x500] sm:%s351]
                %489 = vst [vmem:[%s359 + $0x100] sm:%s351] %v488
                %v490 = vld [vmem:[%s358 + $0x504] sm:%s351]
                %491 = vst [vmem:[%s359 + $0x104] sm:%s351] %v490
                %v492 = vld [vmem:[%s358 + $0x508] sm:%s351]
                %493 = vst [vmem:[%s359 + $0x108] sm:%s351] %v492
                %v494 = vld [vmem:[%s358 + $0x50c] sm:%s351]
                %495 = vst [vmem:[%s359 + $0x10c] sm:%s351] %v494
                %v496 = vld [vmem:[%s358 + $0x510] sm:%s351]
                %497 = vst [vmem:[%s359 + $0x110] sm:%s351] %v496
                %v498 = vld [vmem:[%s358 + $0x514] sm:%s351]
                %499 = vst [vmem:[%s359 + $0x114] sm:%s351] %v498
                %v500 = vld [vmem:[%s358 + $0x518] sm:%s351]
                %501 = vst [vmem:[%s359 + $0x118] sm:%s351] %v500
                %v502 = vld [vmem:[%s358 + $0x51c] sm:%s351]
                %503 = vst [vmem:[%s359 + $0x11c] sm:%s351] %v502
                %v504 = vld [vmem:[%s358 + $0x520] sm:%s351]
                %505 = vst [vmem:[%s359 + $0x120] sm:%s351] %v504
                %v506 = vld [vmem:[%s358 + $0x524] sm:%s351]
                %507 = vst [vmem:[%s359 + $0x124] sm:%s351] %v506
                %v508 = vld [vmem:[%s358 + $0x528] sm:%s351]
                %509 = vst [vmem:[%s359 + $0x128] sm:%s351] %v508
                %v510 = vld [vmem:[%s358 + $0x52c] sm:%s351]
                %511 = vst [vmem:[%s359 + $0x12c] sm:%s351] %v510
                %v512 = vld [vmem:[%s358 + $0x530] sm:%s351]
                %513 = vst [vmem:[%s359 + $0x130] sm:%s351] %v512
                %v514 = vld [vmem:[%s358 + $0x534] sm:%s351]
                %515 = vst [vmem:[%s359 + $0x134] sm:%s351] %v514
                %v516 = vld [vmem:[%s358 + $0x538] sm:%s351]
                %517 = vst [vmem:[%s359 + $0x138] sm:%s351] %v516
                %v518 = vld [vmem:[%s358 + $0x53c] sm:%s351]
                %519 = vst [vmem:[%s359 + $0x13c] sm:%s351] %v518
                %v520 = vld [vmem:[%s358 + $0x640] sm:%s351]
                %521 = vst [vmem:[%s359 + $0x140] sm:%s351] %v520
                %v522 = vld [vmem:[%s358 + $0x644] sm:%s351]
                %523 = vst [vmem:[%s359 + $0x144] sm:%s351] %v522
                %v524 = vld [vmem:[%s358 + $0x648] sm:%s351]
                %525 = vst [vmem:[%s359 + $0x148] sm:%s351] %v524
                %v526 = vld [vmem:[%s358 + $0x64c] sm:%s351]
                %527 = vst [vmem:[%s359 + $0x14c] sm:%s351] %v526
                %v528 = vld [vmem:[%s358 + $0x650] sm:%s351]
                %529 = vst [vmem:[%s359 + $0x150] sm:%s351] %v528
                %v530 = vld [vmem:[%s358 + $0x654] sm:%s351]
                %531 = vst [vmem:[%s359 + $0x154] sm:%s351] %v530
                %v532 = vld [vmem:[%s358 + $0x658] sm:%s351]
                %533 = vst [vmem:[%s359 + $0x158] sm:%s351] %v532
                %v534 = vld [vmem:[%s358 + $0x65c] sm:%s351]
                %535 = vst [vmem:[%s359 + $0x15c] sm:%s351] %v534
                %v536 = vld [vmem:[%s358 + $0x660] sm:%s351]
                %537 = vst [vmem:[%s359 + $0x160] sm:%s351] %v536
                %v538 = vld [vmem:[%s358 + $0x664] sm:%s351]
                %539 = vst [vmem:[%s359 + $0x164] sm:%s351] %v538
                %v540 = vld [vmem:[%s358 + $0x668] sm:%s351]
                %541 = vst [vmem:[%s359 + $0x168] sm:%s351] %v540
                %v542 = vld [vmem:[%s358 + $0x66c] sm:%s351]
                %543 = vst [vmem:[%s359 + $0x16c] sm:%s351] %v542
                %v544 = vld [vmem:[%s358 + $0x670] sm:%s351]
                %545 = vst [vmem:[%s359 + $0x170] sm:%s351] %v544
                %v546 = vld [vmem:[%s358 + $0x674] sm:%s351]
                %547 = vst [vmem:[%s359 + $0x174] sm:%s351] %v546
                %v548 = vld [vmem:[%s358 + $0x678] sm:%s351]
                %549 = vst [vmem:[%s359 + $0x178] sm:%s351] %v548
                %v550 = vld [vmem:[%s358 + $0x67c] sm:%s351]
                %551 = vst [vmem:[%s359 + $0x17c] sm:%s351] %v550
                %v552 = vld [vmem:[%s358 + $0x780] sm:%s351]
                %553 = vst [vmem:[%s359 + $0x180] sm:%s351] %v552
                %v554 = vld [vmem:[%s358 + $0x784] sm:%s351]
                %555 = vst [vmem:[%s359 + $0x184] sm:%s351] %v554
                %v556 = vld [vmem:[%s358 + $0x788] sm:%s351]
                %557 = vst [vmem:[%s359 + $0x188] sm:%s351] %v556
                %v558 = vld [vmem:[%s358 + $0x78c] sm:%s351]
                %559 = vst [vmem:[%s359 + $0x18c] sm:%s351] %v558
                %v560 = vld [vmem:[%s358 + $0x790] sm:%s351]
                %561 = vst [vmem:[%s359 + $0x190] sm:%s351] %v560
                %v562 = vld [vmem:[%s358 + $0x794] sm:%s351]
                %563 = vst [vmem:[%s359 + $0x194] sm:%s351] %v562
                %v564 = vld [vmem:[%s358 + $0x798] sm:%s351]
                %565 = vst [vmem:[%s359 + $0x198] sm:%s351] %v564
                %v566 = vld [vmem:[%s358 + $0x79c] sm:%s351]
                %567 = vst [vmem:[%s359 + $0x19c] sm:%s351] %v566
                %v568 = vld [vmem:[%s358 + $0x7a0] sm:%s351]
                %569 = vst [vmem:[%s359 + $0x1a0] sm:%s351] %v568
                %v570 = vld [vmem:[%s358 + $0x7a4] sm:%s351]
                %571 = vst [vmem:[%s359 + $0x1a4] sm:%s351] %v570
                %v572 = vld [vmem:[%s358 + $0x7a8] sm:%s351]
                %573 = vst [vmem:[%s359 + $0x1a8] sm:%s351] %v572
                %v574 = vld [vmem:[%s358 + $0x7ac] sm:%s351]
                %575 = vst [vmem:[%s359 + $0x1ac] sm:%s351] %v574
                %v576 = vld [vmem:[%s358 + $0x7b0] sm:%s351]
                %577 = vst [vmem:[%s359 + $0x1b0] sm:%s351] %v576
                %v578 = vld [vmem:[%s358 + $0x7b4] sm:%s351]
                %579 = vst [vmem:[%s359 + $0x1b4] sm:%s351] %v578
                %v580 = vld [vmem:[%s358 + $0x7b8] sm:%s351]
                %581 = vst [vmem:[%s359 + $0x1b8] sm:%s351] %v580
                %v582 = vld [vmem:[%s358 + $0x7bc] sm:%s351]
                %583 = vst [vmem:[%s359 + $0x1bc] sm:%s351] %v582
                %v584 = vld [vmem:[%s358 + $0x8c0] sm:%s351]
                %585 = vst [vmem:[%s359 + $0x1c0] sm:%s351] %v584
                %v586 = vld [vmem:[%s358 + $0x8c4] sm:%s351]
                %587 = vst [vmem:[%s359 + $0x1c4] sm:%s351] %v586
                %v588 = vld [vmem:[%s358 + $0x8c8] sm:%s351]
                %589 = vst [vmem:[%s359 + $0x1c8] sm:%s351] %v588
                %v590 = vld [vmem:[%s358 + $0x8cc] sm:%s351]
                %591 = vst [vmem:[%s359 + $0x1cc] sm:%s351] %v590
                %v592 = vld [vmem:[%s358 + $0x8d0] sm:%s351]
                %593 = vst [vmem:[%s359 + $0x1d0] sm:%s351] %v592
                %v594 = vld [vmem:[%s358 + $0x8d4] sm:%s351]
                %595 = vst [vmem:[%s359 + $0x1d4] sm:%s351] %v594
                %v596 = vld [vmem:[%s358 + $0x8d8] sm:%s351]
                %597 = vst [vmem:[%s359 + $0x1d8] sm:%s351] %v596
                %v598 = vld [vmem:[%s358 + $0x8dc] sm:%s351]
                %599 = vst [vmem:[%s359 + $0x1dc] sm:%s351] %v598
                %v600 = vld [vmem:[%s358 + $0x8e0] sm:%s351]
                %601 = vst [vmem:[%s359 + $0x1e0] sm:%s351] %v600
                %v602 = vld [vmem:[%s358 + $0x8e4] sm:%s351]
                %603 = vst [vmem:[%s359 + $0x1e4] sm:%s351] %v602
                %v604 = vld [vmem:[%s358 + $0x8e8] sm:%s351]
                %605 = vst [vmem:[%s359 + $0x1e8] sm:%s351] %v604
                %v606 = vld [vmem:[%s358 + $0x8ec] sm:%s351]
                %607 = vst [vmem:[%s359 + $0x1ec] sm:%s351] %v606
                %v608 = vld [vmem:[%s358 + $0x8f0] sm:%s351]
                %609 = vst [vmem:[%s359 + $0x1f0] sm:%s351] %v608
                %v610 = vld [vmem:[%s358 + $0x8f4] sm:%s351]
                %611 = vst [vmem:[%s359 + $0x1f4] sm:%s351] %v610
                %v612 = vld [vmem:[%s358 + $0x8f8] sm:%s351]
                %613 = vst [vmem:[%s359 + $0x1f8] sm:%s351] %v612
                %v614 = vld [vmem:[%s358 + $0x8fc] sm:%s351]
                %615 = vst [vmem:[%s359 + $0x1fc] sm:%s351] %v614
                %v616 = vld [vmem:[%s358 + $0xa00] sm:%s351]
                %617 = vst [vmem:[%s359 + $0x200] sm:%s351] %v616
                %v618 = vld [vmem:[%s358 + $0xa04] sm:%s351]
                %619 = vst [vmem:[%s359 + $0x204] sm:%s351] %v618
                %v620 = vld [vmem:[%s358 + $0xa08] sm:%s351]
                %621 = vst [vmem:[%s359 + $0x208] sm:%s351] %v620
                %v622 = vld [vmem:[%s358 + $0xa0c] sm:%s351]
                %623 = vst [vmem:[%s359 + $0x20c] sm:%s351] %v622
                %v624 = vld [vmem:[%s358 + $0xa10] sm:%s351]
                %625 = vst [vmem:[%s359 + $0x210] sm:%s351] %v624
                %v626 = vld [vmem:[%s358 + $0xa14] sm:%s351]
                %627 = vst [vmem:[%s359 + $0x214] sm:%s351] %v626
                %v628 = vld [vmem:[%s358 + $0xa18] sm:%s351]
                %629 = vst [vmem:[%s359 + $0x218] sm:%s351] %v628
                %v630 = vld [vmem:[%s358 + $0xa1c] sm:%s351]
                %631 = vst [vmem:[%s359 + $0x21c] sm:%s351] %v630
                %v632 = vld [vmem:[%s358 + $0xa20] sm:%s351]
                %633 = vst [vmem:[%s359 + $0x220] sm:%s351] %v632
                %v634 = vld [vmem:[%s358 + $0xa24] sm:%s351]
                %635 = vst [vmem:[%s359 + $0x224] sm:%s351] %v634
                %v636 = vld [vmem:[%s358 + $0xa28] sm:%s351]
                %637 = vst [vmem:[%s359 + $0x228] sm:%s351] %v636
                %v638 = vld [vmem:[%s358 + $0xa2c] sm:%s351]
                %639 = vst [vmem:[%s359 + $0x22c] sm:%s351] %v638
                %v640 = vld [vmem:[%s358 + $0xa30] sm:%s351]
                %641 = vst [vmem:[%s359 + $0x230] sm:%s351] %v640
                %v642 = vld [vmem:[%s358 + $0xa34] sm:%s351]
                %643 = vst [vmem:[%s359 + $0x234] sm:%s351] %v642
                %v644 = vld [vmem:[%s358 + $0xa38] sm:%s351]
                %645 = vst [vmem:[%s359 + $0x238] sm:%s351] %v644
                %v646 = vld [vmem:[%s358 + $0xa3c] sm:%s351]
                %647 = vst [vmem:[%s359 + $0x23c] sm:%s351] %v646
              $region87: #{segmentation_decoder_forward.3} parent=81 // loop_footer
                %s357 = sadd.s32 1, %s353
              $region88: #{segmentation_decoder_forward.3} parent=81 // loop_footer_branch
                %352 = sbr.rel target = $region84
              $region89: #{segmentation_decoder_forward.3} parent=81 // loop_exit
                _
            $region82: #{segmentation_decoder_forward.3} parent=73 // pred_fallthru
              _
          $region74: #{segmentation_decoder_forward.3} parent=69 // pred_fallthru
            _
          %956 = vnop
        $region70: #{segmentation_decoder_forward.3} parent=27 // pred_fallthru
          _
      $region28: #{segmentation_decoder_forward.3} parent=5 // pred_fallthru
        _
      %p957 = scmp.le.s32.totalorder 1, %s11
      %p958 = scmp.lt.s32.totalorder %s11, 11
      %p959 = pnand %p957, %p958
      %p960 = pneg %p959
      // Predicated region
      $region108: #{segmentation_decoder_forward.3} parent=5 // pred_check
        _
      $region109: #{segmentation_decoder_forward.3} parent=5 // pred_check_branch
        %962 = sbr.rel (%p959) target = $region111
      $region110: #{segmentation_decoder_forward.3} parent=5 // pred_region
        %s963 = ssub.s32 %s11, 1
        %s964 = sand.u32 %s38, 1
        %s965 = sand.u32 %s38, 1
        %s966 = smul.addr %s965, 200
        %s967 = scalar_lea.vmem [#allocation3], %s966
        // Predicated region
        $region112: #{segmentation_decoder_forward.3} parent=110 // pred_check
          %p968 = pneg %p51
        $region113: #{segmentation_decoder_forward.3} parent=110 // pred_check_branch
          %970 = sbr.rel (%p968) target = $region115
        $region114: #{segmentation_decoder_forward.3} parent=110 // pred_region
          _
        $region115: #{segmentation_decoder_forward.3} parent=110 // pred_fallthru
          _
        %s971 = sand.u32 %s64, 1
        %s972 = sand.u32 %s64, 1
        %s973 = smul.addr %s972, 576
        %s974 = scalar_lea.vmem [#allocation4], %s973
        // Predicated region
        $region116: #{segmentation_decoder_forward.3} parent=110 // pred_check
          %p975 = pneg %p77
        $region117: #{segmentation_decoder_forward.3} parent=110 // pred_check_branch
          %977 = sbr.rel (%p975) target = $region119
        $region118: #{segmentation_decoder_forward.3} parent=110 // pred_region
          _
        $region119: #{segmentation_decoder_forward.3} parent=110 // pred_fallthru
          _
        %s978 = sand.u32 %s38, 1
        %s979 = sand.u32 %s38, 1
        %s980 = smul.addr %s979, 200
        %s981 = scalar_lea.vmem [#allocation3], %s980
        %p982 = pneg %p51
        %p983 = pneg %p48
        %s984 = sand.u32 %s64, 1
        %s985 = sand.u32 %s64, 1
        %s986 = smul.addr %s985, 576
        %s987 = scalar_lea.vmem [#allocation4], %s986
        %p988 = pneg %p77
        %p989 = pneg %p74
        %p990 = pneg %p98
        %p991 = pneg %p95
        %p992 = pneg %p119
        %p993 = pneg %p116
        %p994 = pneg %p140
        %p995 = pneg %p137
        %p996 = pneg %p166
        %p997 = pneg %p163
        %p998 = scmp.lt.s32.totalorder %s20, 1
        %s999 = scalar_select %p998, %s20, 1
        %s1000 = smul.addr %s999, 21
        %s1001 = smul.addr %s1000, 8
        %s1002 = scalar_lea.vmem %s5, %s1001
        %s1003 = smul.u32 16, %s21
        %p1004 = scmp.lt.s32.totalorder %s20, 1
        %s1005 = scalar_select %p1004, %s20, 1
        %s1006 = smul.addr %s1005, 21
        %s1007 = smul.addr %s1006, 8
        %s1008 = scalar_lea.vmem %s5, %s1007
        %p1010 = scmp.eq.s32.totalorder %s21, 0
        // Predicated region
        $region120: #{segmentation_decoder_forward.3} parent=110 // pred_check
          %p1011 = pneg %p1010
        $region121: #{segmentation_decoder_forward.3} parent=110 // pred_check_branch
          %1013 = sbr.rel (%p1011) target = $region123
        $region122: #{segmentation_decoder_forward.3} parent=110 // pred_region
          %1014 = vst [vmem:[#allocation2] sm:$0xff] 0.0
          %1015 = vst [vmem:[#allocation2 + $0x8] sm:$0xff] 0.0
          %1016 = vst [vmem:[#allocation2 + $0x10] sm:$0xff] 0.0
          %1017 = vst [vmem:[#allocation2 + $0x18] sm:$0xff] 0.0
          %1018 = vst [vmem:[#allocation2 + $0x20] sm:$0xff] 0.0
          %1019 = vst [vmem:[#allocation2 + $0x28] sm:$0xff] 0.0
          %1020 = vst [vmem:[#allocation2 + $0x30] sm:$0xff] 0.0
          %1021 = vst [vmem:[#allocation2 + $0x38] sm:$0xff] 0.0
          %1022 = vst [vmem:[#allocation2 + $0x40] sm:$0xff] 0.0
          %1023 = vst [vmem:[#allocation2 + $0x48] sm:$0xff] 0.0
          %1024 = vst [vmem:[#allocation2 + $0x50] sm:$0xff] 0.0
          %1025 = vst [vmem:[#allocation2 + $0x58] sm:$0xff] 0.0
          %1026 = vst [vmem:[#allocation2 + $0x60] sm:$0xff] 0.0
          %1027 = vst [vmem:[#allocation2 + $0x68] sm:$0xff] 0.0
          %1028 = vst [vmem:[#allocation2 + $0x70] sm:$0xff] 0.0
          %1029 = vst [vmem:[#allocation2 + $0x78] sm:$0xff] 0.0
          %1030 = vst [vmem:[#allocation2 + $0x80] sm:$0xff] 0.0
          %1031 = vst [vmem:[#allocation2 + $0x88] sm:$0xff] 0.0
          %1032 = vst [vmem:[#allocation2 + $0x90] sm:$0xff] 0.0
          %1033 = vst [vmem:[#allocation2 + $0x98] sm:$0xff] 0.0
          %1034 = vst [vmem:[#allocation2 + $0xa0] sm:$0x3f] 0.0
        $region123: #{segmentation_decoder_forward.3} parent=110 // pred_fallthru
          _
        %v1035 = vld [vmem:[%s967] sm:$0xff]
        %v1036 = vld [vmem:[%s967 + $0x8] sm:$0xff]
        %v1037 = vld [vmem:[%s967 + $0x10] sm:$0xff]
        %v1038 = vld [vmem:[%s967 + $0x18] sm:$0xff]
        %v1039 = vld [vmem:[%s967 + $0x20] sm:$0xff]
        %v1040 = vld [vmem:[%s967 + $0x28] sm:$0xff]
        %v1041 = vld [vmem:[%s967 + $0x30] sm:$0xff]
        %v1042 = vld [vmem:[%s967 + $0x38] sm:$0xff]
        %v1043 = vld [vmem:[%s967 + $0x40] sm:$0xff]
        %v1044 = vld [vmem:[%s967 + $0x48] sm:$0xff]
        %v1045 = vld [vmem:[%s967 + $0x50] sm:$0xff]
        %v1046 = vld [vmem:[%s967 + $0x58] sm:$0xff]
        %v1047 = vld [vmem:[%s967 + $0x60] sm:$0xff]
        %v1048 = vld [vmem:[%s967 + $0x68] sm:$0xff]
        %v1049 = vld [vmem:[%s967 + $0x70] sm:$0xff]
        %v1050 = vld [vmem:[%s967 + $0x78] sm:$0xff]
        %v1051 = vld [vmem:[%s967 + $0x80] sm:$0xff]
        %v1052 = vld [vmem:[%s967 + $0x88] sm:$0xff]
        %v1053 = vld [vmem:[%s967 + $0x90] sm:$0xff]
        %v1054 = vld [vmem:[%s967 + $0x98] sm:$0xff]
        %v1055 = vld [vmem:[%s967 + $0xa0] sm:$0x3f]
        %v1056 = vpack.c.bf16 %v1036, %v1035
        %v1057 = vpack.c.bf16 %v1038, %v1037
        %v1058 = vpack.c.bf16 %v1040, %v1039
        %v1059 = vpack.c.bf16 %v1042, %v1041
        %v1060 = vpack.c.bf16 %v1044, %v1043
        %v1061 = vpack.c.bf16 %v1046, %v1045
        %v1062 = vpack.c.bf16 %v1048, %v1047
        %v1063 = vpack.c.bf16 %v1050, %v1049
        %v1064 = vpack.c.bf16 %v1052, %v1051
        %v1065 = vpack.c.bf16 %v1054, %v1053
        %v1066 = vpack.c.bf16 %v1055, %v1055
        %v1067 = vld [vmem:[#allocation2] sm:$0xff]
        %v1068 = vld [vmem:[#allocation2 + $0x8] sm:$0xff]
        %v1069 = vld [vmem:[#allocation2 + $0x10] sm:$0xff]
        %v1070 = vld [vmem:[#allocation2 + $0x18] sm:$0xff]
        %v1071 = vld [vmem:[#allocation2 + $0x20] sm:$0xff]
        %v1072 = vld [vmem:[#allocation2 + $0x28] sm:$0xff]
        %v1073 = vld [vmem:[#allocation2 + $0x30] sm:$0xff]
        %v1074 = vld [vmem:[#allocation2 + $0x38] sm:$0xff]
        %v1075 = vld [vmem:[#allocation2 + $0x40] sm:$0xff]
        %v1076 = vld [vmem:[#allocation2 + $0x48] sm:$0xff]
        %v1077 = vld [vmem:[#allocation2 + $0x50] sm:$0xff]
        %v1078 = vld [vmem:[#allocation2 + $0x58] sm:$0xff]
        %v1079 = vld [vmem:[#allocation2 + $0x60] sm:$0xff]
        %v1080 = vld [vmem:[#allocation2 + $0x68] sm:$0xff]
        %v1081 = vld [vmem:[#allocation2 + $0x70] sm:$0xff]
        %v1082 = vld [vmem:[#allocation2 + $0x78] sm:$0xff]
        %v1083 = vld [vmem:[#allocation2 + $0x80] sm:$0xff]
        %v1084 = vld [vmem:[#allocation2 + $0x88] sm:$0xff]
        %v1085 = vld [vmem:[#allocation2 + $0x90] sm:$0xff]
        %v1086 = vld [vmem:[#allocation2 + $0x98] sm:$0xff]
        %v1087 = vld [vmem:[#allocation2 + $0xa0] sm:$0x3f]
        %v1088 = vld [vmem:[%s974] sm:$0xf]
        %v1089 = vld [vmem:[%s974 + $0x4] sm:$0xf]
        %v1090 = vld [vmem:[%s974 + $0x8] sm:$0xf]
        %v1091 = vld [vmem:[%s974 + $0xc] sm:$0xf]
        %v1092 = vld [vmem:[%s974 + $0x10] sm:$0xf]
        %v1093 = vld [vmem:[%s974 + $0x14] sm:$0xf]
        %v1094 = vld [vmem:[%s974 + $0x18] sm:$0xf]
        %v1095 = vld [vmem:[%s974 + $0x1c] sm:$0xf]
        %v1096 = vld [vmem:[%s974 + $0x20] sm:$0xf]
        %v1097 = vld [vmem:[%s974 + $0x24] sm:$0xf]
        %v1098 = vld [vmem:[%s974 + $0x28] sm:$0xf]
        %v1099 = vld [vmem:[%s974 + $0x2c] sm:$0xf]
        %v1100 = vld [vmem:[%s974 + $0x30] sm:$0xf]
        %v1101 = vld [vmem:[%s974 + $0x34] sm:$0xf]
        %v1102 = vld [vmem:[%s974 + $0x38] sm:$0xf]
        %v1103 = vld [vmem:[%s974 + $0x3c] sm:$0xf]
        %v1120 = vunpack.c.l.b16 %v1088
        %v1121 = vunpack.c.l.b16 %v1089
        %v1122 = vunpack.c.l.b16 %v1090
        %v1123 = vunpack.c.l.b16 %v1091
        %v1124 = vunpack.c.l.b16 %v1092
        %v1125 = vunpack.c.l.b16 %v1093
        %v1126 = vunpack.c.l.b16 %v1094
        %v1127 = vunpack.c.l.b16 %v1095
        %v1128 = vunpack.c.l.b16 %v1096
        %v1129 = vunpack.c.l.b16 %v1097
        %v1130 = vunpack.c.l.b16 %v1098
        %v1131 = vunpack.c.l.b16 %v1099
        %v1132 = vunpack.c.l.b16 %v1100
        %v1133 = vunpack.c.l.b16 %v1101
        %v1134 = vunpack.c.l.b16 %v1102
        %v1135 = vunpack.c.l.b16 %v1103
        %v1136 = vpack.c.b16 %v1121, %v1120
        %v1137 = vpack.c.b16 %v1123, %v1122
        %v1138 = vpack.c.b16 %v1125, %v1124
        %v1139 = vpack.c.b16 %v1127, %v1126
        %v1140 = vpack.c.b16 %v1129, %v1128
        %v1141 = vpack.c.b16 %v1131, %v1130
        %v1142 = vpack.c.b16 %v1133, %v1132
        %v1143 = vpack.c.b16 %v1135, %v1134
        %1152 = vmatprep.subr.bf16.mxu0 0
        %1153 = vmatpush1.bf16.msra.mxu0 %v1143
        %1154 = vmatprep.subr.bf16.mxu0 0
        %1155 = vmatpush1.bf16.msra.mxu0 %v1142
        %1156 = vmatprep.subr.bf16.mxu0 0
        %1157 = vmatpush1.bf16.msra.mxu0 %v1141
        %1158 = vmatprep.subr.bf16.mxu0 0
        %1159 = vmatpush1.bf16.msra.mxu0 %v1140
        %1160 = vmatprep.subr.bf16.mxu0 0
        %1161 = vmatpush1.bf16.msra.mxu0 %v1139
        %1162 = vmatprep.subr.bf16.mxu0 0
        %1163 = vmatpush1.bf16.msra.mxu0 %v1138
        %1164 = vmatprep.subr.bf16.mxu0 0
        %1165 = vmatpush1.bf16.msra.mxu0 %v1137
        %1166 = vmatprep.subr.bf16.mxu0 0
        %1167 = vmatpush1.bf16.msra.mxu0 %v1136
        %1168 = vmatprep.subr.bf16.mxu0 0
        %1169 = vmatpush2.bf16.msra.mxu0 0
        %1170 = vmatprep.subr.bf16.mxu0 0
        %1171 = vmatpush2.bf16.msra.mxu0 0
        %1172 = vmatprep.subr.bf16.mxu0 0
        %1173 = vmatpush2.bf16.msra.mxu0 0
        %1174 = vmatprep.subr.bf16.mxu0 0
        %1175 = vmatpush2.bf16.msra.mxu0 0
        %1176 = vmatprep.subr.bf16.mxu0 0
        %1177 = vmatpush2.bf16.msra.mxu0 0
        %1178 = vmatprep.subr.bf16.mxu0 0
        %1179 = vmatpush2.bf16.msra.mxu0 0
        %1180 = vmatprep.subr.bf16.mxu0 0
        %1181 = vmatpush2.bf16.msra.mxu0 0
        %1182 = vmatprep.subr.bf16.mxu0 0
        %1183 = vmatpush2.bf16.msra.mxu0 0
        %1184 = vmatprep.mubr.bf16.mxu0 0
        %1185 = vmatmul.mubr.bf16.gmra.mxu0 %v1056
        %v1186 = vpop.f32.mrf.mxu0
        %v1187 = vadd.f32 0.0, %v1186
        %v1188 = vpop.f32.mrf.mxu0
        %v1189 = vpop.f32.mrf.mxu0
        %v1190 = vadd.f32 0.0, %v1189
        %v1191 = vpop.f32.mrf.mxu0
        %1192 = vmatprep.mubr.bf16.mxu0 0
        %1193 = vmatmul.mubr.bf16.gmra.mxu0 %v1057
        %v1194 = vpop.f32.mrf.mxu0
        %v1195 = vadd.f32 0.0, %v1194
        %v1196 = vpop.f32.mrf.mxu0
        %v1197 = vpop.f32.mrf.mxu0
        %v1198 = vadd.f32 0.0, %v1197
        %v1199 = vpop.f32.mrf.mxu0
        %1200 = vmatprep.mubr.bf16.mxu0 0
        %1201 = vmatmul.mubr.bf16.gmra.mxu0 %v1058
        %v1202 = vpop.f32.mrf.mxu0
        %v1203 = vadd.f32 0.0, %v1202
        %v1204 = vpop.f32.mrf.mxu0
        %v1205 = vpop.f32.mrf.mxu0
        %v1206 = vadd.f32 0.0, %v1205
        %v1207 = vpop.f32.mrf.mxu0
        %1208 = vmatprep.mubr.bf16.mxu0 0
        %1209 = vmatmul.mubr.bf16.gmra.mxu0 %v1059
        %v1210 = vpop.f32.mrf.mxu0
        %v1211 = vadd.f32 0.0, %v1210
        %v1212 = vpop.f32.mrf.mxu0
        %v1213 = vpop.f32.mrf.mxu0
        %v1214 = vadd.f32 0.0, %v1213
        %v1215 = vpop.f32.mrf.mxu0
        %1216 = vmatprep.mubr.bf16.mxu0 0
        %1217 = vmatmul.mubr.bf16.gmra.mxu0 %v1060
        %v1218 = vpop.f32.mrf.mxu0
        %v1219 = vadd.f32 0.0, %v1218
        %v1220 = vpop.f32.mrf.mxu0
        %v1221 = vpop.f32.mrf.mxu0
        %v1222 = vadd.f32 0.0, %v1221
        %v1223 = vpop.f32.mrf.mxu0
        %1224 = vmatprep.mubr.bf16.mxu0 0
        %1225 = vmatmul.mubr.bf16.gmra.mxu0 %v1061
        %v1226 = vpop.f32.mrf.mxu0
        %v1227 = vadd.f32 0.0, %v1226
        %v1228 = vpop.f32.mrf.mxu0
        %v1229 = vpop.f32.mrf.mxu0
        %v1230 = vadd.f32 0.0, %v1229
        %v1231 = vpop.f32.mrf.mxu0
        %1232 = vmatprep.mubr.bf16.mxu0 0
        %1233 = vmatmul.mubr.bf16.gmra.mxu0 %v1062
        %v1234 = vpop.f32.mrf.mxu0
        %v1235 = vadd.f32 0.0, %v1234
        %v1236 = vpop.f32.mrf.mxu0
        %v1237 = vpop.f32.mrf.mxu0
        %v1238 = vadd.f32 0.0, %v1237
        %v1239 = vpop.f32.mrf.mxu0
        %1240 = vmatprep.mubr.bf16.mxu0 0
        %1241 = vmatmul.mubr.bf16.gmra.mxu0 %v1063
        %v1242 = vpop.f32.mrf.mxu0
        %v1243 = vadd.f32 0.0, %v1242
        %v1244 = vpop.f32.mrf.mxu0
        %v1245 = vpop.f32.mrf.mxu0
        %v1246 = vadd.f32 0.0, %v1245
        %v1247 = vpop.f32.mrf.mxu0
        %1248 = vmatprep.mubr.bf16.mxu0 0
        %1249 = vmatmul.mubr.bf16.gmra.mxu0 %v1064
        %v1250 = vpop.f32.mrf.mxu0
        %v1251 = vadd.f32 0.0, %v1250
        %v1252 = vpop.f32.mrf.mxu0
        %v1253 = vpop.f32.mrf.mxu0
        %v1254 = vadd.f32 0.0, %v1253
        %v1255 = vpop.f32.mrf.mxu0
        %1256 = vmatprep.mubr.bf16.mxu0 0
        %1257 = vmatmul.mubr.bf16.gmra.mxu0 %v1065
        %v1258 = vpop.f32.mrf.mxu0
        %v1259 = vadd.f32 0.0, %v1258
        %v1260 = vpop.f32.mrf.mxu0
        %v1261 = vpop.f32.mrf.mxu0
        %v1262 = vadd.f32 0.0, %v1261
        %v1263 = vpop.f32.mrf.mxu0
        %1264 = vmatprep.mubr.bf16.mxu0 0
        %1265 = vmatmul.mubr.bf16.gmra.mxu0 %v1066
        %v1266 = vpop.f32.mrf.mxu0
        %v1267 = vadd.f32 0.0, %v1266
        %v1268 = vpop.f32.mrf.mxu0
        %v1269 = vpop.f32.mrf.mxu0
        %v1270 = vpop.f32.mrf.mxu0
        %1271 = vdwg.mxu0
        %v1272 = vadd.f32 %v1067, %v1187
        %v1273 = vadd.f32 %v1068, %v1190
        %v1274 = vadd.f32 %v1069, %v1195
        %v1275 = vadd.f32 %v1070, %v1198
        %v1276 = vadd.f32 %v1071, %v1203
        %v1277 = vadd.f32 %v1072, %v1206
        %v1278 = vadd.f32 %v1073, %v1211
        %v1279 = vadd.f32 %v1074, %v1214
        %v1280 = vadd.f32 %v1075, %v1219
        %v1281 = vadd.f32 %v1076, %v1222
        %v1282 = vadd.f32 %v1077, %v1227
        %v1283 = vadd.f32 %v1078, %v1230
        %v1284 = vadd.f32 %v1079, %v1235
        %v1285 = vadd.f32 %v1080, %v1238
        %v1286 = vadd.f32 %v1081, %v1243
        %v1287 = vadd.f32 %v1082, %v1246
        %v1288 = vadd.f32 %v1083, %v1251
        %v1289 = vadd.f32 %v1084, %v1254
        %v1290 = vadd.f32 %v1085, %v1259
        %v1291 = vadd.f32 %v1086, %v1262
        %v1292 = vadd.f32 %v1087, %v1267
        %1293 = vst [vmem:[#allocation2] sm:$0xff] %v1272
        %1294 = vst [vmem:[#allocation2 + $0x8] sm:$0xff] %v1273
        %1295 = vst [vmem:[#allocation2 + $0x10] sm:$0xff] %v1274
        %1296 = vst [vmem:[#allocation2 + $0x18] sm:$0xff] %v1275
        %1297 = vst [vmem:[#allocation2 + $0x20] sm:$0xff] %v1276
        %1298 = vst [vmem:[#allocation2 + $0x28] sm:$0xff] %v1277
        %1299 = vst [vmem:[#allocation2 + $0x30] sm:$0xff] %v1278
        %1300 = vst [vmem:[#allocation2 + $0x38] sm:$0xff] %v1279
        %1301 = vst [vmem:[#allocation2 + $0x40] sm:$0xff] %v1280
        %1302 = vst [vmem:[#allocation2 + $0x48] sm:$0xff] %v1281
        %1303 = vst [vmem:[#allocation2 + $0x50] sm:$0xff] %v1282
        %1304 = vst [vmem:[#allocation2 + $0x58] sm:$0xff] %v1283
        %1305 = vst [vmem:[#allocation2 + $0x60] sm:$0xff] %v1284
        %1306 = vst [vmem:[#allocation2 + $0x68] sm:$0xff] %v1285
        %1307 = vst [vmem:[#allocation2 + $0x70] sm:$0xff] %v1286
        %1308 = vst [vmem:[#allocation2 + $0x78] sm:$0xff] %v1287
        %1309 = vst [vmem:[#allocation2 + $0x80] sm:$0xff] %v1288
        %1310 = vst [vmem:[#allocation2 + $0x88] sm:$0xff] %v1289
        %1311 = vst [vmem:[#allocation2 + $0x90] sm:$0xff] %v1290
        %1312 = vst [vmem:[#allocation2 + $0x98] sm:$0xff] %v1291
        %1313 = vst [vmem:[#allocation2 + $0xa0] sm:$0x3f] %v1292
        %v1314 = vld [vmem:[%s967 + $0x1] sm:$0xff]
        %v1315 = vld [vmem:[%s967 + $0x9] sm:$0xff]
        %v1316 = vld [vmem:[%s967 + $0x11] sm:$0xff]
        %v1317 = vld [vmem:[%s967 + $0x19] sm:$0xff]
        %v1318 = vld [vmem:[%s967 + $0x21] sm:$0xff]
        %v1319 = vld [vmem:[%s967 + $0x29] sm:$0xff]
        %v1320 = vld [vmem:[%s967 + $0x31] sm:$0xff]
        %v1321 = vld [vmem:[%s967 + $0x39] sm:$0xff]
        %v1322 = vld [vmem:[%s967 + $0x41] sm:$0xff]
        %v1323 = vld [vmem:[%s967 + $0x49] sm:$0xff]
        %v1324 = vld [vmem:[%s967 + $0x51] sm:$0xff]
        %v1325 = vld [vmem:[%s967 + $0x59] sm:$0xff]
        %v1326 = vld [vmem:[%s967 + $0x61] sm:$0xff]
        %v1327 = vld [vmem:[%s967 + $0x69] sm:$0xff]
        %v1328 = vld [vmem:[%s967 + $0x71] sm:$0xff]
        %v1329 = vld [vmem:[%s967 + $0x79] sm:$0xff]
        %v1330 = vld [vmem:[%s967 + $0x81] sm:$0xff]
        %v1331 = vld [vmem:[%s967 + $0x89] sm:$0xff]
        %v1332 = vld [vmem:[%s967 + $0x91] sm:$0xff]
        %v1333 = vld [vmem:[%s967 + $0x99] sm:$0xff]
        %v1334 = vld [vmem:[%s967 + $0xa1] sm:$0x3f]
        %v1335 = vpack.c.bf16 %v1315, %v1314
        %v1336 = vpack.c.bf16 %v1317, %v1316
        %v1337 = vpack.c.bf16 %v1319, %v1318
        %v1338 = vpack.c.bf16 %v1321, %v1320
        %v1339 = vpack.c.bf16 %v1323, %v1322
        %v1340 = vpack.c.bf16 %v1325, %v1324
        %v1341 = vpack.c.bf16 %v1327, %v1326
        %v1342 = vpack.c.bf16 %v1329, %v1328
        %v1343 = vpack.c.bf16 %v1331, %v1330
        %v1344 = vpack.c.bf16 %v1333, %v1332
        %v1345 = vpack.c.bf16 %v1334, %v1334
        %v1346 = vld [vmem:[#allocation2] sm:$0xff]
        %v1347 = vld [vmem:[#allocation2 + $0x8] sm:$0xff]
        %v1348 = vld [vmem:[#allocation2 + $0x10] sm:$0xff]
        %v1349 = vld [vmem:[#allocation2 + $0x18] sm:$0xff]
        %v1350 = vld [vmem:[#allocation2 + $0x20] sm:$0xff]
        %v1351 = vld [vmem:[#allocation2 + $0x28] sm:$0xff]
        %v1352 = vld [vmem:[#allocation2 + $0x30] sm:$0xff]
        %v1353 = vld [vmem:[#allocation2 + $0x38] sm:$0xff]
        %v1354 = vld [vmem:[#allocation2 + $0x40] sm:$0xff]
        %v1355 = vld [vmem:[#allocation2 + $0x48] sm:$0xff]
        %v1356 = vld [vmem:[#allocation2 + $0x50] sm:$0xff]
        %v1357 = vld [vmem:[#allocation2 + $0x58] sm:$0xff]
        %v1358 = vld [vmem:[#allocation2 + $0x60] sm:$0xff]
        %v1359 = vld [vmem:[#allocation2 + $0x68] sm:$0xff]
        %v1360 = vld [vmem:[#allocation2 + $0x70] sm:$0xff]
        %v1361 = vld [vmem:[#allocation2 + $0x78] sm:$0xff]
        %v1362 = vld [vmem:[#allocation2 + $0x80] sm:$0xff]
        %v1363 = vld [vmem:[#allocation2 + $0x88] sm:$0xff]
        %v1364 = vld [vmem:[#allocation2 + $0x90] sm:$0xff]
        %v1365 = vld [vmem:[#allocation2 + $0x98] sm:$0xff]
        %v1366 = vld [vmem:[#allocation2 + $0xa0] sm:$0x3f]
        %s1367 = scalar_lea.vmem %s974, 64 [#allocation4]
        %v1368 = vld [vmem:[%s1367] sm:$0xf]
        %v1369 = vld [vmem:[%s1367 + $0x4] sm:$0xf]
        %v1370 = vld [vmem:[%s1367 + $0x8] sm:$0xf]
        %v1371 = vld [vmem:[%s1367 + $0xc] sm:$0xf]
        %v1372 = vld [vmem:[%s1367 + $0x10] sm:$0xf]
        %v1373 = vld [vmem:[%s1367 + $0x14] sm:$0xf]
        %v1374 = vld [vmem:[%s1367 + $0x18] sm:$0xf]
        %v1375 = vld [vmem:[%s1367 + $0x1c] sm:$0xf]
        %v1376 = vld [vmem:[%s1367 + $0x20] sm:$0xf]
        %v1377 = vld [vmem:[%s1367 + $0x24] sm:$0xf]
        %v1378 = vld [vmem:[%s1367 + $0x28] sm:$0xf]
        %v1379 = vld [vmem:[%s1367 + $0x2c] sm:$0xf]
        %v1380 = vld [vmem:[%s1367 + $0x30] sm:$0xf]
        %v1381 = vld [vmem:[%s1367 + $0x34] sm:$0xf]
        %v1382 = vld [vmem:[%s1367 + $0x38] sm:$0xf]
        %v1383 = vld [vmem:[%s1367 + $0x3c] sm:$0xf]
        %v1400 = vunpack.c.l.b16 %v1368
        %v1401 = vunpack.c.l.b16 %v1369
        %v1402 = vunpack.c.l.b16 %v1370
        %v1403 = vunpack.c.l.b16 %v1371
        %v1404 = vunpack.c.l.b16 %v1372
        %v1405 = vunpack.c.l.b16 %v1373
        %v1406 = vunpack.c.l.b16 %v1374
        %v1407 = vunpack.c.l.b16 %v1375
        %v1408 = vunpack.c.l.b16 %v1376
        %v1409 = vunpack.c.l.b16 %v1377
        %v1410 = vunpack.c.l.b16 %v1378
        %v1411 = vunpack.c.l.b16 %v1379
        %v1412 = vunpack.c.l.b16 %v1380
        %v1413 = vunpack.c.l.b16 %v1381
        %v1414 = vunpack.c.l.b16 %v1382
        %v1415 = vunpack.c.l.b16 %v1383
        %v1416 = vpack.c.b16 %v1401, %v1400
        %v1417 = vpack.c.b16 %v1403, %v1402
        %v1418 = vpack.c.b16 %v1405, %v1404
        %v1419 = vpack.c.b16 %v1407, %v1406
        %v1420 = vpack.c.b16 %v1409, %v1408
        %v1421 = vpack.c.b16 %v1411, %v1410
        %v1422 = vpack.c.b16 %v1413, %v1412
        %v1423 = vpack.c.b16 %v1415, %v1414
        %1432 = vmatprep.subr.bf16.mxu0 0
        %1433 = vmatpush1.bf16.msra.mxu0 %v1423
        %1434 = vmatprep.subr.bf16.mxu0 0
        %1435 = vmatpush1.bf16.msra.mxu0 %v1422
        %1436 = vmatprep.subr.bf16.mxu0 0
        %1437 = vmatpush1.bf16.msra.mxu0 %v1421
        %1438 = vmatprep.subr.bf16.mxu0 0
        %1439 = vmatpush1.bf16.msra.mxu0 %v1420
        %1440 = vmatprep.subr.bf16.mxu0 0
        %1441 = vmatpush1.bf16.msra.mxu0 %v1419
        %1442 = vmatprep.subr.bf16.mxu0 0
        %1443 = vmatpush1.bf16.msra.mxu0 %v1418
        %1444 = vmatprep.subr.bf16.mxu0 0
        %1445 = vmatpush1.bf16.msra.mxu0 %v1417
        %1446 = vmatprep.subr.bf16.mxu0 0
        %1447 = vmatpush1.bf16.msra.mxu0 %v1416
        %1448 = vmatprep.subr.bf16.mxu0 0
        %1449 = vmatpush2.bf16.msra.mxu0 0
        %1450 = vmatprep.subr.bf16.mxu0 0
        %1451 = vmatpush2.bf16.msra.mxu0 0
        %1452 = vmatprep.subr.bf16.mxu0 0
        %1453 = vmatpush2.bf16.msra.mxu0 0
        %1454 = vmatprep.subr.bf16.mxu0 0
        %1455 = vmatpush2.bf16.msra.mxu0 0
        %1456 = vmatprep.subr.bf16.mxu0 0
        %1457 = vmatpush2.bf16.msra.mxu0 0
        %1458 = vmatprep.subr.bf16.mxu0 0
        %1459 = vmatpush2.bf16.msra.mxu0 0
        %1460 = vmatprep.subr.bf16.mxu0 0
        %1461 = vmatpush2.bf16.msra.mxu0 0
        %1462 = vmatprep.subr.bf16.mxu0 0
        %1463 = vmatpush2.bf16.msra.mxu0 0
        %1464 = vmatprep.mubr.bf16.mxu0 0
        %1465 = vmatmul.mubr.bf16.gmra.mxu0 %v1335
        %v1466 = vpop.f32.mrf.mxu0
        %v1467 = vadd.f32 0.0, %v1466
        %v1468 = vpop.f32.mrf.mxu0
        %v1469 = vpop.f32.mrf.mxu0
        %v1470 = vadd.f32 0.0, %v1469
        %v1471 = vpop.f32.mrf.mxu0
        %1472 = vmatprep.mubr.bf16.mxu0 0
        %1473 = vmatmul.mubr.bf16.gmra.mxu0 %v1336
        %v1474 = vpop.f32.mrf.mxu0
        %v1475 = vadd.f32 0.0, %v1474
        %v1476 = vpop.f32.mrf.mxu0
        %v1477 = vpop.f32.mrf.mxu0
        %v1478 = vadd.f32 0.0, %v1477
        %v1479 = vpop.f32.mrf.mxu0
        %1480 = vmatprep.mubr.bf16.mxu0 0
        %1481 = vmatmul.mubr.bf16.gmra.mxu0 %v1337
        %v1482 = vpop.f32.mrf.mxu0
        %v1483 = vadd.f32 0.0, %v1482
        %v1484 = vpop.f32.mrf.mxu0
        %v1485 = vpop.f32.mrf.mxu0
        %v1486 = vadd.f32 0.0, %v1485
        %v1487 = vpop.f32.mrf.mxu0
        %1488 = vmatprep.mubr.bf16.mxu0 0
        %1489 = vmatmul.mubr.bf16.gmra.mxu0 %v1338
        %v1490 = vpop.f32.mrf.mxu0
        %v1491 = vadd.f32 0.0, %v1490
        %v1492 = vpop.f32.mrf.mxu0
        %v1493 = vpop.f32.mrf.mxu0
        %v1494 = vadd.f32 0.0, %v1493
        %v1495 = vpop.f32.mrf.mxu0
        %1496 = vmatprep.mubr.bf16.mxu0 0
        %1497 = vmatmul.mubr.bf16.gmra.mxu0 %v1339
        %v1498 = vpop.f32.mrf.mxu0
        %v1499 = vadd.f32 0.0, %v1498
        %v1500 = vpop.f32.mrf.mxu0
        %v1501 = vpop.f32.mrf.mxu0
        %v1502 = vadd.f32 0.0, %v1501
        %v1503 = vpop.f32.mrf.mxu0
        %1504 = vmatprep.mubr.bf16.mxu0 0
        %1505 = vmatmul.mubr.bf16.gmra.mxu0 %v1340
        %v1506 = vpop.f32.mrf.mxu0
        %v1507 = vadd.f32 0.0, %v1506
        %v1508 = vpop.f32.mrf.mxu0
        %v1509 = vpop.f32.mrf.mxu0
        %v1510 = vadd.f32 0.0, %v1509
        %v1511 = vpop.f32.mrf.mxu0
        %1512 = vmatprep.mubr.bf16.mxu0 0
        %1513 = vmatmul.mubr.bf16.gmra.mxu0 %v1341
        %v1514 = vpop.f32.mrf.mxu0
        %v1515 = vadd.f32 0.0, %v1514
        %v1516 = vpop.f32.mrf.mxu0
        %v1517 = vpop.f32.mrf.mxu0
        %v1518 = vadd.f32 0.0, %v1517
        %v1519 = vpop.f32.mrf.mxu0
        %1520 = vmatprep.mubr.bf16.mxu0 0
        %1521 = vmatmul.mubr.bf16.gmra.mxu0 %v1342
        %v1522 = vpop.f32.mrf.mxu0
        %v1523 = vadd.f32 0.0, %v1522
        %v1524 = vpop.f32.mrf.mxu0
        %v1525 = vpop.f32.mrf.mxu0
        %v1526 = vadd.f32 0.0, %v1525
        %v1527 = vpop.f32.mrf.mxu0
        %1528 = vmatprep.mubr.bf16.mxu0 0
        %1529 = vmatmul.mubr.bf16.gmra.mxu0 %v1343
        %v1530 = vpop.f32.mrf.mxu0
        %v1531 = vadd.f32 0.0, %v1530
        %v1532 = vpop.f32.mrf.mxu0
        %v1533 = vpop.f32.mrf.mxu0
        %v1534 = vadd.f32 0.0, %v1533
        %v1535 = vpop.f32.mrf.mxu0
        %1536 = vmatprep.mubr.bf16.mxu0 0
        %1537 = vmatmul.mubr.bf16.gmra.mxu0 %v1344
        %v1538 = vpop.f32.mrf.mxu0
        %v1539 = vadd.f32 0.0, %v1538
        %v1540 = vpop.f32.mrf.mxu0
        %v1541 = vpop.f32.mrf.mxu0
        %v1542 = vadd.f32 0.0, %v1541
        %v1543 = vpop.f32.mrf.mxu0
        %1544 = vmatprep.mubr.bf16.mxu0 0
        %1545 = vmatmul.mubr.bf16.gmra.mxu0 %v1345
        %v1546 = vpop.f32.mrf.mxu0
        %v1547 = vadd.f32 0.0, %v1546
        %v1548 = vpop.f32.mrf.mxu0
        %v1549 = vpop.f32.mrf.mxu0
        %v1550 = vpop.f32.mrf.mxu0
        %1551 = vdwg.mxu0
        %v1552 = vadd.f32 %v1346, %v1467
        %v1553 = vadd.f32 %v1347, %v1470
        %v1554 = vadd.f32 %v1348, %v1475
        %v1555 = vadd.f32 %v1349, %v1478
        %v1556 = vadd.f32 %v1350, %v1483
        %v1557 = vadd.f32 %v1351, %v1486
        %v1558 = vadd.f32 %v1352, %v1491
        %v1559 = vadd.f32 %v1353, %v1494
        %v1560 = vadd.f32 %v1354, %v1499
        %v1561 = vadd.f32 %v1355, %v1502
        %v1562 = vadd.f32 %v1356, %v1507
        %v1563 = vadd.f32 %v1357, %v1510
        %v1564 = vadd.f32 %v1358, %v1515
        %v1565 = vadd.f32 %v1359, %v1518
        %v1566 = vadd.f32 %v1360, %v1523
        %v1567 = vadd.f32 %v1361, %v1526
        %v1568 = vadd.f32 %v1362, %v1531
        %v1569 = vadd.f32 %v1363, %v1534
        %v1570 = vadd.f32 %v1364, %v1539
        %v1571 = vadd.f32 %v1365, %v1542
        %v1572 = vadd.f32 %v1366, %v1547
        %1573 = vst [vmem:[#allocation2] sm:$0xff] %v1552
        %1574 = vst [vmem:[#allocation2 + $0x8] sm:$0xff] %v1553
        %1575 = vst [vmem:[#allocation2 + $0x10] sm:$0xff] %v1554
        %1576 = vst [vmem:[#allocation2 + $0x18] sm:$0xff] %v1555
        %1577 = vst [vmem:[#allocation2 + $0x20] sm:$0xff] %v1556
        %1578 = vst [vmem:[#allocation2 + $0x28] sm:$0xff] %v1557
        %1579 = vst [vmem:[#allocation2 + $0x30] sm:$0xff] %v1558
        %1580 = vst [vmem:[#allocation2 + $0x38] sm:$0xff] %v1559
        %1581 = vst [vmem:[#allocation2 + $0x40] sm:$0xff] %v1560
        %1582 = vst [vmem:[#allocation2 + $0x48] sm:$0xff] %v1561
        %1583 = vst [vmem:[#allocation2 + $0x50] sm:$0xff] %v1562
        %1584 = vst [vmem:[#allocation2 + $0x58] sm:$0xff] %v1563
        %1585 = vst [vmem:[#allocation2 + $0x60] sm:$0xff] %v1564
        %1586 = vst [vmem:[#allocation2 + $0x68] sm:$0xff] %v1565
        %1587 = vst [vmem:[#allocation2 + $0x70] sm:$0xff] %v1566
        %1588 = vst [vmem:[#allocation2 + $0x78] sm:$0xff] %v1567
        %1589 = vst [vmem:[#allocation2 + $0x80] sm:$0xff] %v1568
        %1590 = vst [vmem:[#allocation2 + $0x88] sm:$0xff] %v1569
        %1591 = vst [vmem:[#allocation2 + $0x90] sm:$0xff] %v1570
        %1592 = vst [vmem:[#allocation2 + $0x98] sm:$0xff] %v1571
        %1593 = vst [vmem:[#allocation2 + $0xa0] sm:$0x3f] %v1572
        %v1594 = vld [vmem:[%s967 + $0x2] sm:$0xff]
        %v1595 = vld [vmem:[%s967 + $0xa] sm:$0xff]
        %v1596 = vld [vmem:[%s967 + $0x12] sm:$0xff]
        %v1597 = vld [vmem:[%s967 + $0x1a] sm:$0xff]
        %v1598 = vld [vmem:[%s967 + $0x22] sm:$0xff]
        %v1599 = vld [vmem:[%s967 + $0x2a] sm:$0xff]
        %v1600 = vld [vmem:[%s967 + $0x32] sm:$0xff]
        %v1601 = vld [vmem:[%s967 + $0x3a] sm:$0xff]
        %v1602 = vld [vmem:[%s967 + $0x42] sm:$0xff]
        %v1603 = vld [vmem:[%s967 + $0x4a] sm:$0xff]
        %v1604 = vld [vmem:[%s967 + $0x52] sm:$0xff]
        %v1605 = vld [vmem:[%s967 + $0x5a] sm:$0xff]
        %v1606 = vld [vmem:[%s967 + $0x62] sm:$0xff]
        %v1607 = vld [vmem:[%s967 + $0x6a] sm:$0xff]
        %v1608 = vld [vmem:[%s967 + $0x72] sm:$0xff]
        %v1609 = vld [vmem:[%s967 + $0x7a] sm:$0xff]
        %v1610 = vld [vmem:[%s967 + $0x82] sm:$0xff]
        %v1611 = vld [vmem:[%s967 + $0x8a] sm:$0xff]
        %v1612 = vld [vmem:[%s967 + $0x92] sm:$0xff]
        %v1613 = vld [vmem:[%s967 + $0x9a] sm:$0xff]
        %v1614 = vld [vmem:[%s967 + $0xa2] sm:$0x3f]
        %v1615 = vpack.c.bf16 %v1595, %v1594
        %v1616 = vpack.c.bf16 %v1597, %v1596
        %v1617 = vpack.c.bf16 %v1599, %v1598
        %v1618 = vpack.c.bf16 %v1601, %v1600
        %v1619 = vpack.c.bf16 %v1603, %v1602
        %v1620 = vpack.c.bf16 %v1605, %v1604
        %v1621 = vpack.c.bf16 %v1607, %v1606
        %v1622 = vpack.c.bf16 %v1609, %v1608
        %v1623 = vpack.c.bf16 %v1611, %v1610
        %v1624 = vpack.c.bf16 %v1613, %v1612
        %v1625 = vpack.c.bf16 %v1614, %v1614
        %v1626 = vld [vmem:[#allocation2] sm:$0xff]
        %v1627 = vld [vmem:[#allocation2 + $0x8] sm:$0xff]
        %v1628 = vld [vmem:[#allocation2 + $0x10] sm:$0xff]
        %v1629 = vld [vmem:[#allocation2 + $0x18] sm:$0xff]
        %v1630 = vld [vmem:[#allocation2 + $0x20] sm:$0xff]
        %v1631 = vld [vmem:[#allocation2 + $0x28] sm:$0xff]
        %v1632 = vld [vmem:[#allocation2 + $0x30] sm:$0xff]
        %v1633 = vld [vmem:[#allocation2 + $0x38] sm:$0xff]
        %v1634 = vld [vmem:[#allocation2 + $0x40] sm:$0xff]
        %v1635 = vld [vmem:[#allocation2 + $0x48] sm:$0xff]
        %v1636 = vld [vmem:[#allocation2 + $0x50] sm:$0xff]
        %v1637 = vld [vmem:[#allocation2 + $0x58] sm:$0xff]
        %v1638 = vld [vmem:[#allocation2 + $0x60] sm:$0xff]
        %v1639 = vld [vmem:[#allocation2 + $0x68] sm:$0xff]
        %v1640 = vld [vmem:[#allocation2 + $0x70] sm:$0xff]
        %v1641 = vld [vmem:[#allocation2 + $0x78] sm:$0xff]
        %v1642 = vld [vmem:[#allocation2 + $0x80] sm:$0xff]
        %v1643 = vld [vmem:[#allocation2 + $0x88] sm:$0xff]
        %v1644 = vld [vmem:[#allocation2 + $0x90] sm:$0xff]
        %v1645 = vld [vmem:[#allocation2 + $0x98] sm:$0xff]
        %v1646 = vld [vmem:[#allocation2 + $0xa0] sm:$0x3f]
        %s1647 = scalar_lea.vmem %s974, 128 [#allocation4]
        %v1648 = vld [vmem:[%s1647] sm:$0xf]
        %v1649 = vld [vmem:[%s1647 + $0x4] sm:$0xf]
        %v1650 = vld [vmem:[%s1647 + $0x8] sm:$0xf]
        %v1651 = vld [vmem:[%s1647 + $0xc] sm:$0xf]
        %v1652 = vld [vmem:[%s1647 + $0x10] sm:$0xf]
        %v1653 = vld [vmem:[%s1647 + $0x14] sm:$0xf]
        %v1654 = vld [vmem:[%s1647 + $0x18] sm:$0xf]
        %v1655 = vld [vmem:[%s1647 + $0x1c] sm:$0xf]
        %v1656 = vld [vmem:[%s1647 + $0x20] sm:$0xf]
        %v1657 = vld [vmem:[%s1647 + $0x24] sm:$0xf]
        %v1658 = vld [vmem:[%s1647 + $0x28] sm:$0xf]
        %v1659 = vld [vmem:[%s1647 + $0x2c] sm:$0xf]
        %v1660 = vld [vmem:[%s1647 + $0x30] sm:$0xf]
        %v1661 = vld [vmem:[%s1647 + $0x34] sm:$0xf]
        %v1662 = vld [vmem:[%s1647 + $0x38] sm:$0xf]
        %v1663 = vld [vmem:[%s1647 + $0x3c] sm:$0xf]
        %v1680 = vunpack.c.l.b16 %v1648
        %v1681 = vunpack.c.l.b16 %v1649
        %v1682 = vunpack.c.l.b16 %v1650
        %v1683 = vunpack.c.l.b16 %v1651
        %v1684 = vunpack.c.l.b16 %v1652
        %v1685 = vunpack.c.l.b16 %v1653
        %v1686 = vunpack.c.l.b16 %v1654
        %v1687 = vunpack.c.l.b16 %v1655
        %v1688 = vunpack.c.l.b16 %v1656
        %v1689 = vunpack.c.l.b16 %v1657
        %v1690 = vunpack.c.l.b16 %v1658
        %v1691 = vunpack.c.l.b16 %v1659
        %v1692 = vunpack.c.l.b16 %v1660
        %v1693 = vunpack.c.l.b16 %v1661
        %v1694 = vunpack.c.l.b16 %v1662
        %v1695 = vunpack.c.l.b16 %v1663
        %v1696 = vpack.c.b16 %v1681, %v1680
        %v1697 = vpack.c.b16 %v1683, %v1682
        %v1698 = vpack.c.b16 %v1685, %v1684
        %v1699 = vpack.c.b16 %v1687, %v1686
        %v1700 = vpack.c.b16 %v1689, %v1688
        %v1701 = vpack.c.b16 %v1691, %v1690
        %v1702 = vpack.c.b16 %v1693, %v1692
        %v1703 = vpack.c.b16 %v1695, %v1694
        %1712 = vmatprep.subr.bf16.mxu0 0
        %1713 = vmatpush1.bf16.msra.mxu0 %v1703
        %1714 = vmatprep.subr.bf16.mxu0 0
        %1715 = vmatpush1.bf16.msra.mxu0 %v1702
        %1716 = vmatprep.subr.bf16.mxu0 0
        %1717 = vmatpush1.bf16.msra.mxu0 %v1701
        %1718 = vmatprep.subr.bf16.mxu0 0
        %1719 = vmatpush1.bf16.msra.mxu0 %v1700
        %1720 = vmatprep.subr.bf16.mxu0 0
        %1721 = vmatpush1.bf16.msra.mxu0 %v1699
        %1722 = vmatprep.subr.bf16.mxu0 0
        %1723 = vmatpush1.bf16.msra.mxu0 %v1698
        %1724 = vmatprep.subr.bf16.mxu0 0
        %1725 = vmatpush1.bf16.msra.mxu0 %v1697
        %1726 = vmatprep.subr.bf16.mxu0 0
        %1727 = vmatpush1.bf16.msra.mxu0 %v1696
        %1728 = vmatprep.subr.bf16.mxu0 0
        %1729 = vmatpush2.bf16.msra.mxu0 0
        %1730 = vmatprep.subr.bf16.mxu0 0
        %1731 = vmatpush2.bf16.msra.mxu0 0
        %1732 = vmatprep.subr.bf16.mxu0 0
        %1733 = vmatpush2.bf16.msra.mxu0 0
        %1734 = vmatprep.subr.bf16.mxu0 0
        %1735 = vmatpush2.bf16.msra.mxu0 0
        %1736 = vmatprep.subr.bf16.mxu0 0
        %1737 = vmatpush2.bf16.msra.mxu0 0
        %1738 = vmatprep.subr.bf16.mxu0 0
        %1739 = vmatpush2.bf16.msra.mxu0 0
        %1740 = vmatprep.subr.bf16.mxu0 0
        %1741 = vmatpush2.bf16.msra.mxu0 0
        %1742 = vmatprep.subr.bf16.mxu0 0
        %1743 = vmatpush2.bf16.msra.mxu0 0
        %1744 = vmatprep.mubr.bf16.mxu0 0
        %1745 = vmatmul.mubr.bf16.gmra.mxu0 %v1615
        %v1746 = vpop.f32.mrf.mxu0
        %v1747 = vadd.f32 0.0, %v1746
        %v1748 = vpop.f32.mrf.mxu0
        %v1749 = vpop.f32.mrf.mxu0
        %v1750 = vadd.f32 0.0, %v1749
        %v1751 = vpop.f32.mrf.mxu0
        %1752 = vmatprep.mubr.bf16.mxu0 0
        %1753 = vmatmul.mubr.bf16.gmra.mxu0 %v1616
        %v1754 = vpop.f32.mrf.mxu0
        %v1755 = vadd.f32 0.0, %v1754
        %v1756 = vpop.f32.mrf.mxu0
        %v1757 = vpop.f32.mrf.mxu0
        %v1758 = vadd.f32 0.0, %v1757
        %v1759 = vpop.f32.mrf.mxu0
        %1760 = vmatprep.mubr.bf16.mxu0 0
        %1761 = vmatmul.mubr.bf16.gmra.mxu0 %v1617
        %v1762 = vpop.f32.mrf.mxu0
        %v1763 = vadd.f32 0.0, %v1762
        %v1764 = vpop.f32.mrf.mxu0
        %v1765 = vpop.f32.mrf.mxu0
        %v1766 = vadd.f32 0.0, %v1765
        %v1767 = vpop.f32.mrf.mxu0
        %1768 = vmatprep.mubr.bf16.mxu0 0
        %1769 = vmatmul.mubr.bf16.gmra.mxu0 %v1618
        %v1770 = vpop.f32.mrf.mxu0
        %v1771 = vadd.f32 0.0, %v1770
        %v1772 = vpop.f32.mrf.mxu0
        %v1773 = vpop.f32.mrf.mxu0
        %v1774 = vadd.f32 0.0, %v1773
        %v1775 = vpop.f32.mrf.mxu0
        %1776 = vmatprep.mubr.bf16.mxu0 0
        %1777 = vmatmul.mubr.bf16.gmra.mxu0 %v1619
        %v1778 = vpop.f32.mrf.mxu0
        %v1779 = vadd.f32 0.0, %v1778
        %v1780 = vpop.f32.mrf.mxu0
        %v1781 = vpop.f32.mrf.mxu0
        %v1782 = vadd.f32 0.0, %v1781
        %v1783 = vpop.f32.mrf.mxu0
        %1784 = vmatprep.mubr.bf16.mxu0 0
        %1785 = vmatmul.mubr.bf16.gmra.mxu0 %v1620
        %v1786 = vpop.f32.mrf.mxu0
        %v1787 = vadd.f32 0.0, %v1786
        %v1788 = vpop.f32.mrf.mxu0
        %v1789 = vpop.f32.mrf.mxu0
        %v1790 = vadd.f32 0.0, %v1789
        %v1791 = vpop.f32.mrf.mxu0
        %1792 = vmatprep.mubr.bf16.mxu0 0
        %1793 = vmatmul.mubr.bf16.gmra.mxu0 %v1621
        %v1794 = vpop.f32.mrf.mxu0
        %v1795 = vadd.f32 0.0, %v1794
        %v1796 = vpop.f32.mrf.mxu0
        %v1797 = vpop.f32.mrf.mxu0
        %v1798 = vadd.f32 0.0, %v1797
        %v1799 = vpop.f32.mrf.mxu0
        %1800 = vmatprep.mubr.bf16.mxu0 0
        %1801 = vmatmul.mubr.bf16.gmra.mxu0 %v1622
        %v1802 = vpop.f32.mrf.mxu0
        %v1803 = vadd.f32 0.0, %v1802
        %v1804 = vpop.f32.mrf.mxu0
        %v1805 = vpop.f32.mrf.mxu0
        %v1806 = vadd.f32 0.0, %v1805
        %v1807 = vpop.f32.mrf.mxu0
        %1808 = vmatprep.mubr.bf16.mxu0 0
        %1809 = vmatmul.mubr.bf16.gmra.mxu0 %v1623
        %v1810 = vpop.f32.mrf.mxu0
        %v1811 = vadd.f32 0.0, %v1810
        %v1812 = vpop.f32.mrf.mxu0
        %v1813 = vpop.f32.mrf.mxu0
        %v1814 = vadd.f32 0.0, %v1813
        %v1815 = vpop.f32.mrf.mxu0
        %1816 = vmatprep.mubr.bf16.mxu0 0
        %1817 = vmatmul.mubr.bf16.gmra.mxu0 %v1624
        %v1818 = vpop.f32.mrf.mxu0
        %v1819 = vadd.f32 0.0, %v1818
        %v1820 = vpop.f32.mrf.mxu0
        %v1821 = vpop.f32.mrf.mxu0
        %v1822 = vadd.f32 0.0, %v1821
        %v1823 = vpop.f32.mrf.mxu0
        %1824 = vmatprep.mubr.bf16.mxu0 0
        %1825 = vmatmul.mubr.bf16.gmra.mxu0 %v1625
        %v1826 = vpop.f32.mrf.mxu0
        %v1827 = vadd.f32 0.0, %v1826
        %v1828 = vpop.f32.mrf.mxu0
        %v1829 = vpop.f32.mrf.mxu0
        %v1830 = vpop.f32.mrf.mxu0
        %1831 = vdwg.mxu0
        %v1832 = vadd.f32 %v1626, %v1747
        %v1833 = vadd.f32 %v1627, %v1750
        %v1834 = vadd.f32 %v1628, %v1755
        %v1835 = vadd.f32 %v1629, %v1758
        %v1836 = vadd.f32 %v1630, %v1763
        %v1837 = vadd.f32 %v1631, %v1766
        %v1838 = vadd.f32 %v1632, %v1771
        %v1839 = vadd.f32 %v1633, %v1774
        %v1840 = vadd.f32 %v1634, %v1779
        %v1841 = vadd.f32 %v1635, %v1782
        %v1842 = vadd.f32 %v1636, %v1787
        %v1843 = vadd.f32 %v1637, %v1790
        %v1844 = vadd.f32 %v1638, %v1795
        %v1845 = vadd.f32 %v1639, %v1798
        %v1846 = vadd.f32 %v1640, %v1803
        %v1847 = vadd.f32 %v1641, %v1806
        %v1848 = vadd.f32 %v1642, %v1811
        %v1849 = vadd.f32 %v1643, %v1814
        %v1850 = vadd.f32 %v1644, %v1819
        %v1851 = vadd.f32 %v1645, %v1822
        %v1852 = vadd.f32 %v1646, %v1827
        %1853 = vst [vmem:[#allocation2] sm:$0xff] %v1832
        %1854 = vst [vmem:[#allocation2 + $0x8] sm:$0xff] %v1833
        %1855 = vst [vmem:[#allocation2 + $0x10] sm:$0xff] %v1834
        %1856 = vst [vmem:[#allocation2 + $0x18] sm:$0xff] %v1835
        %1857 = vst [vmem:[#allocation2 + $0x20] sm:$0xff] %v1836
        %1858 = vst [vmem:[#allocation2 + $0x28] sm:$0xff] %v1837
        %1859 = vst [vmem:[#allocation2 + $0x30] sm:$0xff] %v1838
        %1860 = vst [vmem:[#allocation2 + $0x38] sm:$0xff] %v1839
        %1861 = vst [vmem:[#allocation2 + $0x40] sm:$0xff] %v1840
        %1862 = vst [vmem:[#allocation2 + $0x48] sm:$0xff] %v1841
        %1863 = vst [vmem:[#allocation2 + $0x50] sm:$0xff] %v1842
        %1864 = vst [vmem:[#allocation2 + $0x58] sm:$0xff] %v1843
        %1865 = vst [vmem:[#allocation2 + $0x60] sm:$0xff] %v1844
        %1866 = vst [vmem:[#allocation2 + $0x68] sm:$0xff] %v1845
        %1867 = vst [vmem:[#allocation2 + $0x70] sm:$0xff] %v1846
        %1868 = vst [vmem:[#allocation2 + $0x78] sm:$0xff] %v1847
        %1869 = vst [vmem:[#allocation2 + $0x80] sm:$0xff] %v1848
        %1870 = vst [vmem:[#allocation2 + $0x88] sm:$0xff] %v1849
        %1871 = vst [vmem:[#allocation2 + $0x90] sm:$0xff] %v1850
        %1872 = vst [vmem:[#allocation2 + $0x98] sm:$0xff] %v1851
        %1873 = vst [vmem:[#allocation2 + $0xa0] sm:$0x3f] %v1852
        %v1874 = vld [vmem:[%s967 + $0xe] sm:$0xff]
        %v1875 = vld [vmem:[%s967 + $0x16] sm:$0xff]
        %v1876 = vld [vmem:[%s967 + $0x1e] sm:$0xff]
        %v1877 = vld [vmem:[%s967 + $0x26] sm:$0xff]
        %v1878 = vld [vmem:[%s967 + $0x2e] sm:$0xff]
        %v1879 = vld [vmem:[%s967 + $0x36] sm:$0xff]
        %v1880 = vld [vmem:[%s967 + $0x3e] sm:$0xff]
        %v1881 = vld [vmem:[%s967 + $0x46] sm:$0xff]
        %v1882 = vld [vmem:[%s967 + $0x4e] sm:$0xff]
        %v1883 = vld [vmem:[%s967 + $0x56] sm:$0xff]
        %v1884 = vld [vmem:[%s967 + $0x5e] sm:$0xff]
        %v1885 = vld [vmem:[%s967 + $0x66] sm:$0xff]
        %v1886 = vld [vmem:[%s967 + $0x6e] sm:$0xff]
        %v1887 = vld [vmem:[%s967 + $0x76] sm:$0xff]
        %v1888 = vld [vmem:[%s967 + $0x7e] sm:$0xff]
        %v1889 = vld [vmem:[%s967 + $0x86] sm:$0xff]
        %v1890 = vld [vmem:[%s967 + $0x8e] sm:$0xff]
        %v1891 = vld [vmem:[%s967 + $0x96] sm:$0xff]
        %v1892 = vld [vmem:[%s967 + $0x9e] sm:$0xff]
        %v1893 = vld [vmem:[%s967 + $0xa6] sm:$0xff]
        %v1894 = vld [vmem:[%s967 + $0xae] sm:$0x3f]
        %v1895 = vpack.c.bf16 %v1875, %v1874
        %v1896 = vpack.c.bf16 %v1877, %v1876
        %v1897 = vpack.c.bf16 %v1879, %v1878
        %v1898 = vpack.c.bf16 %v1881, %v1880
        %v1899 = vpack.c.bf16 %v1883, %v1882
        %v1900 = vpack.c.bf16 %v1885, %v1884
        %v1901 = vpack.c.bf16 %v1887, %v1886
        %v1902 = vpack.c.bf16 %v1889, %v1888
        %v1903 = vpack.c.bf16 %v1891, %v1890
        %v1904 = vpack.c.bf16 %v1893, %v1892
        %v1905 = vpack.c.bf16 %v1894, %v1894
        %v1906 = vld [vmem:[#allocation2] sm:$0xff]
        %v1907 = vld [vmem:[#allocation2 + $0x8] sm:$0xff]
        %v1908 = vld [vmem:[#allocation2 + $0x10] sm:$0xff]
        %v1909 = vld [vmem:[#allocation2 + $0x18] sm:$0xff]
        %v1910 = vld [vmem:[#allocation2 + $0x20] sm:$0xff]
        %v1911 = vld [vmem:[#allocation2 + $0x28] sm:$0xff]
        %v1912 = vld [vmem:[#allocation2 + $0x30] sm:$0xff]
        %v1913 = vld [vmem:[#allocation2 + $0x38] sm:$0xff]
        %v1914 = vld [vmem:[#allocation2 + $0x40] sm:$0xff]
        %v1915 = vld [vmem:[#allocation2 + $0x48] sm:$0xff]
        %v1916 = vld [vmem:[#allocation2 + $0x50] sm:$0xff]
        %v1917 = vld [vmem:[#allocation2 + $0x58] sm:$0xff]
        %v1918 = vld [vmem:[#allocation2 + $0x60] sm:$0xff]
        %v1919 = vld [vmem:[#allocation2 + $0x68] sm:$0xff]
        %v1920 = vld [vmem:[#allocation2 + $0x70] sm:$0xff]
        %v1921 = vld [vmem:[#allocation2 + $0x78] sm:$0xff]
        %v1922 = vld [vmem:[#allocation2 + $0x80] sm:$0xff]
        %v1923 = vld [vmem:[#allocation2 + $0x88] sm:$0xff]
        %v1924 = vld [vmem:[#allocation2 + $0x90] sm:$0xff]
        %v1925 = vld [vmem:[#allocation2 + $0x98] sm:$0xff]
        %v1926 = vld [vmem:[#allocation2 + $0xa0] sm:$0x3f]
        %s1927 = scalar_lea.vmem %s974, 192 [#allocation4]
        %v1928 = vld [vmem:[%s1927] sm:$0xf]
        %v1929 = vld [vmem:[%s1927 + $0x4] sm:$0xf]
        %v1930 = vld [vmem:[%s1927 + $0x8] sm:$0xf]
        %v1931 = vld [vmem:[%s1927 + $0xc] sm:$0xf]
        %v1932 = vld [vmem:[%s1927 + $0x10] sm:$0xf]
        %v1933 = vld [vmem:[%s1927 + $0x14] sm:$0xf]
        %v1934 = vld [vmem:[%s1927 + $0x18] sm:$0xf]
        %v1935 = vld [vmem:[%s1927 + $0x1c] sm:$0xf]
        %v1936 = vld [vmem:[%s1927 + $0x20] sm:$0xf]
        %v1937 = vld [vmem:[%s1927 + $0x24] sm:$0xf]
        %v1938 = vld [vmem:[%s1927 + $0x28] sm:$0xf]
        %v1939 = vld [vmem:[%s1927 + $0x2c] sm:$0xf]
        %v1940 = vld [vmem:[%s1927 + $0x30] sm:$0xf]
        %v1941 = vld [vmem:[%s1927 + $0x34] sm:$0xf]
        %v1942 = vld [vmem:[%s1927 + $0x38] sm:$0xf]
        %v1943 = vld [vmem:[%s1927 + $0x3c] sm:$0xf]
        %v1960 = vunpack.c.l.b16 %v1928
        %v1961 = vunpack.c.l.b16 %v1929
        %v1962 = vunpack.c.l.b16 %v1930
        %v1963 = vunpack.c.l.b16 %v1931
        %v1964 = vunpack.c.l.b16 %v1932
        %v1965 = vunpack.c.l.b16 %v1933
        %v1966 = vunpack.c.l.b16 %v1934
        %v1967 = vunpack.c.l.b16 %v1935
        %v1968 = vunpack.c.l.b16 %v1936
        %v1969 = vunpack.c.l.b16 %v1937
        %v1970 = vunpack.c.l.b16 %v1938
        %v1971 = vunpack.c.l.b16 %v1939
        %v1972 = vunpack.c.l.b16 %v1940
        %v1973 = vunpack.c.l.b16 %v1941
        %v1974 = vunpack.c.l.b16 %v1942
        %v1975 = vunpack.c.l.b16 %v1943
        %v1976 = vpack.c.b16 %v1961, %v1960
        %v1977 = vpack.c.b16 %v1963, %v1962
        %v1978 = vpack.c.b16 %v1965, %v1964
        %v1979 = vpack.c.b16 %v1967, %v1966
        %v1980 = vpack.c.b16 %v1969, %v1968
        %v1981 = vpack.c.b16 %v1971, %v1970
        %v1982 = vpack.c.b16 %v1973, %v1972
        %v1983 = vpack.c.b16 %v1975, %v1974
        %1992 = vmatprep.subr.bf16.mxu0 0
        %1993 = vmatpush1.bf16.msra.mxu0 %v1983
        %1994 = vmatprep.subr.bf16.mxu0 0
        %1995 = vmatpush1.bf16.msra.mxu0 %v1982
        %1996 = vmatprep.subr.bf16.mxu0 0
        %1997 = vmatpush1.bf16.msra.mxu0 %v1981
        %1998 = vmatprep.subr.bf16.mxu0 0
        %1999 = vmatpush1.bf16.msra.mxu0 %v1980
        %2000 = vmatprep.subr.bf16.mxu0 0
        %2001 = vmatpush1.bf16.msra.mxu0 %v1979
        %2002 = vmatprep.subr.bf16.mxu0 0
        %2003 = vmatpush1.bf16.msra.mxu0 %v1978
        %2004 = vmatprep.subr.bf16.mxu0 0
        %2005 = vmatpush1.bf16.msra.mxu0 %v1977
        %2006 = vmatprep.subr.bf16.mxu0 0
        %2007 = vmatpush1.bf16.msra.mxu0 %v1976
        %2008 = vmatprep.subr.bf16.mxu0 0
        %2009 = vmatpush2.bf16.msra.mxu0 0
        %2010 = vmatprep.subr.bf16.mxu0 0
        %2011 = vmatpush2.bf16.msra.mxu0 0
        %2012 = vmatprep.subr.bf16.mxu0 0
        %2013 = vmatpush2.bf16.msra.mxu0 0
        %2014 = vmatprep.subr.bf16.mxu0 0
        %2015 = vmatpush2.bf16.msra.mxu0 0
        %2016 = vmatprep.subr.bf16.mxu0 0
        %2017 = vmatpush2.bf16.msra.mxu0 0
        %2018 = vmatprep.subr.bf16.mxu0 0
        %2019 = vmatpush2.bf16.msra.mxu0 0
        %2020 = vmatprep.subr.bf16.mxu0 0
        %2021 = vmatpush2.bf16.msra.mxu0 0
        %2022 = vmatprep.subr.bf16.mxu0 0
        %2023 = vmatpush2.bf16.msra.mxu0 0
        %2024 = vmatprep.mubr.bf16.mxu0 0
        %2025 = vmatmul.mubr.bf16.gmra.mxu0 %v1895
        %v2026 = vpop.f32.mrf.mxu0
        %v2027 = vadd.f32 0.0, %v2026
        %v2028 = vpop.f32.mrf.mxu0
        %v2029 = vpop.f32.mrf.mxu0
        %v2030 = vadd.f32 0.0, %v2029
        %v2031 = vpop.f32.mrf.mxu0
        %2032 = vmatprep.mubr.bf16.mxu0 0
        %2033 = vmatmul.mubr.bf16.gmra.mxu0 %v1896
        %v2034 = vpop.f32.mrf.mxu0
        %v2035 = vadd.f32 0.0, %v2034
        %v2036 = vpop.f32.mrf.mxu0
        %v2037 = vpop.f32.mrf.mxu0
        %v2038 = vadd.f32 0.0, %v2037
        %v2039 = vpop.f32.mrf.mxu0
        %2040 = vmatprep.mubr.bf16.mxu0 0
        %2041 = vmatmul.mubr.bf16.gmra.mxu0 %v1897
        %v2042 = vpop.f32.mrf.mxu0
        %v2043 = vadd.f32 0.0, %v2042
        %v2044 = vpop.f32.mrf.mxu0
        %v2045 = vpop.f32.mrf.mxu0
        %v2046 = vadd.f32 0.0, %v2045
        %v2047 = vpop.f32.mrf.mxu0
        %2048 = vmatprep.mubr.bf16.mxu0 0
        %2049 = vmatmul.mubr.bf16.gmra.mxu0 %v1898
        %v2050 = vpop.f32.mrf.mxu0
        %v2051 = vadd.f32 0.0, %v2050
        %v2052 = vpop.f32.mrf.mxu0
        %v2053 = vpop.f32.mrf.mxu0
        %v2054 = vadd.f32 0.0, %v2053
        %v2055 = vpop.f32.mrf.mxu0
        %2056 = vmatprep.mubr.bf16.mxu0 0
        %2057 = vmatmul.mubr.bf16.gmra.mxu0 %v1899
        %v2058 = vpop.f32.mrf.mxu0
        %v2059 = vadd.f32 0.0, %v2058
        %v2060 = vpop.f32.mrf.mxu0
        %v2061 = vpop.f32.mrf.mxu0
        %v2062 = vadd.f32 0.0, %v2061
        %v2063 = vpop.f32.mrf.mxu0
        %2064 = vmatprep.mubr.bf16.mxu0 0
        %2065 = vmatmul.mubr.bf16.gmra.mxu0 %v1900
        %v2066 = vpop.f32.mrf.mxu0
        %v2067 = vadd.f32 0.0, %v2066
        %v2068 = vpop.f32.mrf.mxu0
        %v2069 = vpop.f32.mrf.mxu0
        %v2070 = vadd.f32 0.0, %v2069
        %v2071 = vpop.f32.mrf.mxu0
        %2072 = vmatprep.mubr.bf16.mxu0 0
        %2073 = vmatmul.mubr.bf16.gmra.mxu0 %v1901
        %v2074 = vpop.f32.mrf.mxu0
        %v2075 = vadd.f32 0.0, %v2074
        %v2076 = vpop.f32.mrf.mxu0
        %v2077 = vpop.f32.mrf.mxu0
        %v2078 = vadd.f32 0.0, %v2077
        %v2079 = vpop.f32.mrf.mxu0
        %2080 = vmatprep.mubr.bf16.mxu0 0
        %2081 = vmatmul.mubr.bf16.gmra.mxu0 %v1902
        %v2082 = vpop.f32.mrf.mxu0
        %v2083 = vadd.f32 0.0, %v2082
        %v2084 = vpop.f32.mrf.mxu0
        %v2085 = vpop.f32.mrf.mxu0
        %v2086 = vadd.f32 0.0, %v2085
        %v2087 = vpop.f32.mrf.mxu0
        %2088 = vmatprep.mubr.bf16.mxu0 0
        %2089 = vmatmul.mubr.bf16.gmra.mxu0 %v1903
        %v2090 = vpop.f32.mrf.mxu0
        %v2091 = vadd.f32 0.0, %v2090
        %v2092 = vpop.f32.mrf.mxu0
        %v2093 = vpop.f32.mrf.mxu0
        %v2094 = vadd.f32 0.0, %v2093
        %v2095 = vpop.f32.mrf.mxu0
        %2096 = vmatprep.mubr.bf16.mxu0 0
        %2097 = vmatmul.mubr.bf16.gmra.mxu0 %v1904
        %v2098 = vpop.f32.mrf.mxu0
        %v2099 = vadd.f32 0.0, %v2098
        %v2100 = vpop.f32.mrf.mxu0
        %v2101 = vpop.f32.mrf.mxu0
        %v2102 = vadd.f32 0.0, %v2101
        %v2103 = vpop.f32.mrf.mxu0
        %2104 = vmatprep.mubr.bf16.mxu0 0
        %2105 = vmatmul.mubr.bf16.gmra.mxu0 %v1905
        %v2106 = vpop.f32.mrf.mxu0
        %v2107 = vadd.f32 0.0, %v2106
        %v2108 = vpop.f32.mrf.mxu0
        %v2109 = vpop.f32.mrf.mxu0
        %v2110 = vpop.f32.mrf.mxu0
        %2111 = vdwg.mxu0
        %v2112 = vadd.f32 %v1906, %v2027
        %v2113 = vadd.f32 %v1907, %v2030
        %v2114 = vadd.f32 %v1908, %v2035
        %v2115 = vadd.f32 %v1909, %v2038
        %v2116 = vadd.f32 %v1910, %v2043
        %v2117 = vadd.f32 %v1911, %v2046
        %v2118 = vadd.f32 %v1912, %v2051
        %v2119 = vadd.f32 %v1913, %v2054
        %v2120 = vadd.f32 %v1914, %v2059
        %v2121 = vadd.f32 %v1915, %v2062
        %v2122 = vadd.f32 %v1916, %v2067
        %v2123 = vadd.f32 %v1917, %v2070
        %v2124 = vadd.f32 %v1918, %v2075
        %v2125 = vadd.f32 %v1919, %v2078
        %v2126 = vadd.f32 %v1920, %v2083
        %v2127 = vadd.f32 %v1921, %v2086
        %v2128 = vadd.f32 %v1922, %v2091
        %v2129 = vadd.f32 %v1923, %v2094
        %v2130 = vadd.f32 %v1924, %v2099
        %v2131 = vadd.f32 %v1925, %v2102
        %v2132 = vadd.f32 %v1926, %v2107
        %2133 = vst [vmem:[#allocation2] sm:$0xff] %v2112
        %2134 = vst [vmem:[#allocation2 + $0x8] sm:$0xff] %v2113
        %2135 = vst [vmem:[#allocation2 + $0x10] sm:$0xff] %v2114
        %2136 = vst [vmem:[#allocation2 + $0x18] sm:$0xff] %v2115
        %2137 = vst [vmem:[#allocation2 + $0x20] sm:$0xff] %v2116
        %2138 = vst [vmem:[#allocation2 + $0x28] sm:$0xff] %v2117
        %2139 = vst [vmem:[#allocation2 + $0x30] sm:$0xff] %v2118
        %2140 = vst [vmem:[#allocation2 + $0x38] sm:$0xff] %v2119
        %2141 = vst [vmem:[#allocation2 + $0x40] sm:$0xff] %v2120
        %2142 = vst [vmem:[#allocation2 + $0x48] sm:$0xff] %v2121
        %2143 = vst [vmem:[#allocation2 + $0x50] sm:$0xff] %v2122
        %2144 = vst [vmem:[#allocation2 + $0x58] sm:$0xff] %v2123
        %2145 = vst [vmem:[#allocation2 + $0x60] sm:$0xff] %v2124
        %2146 = vst [vmem:[#allocation2 + $0x68] sm:$0xff] %v2125
        %2147 = vst [vmem:[#allocation2 + $0x70] sm:$0xff] %v2126
        %2148 = vst [vmem:[#allocation2 + $0x78] sm:$0xff] %v2127
        %2149 = vst [vmem:[#allocation2 + $0x80] sm:$0xff] %v2128
        %2150 = vst [vmem:[#allocation2 + $0x88] sm:$0xff] %v2129
        %2151 = vst [vmem:[#allocation2 + $0x90] sm:$0xff] %v2130
        %2152 = vst [vmem:[#allocation2 + $0x98] sm:$0xff] %v2131
        %2153 = vst [vmem:[#allocation2 + $0xa0] sm:$0x3f] %v2132
        %v2154 = vld [vmem:[%s967 + $0xf] sm:$0xff]
        %v2155 = vld [vmem:[%s967 + $0x17] sm:$0xff]
        %v2156 = vld [vmem:[%s967 + $0x1f] sm:$0xff]
        %v2157 = vld [vmem:[%s967 + $0x27] sm:$0xff]
        %v2158 = vld [vmem:[%s967 + $0x2f] sm:$0xff]
        %v2159 = vld [vmem:[%s967 + $0x37] sm:$0xff]
        %v2160 = vld [vmem:[%s967 + $0x3f] sm:$0xff]
        %v2161 = vld [vmem:[%s967 + $0x47] sm:$0xff]
        %v2162 = vld [vmem:[%s967 + $0x4f] sm:$0xff]
        %v2163 = vld [vmem:[%s967 + $0x57] sm:$0xff]
        %v2164 = vld [vmem:[%s967 + $0x5f] sm:$0xff]
        %v2165 = vld [vmem:[%s967 + $0x67] sm:$0xff]
        %v2166 = vld [vmem:[%s967 + $0x6f] sm:$0xff]
        %v2167 = vld [vmem:[%s967 + $0x77] sm:$0xff]
        %v2168 = vld [vmem:[%s967 + $0x7f] sm:$0xff]
        %v2169 = vld [vmem:[%s967 + $0x87] sm:$0xff]
        %v2170 = vld [vmem:[%s967 + $0x8f] sm:$0xff]
        %v2171 = vld [vmem:[%s967 + $0x97] sm:$0xff]
        %v2172 = vld [vmem:[%s967 + $0x9f] sm:$0xff]
        %v2173 = vld [vmem:[%s967 + $0xa7] sm:$0xff]
        %v2174 = vld [vmem:[%s967 + $0xaf] sm:$0x3f]
        %v2175 = vpack.c.bf16 %v2155, %v2154
        %v2176 = vpack.c.bf16 %v2157, %v2156
        %v2177 = vpack.c.bf16 %v2159, %v2158
        %v2178 = vpack.c.bf16 %v2161, %v2160
        %v2179 = vpack.c.bf16 %v2163, %v2162
        %v2180 = vpack.c.bf16 %v2165, %v2164
        %v2181 = vpack.c.bf16 %v2167, %v2166
        %v2182 = vpack.c.bf16 %v2169, %v2168
        %v2183 = vpack.c.bf16 %v2171, %v2170
        %v2184 = vpack.c.bf16 %v2173, %v2172
        %v2185 = vpack.c.bf16 %v2174, %v2174
        %v2186 = vld [vmem:[#allocation2] sm:$0xff]
        %v2187 = vld [vmem:[#allocation2 + $0x8] sm:$0xff]
        %v2188 = vld [vmem:[#allocation2 + $0x10] sm:$0xff]
        %v2189 = vld [vmem:[#allocation2 + $0x18] sm:$0xff]
        %v2190 = vld [vmem:[#allocation2 + $0x20] sm:$0xff]
        %v2191 = vld [vmem:[#allocation2 + $0x28] sm:$0xff]
        %v2192 = vld [vmem:[#allocation2 + $0x30] sm:$0xff]
        %v2193 = vld [vmem:[#allocation2 + $0x38] sm:$0xff]
        %v2194 = vld [vmem:[#allocation2 + $0x40] sm:$0xff]
        %v2195 = vld [vmem:[#allocation2 + $0x48] sm:$0xff]
        %v2196 = vld [vmem:[#allocation2 + $0x50] sm:$0xff]
        %v2197 = vld [vmem:[#allocation2 + $0x58] sm:$0xff]
        %v2198 = vld [vmem:[#allocation2 + $0x60] sm:$0xff]
        %v2199 = vld [vmem:[#allocation2 + $0x68] sm:$0xff]
        %v2200 = vld [vmem:[#allocation2 + $0x70] sm:$0xff]
        %v2201 = vld [vmem:[#allocation2 + $0x78] sm:$0xff]
        %v2202 = vld [vmem:[#allocation2 + $0x80] sm:$0xff]
        %v2203 = vld [vmem:[#allocation2 + $0x88] sm:$0xff]
        %v2204 = vld [vmem:[#allocation2 + $0x90] sm:$0xff]
        %v2205 = vld [vmem:[#allocation2 + $0x98] sm:$0xff]
        %v2206 = vld [vmem:[#allocation2 + $0xa0] sm:$0x3f]
        %s2207 = scalar_lea.vmem %s974, 256 [#allocation4]
        %v2208 = vld [vmem:[%s2207] sm:$0xf]
        %v2209 = vld [vmem:[%s2207 + $0x4] sm:$0xf]
        %v2210 = vld [vmem:[%s2207 + $0x8] sm:$0xf]
        %v2211 = vld [vmem:[%s2207 + $0xc] sm:$0xf]
        %v2212 = vld [vmem:[%s2207 + $0x10] sm:$0xf]
        %v2213 = vld [vmem:[%s2207 + $0x14] sm:$0xf]
        %v2214 = vld [vmem:[%s2207 + $0x18] sm:$0xf]
        %v2215 = vld [vmem:[%s2207 + $0x1c] sm:$0xf]
        %v2216 = vld [vmem:[%s2207 + $0x20] sm:$0xf]
        %v2217 = vld [vmem:[%s2207 + $0x24] sm:$0xf]
        %v2218 = vld [vmem:[%s2207 + $0x28] sm:$0xf]
        %v2219 = vld [vmem:[%s2207 + $0x2c] sm:$0xf]
        %v2220 = vld [vmem:[%s2207 + $0x30] sm:$0xf]
        %v2221 = vld [vmem:[%s2207 + $0x34] sm:$0xf]
        %v2222 = vld [vmem:[%s2207 + $0x38] sm:$0xf]
        %v2223 = vld [vmem:[%s2207 + $0x3c] sm:$0xf]
        %v2240 = vunpack.c.l.b16 %v2208
        %v2241 = vunpack.c.l.b16 %v2209
        %v2242 = vunpack.c.l.b16 %v2210
        %v2243 = vunpack.c.l.b16 %v2211
        %v2244 = vunpack.c.l.b16 %v2212
        %v2245 = vunpack.c.l.b16 %v2213
        %v2246 = vunpack.c.l.b16 %v2214
        %v2247 = vunpack.c.l.b16 %v2215
        %v2248 = vunpack.c.l.b16 %v2216
        %v2249 = vunpack.c.l.b16 %v2217
        %v2250 = vunpack.c.l.b16 %v2218
        %v2251 = vunpack.c.l.b16 %v2219
        %v2252 = vunpack.c.l.b16 %v2220
        %v2253 = vunpack.c.l.b16 %v2221
        %v2254 = vunpack.c.l.b16 %v2222
        %v2255 = vunpack.c.l.b16 %v2223
        %v2256 = vpack.c.b16 %v2241, %v2240
        %v2257 = vpack.c.b16 %v2243, %v2242
        %v2258 = vpack.c.b16 %v2245, %v2244
        %v2259 = vpack.c.b16 %v2247, %v2246
        %v2260 = vpack.c.b16 %v2249, %v2248
        %v2261 = vpack.c.b16 %v2251, %v2250
        %v2262 = vpack.c.b16 %v2253, %v2252
        %v2263 = vpack.c.b16 %v2255, %v2254
        %2272 = vmatprep.subr.bf16.mxu0 0
        %2273 = vmatpush1.bf16.msra.mxu0 %v2263
        %2274 = vmatprep.subr.bf16.mxu0 0
        %2275 = vmatpush1.bf16.msra.mxu0 %v2262
        %2276 = vmatprep.subr.bf16.mxu0 0
        %2277 = vmatpush1.bf16.msra.mxu0 %v2261
        %2278 = vmatprep.subr.bf16.mxu0 0
        %2279 = vmatpush1.bf16.msra.mxu0 %v2260
        %2280 = vmatprep.subr.bf16.mxu0 0
        %2281 = vmatpush1.bf16.msra.mxu0 %v2259
        %2282 = vmatprep.subr.bf16.mxu0 0
        %2283 = vmatpush1.bf16.msra.mxu0 %v2258
        %2284 = vmatprep.subr.bf16.mxu0 0
        %2285 = vmatpush1.bf16.msra.mxu0 %v2257
        %2286 = vmatprep.subr.bf16.mxu0 0
        %2287 = vmatpush1.bf16.msra.mxu0 %v2256
        %2288 = vmatprep.subr.bf16.mxu0 0
        %2289 = vmatpush2.bf16.msra.mxu0 0
        %2290 = vmatprep.subr.bf16.mxu0 0
        %2291 = vmatpush2.bf16.msra.mxu0 0
        %2292 = vmatprep.subr.bf16.mxu0 0
        %2293 = vmatpush2.bf16.msra.mxu0 0
        %2294 = vmatprep.subr.bf16.mxu0 0
        %2295 = vmatpush2.bf16.msra.mxu0 0
        %2296 = vmatprep.subr.bf16.mxu0 0
        %2297 = vmatpush2.bf16.msra.mxu0 0
        %2298 = vmatprep.subr.bf16.mxu0 0
        %2299 = vmatpush2.bf16.msra.mxu0 0
        %2300 = vmatprep.subr.bf16.mxu0 0
        %2301 = vmatpush2.bf16.msra.mxu0 0
        %2302 = vmatprep.subr.bf16.mxu0 0
        %2303 = vmatpush2.bf16.msra.mxu0 0
        %2304 = vmatprep.mubr.bf16.mxu0 0
        %2305 = vmatmul.mubr.bf16.gmra.mxu0 %v2175
        %v2306 = vpop.f32.mrf.mxu0
        %v2307 = vadd.f32 0.0, %v2306
        %v2308 = vpop.f32.mrf.mxu0
        %v2309 = vpop.f32.mrf.mxu0
        %v2310 = vadd.f32 0.0, %v2309
        %v2311 = vpop.f32.mrf.mxu0
        %2312 = vmatprep.mubr.bf16.mxu0 0
        %2313 = vmatmul.mubr.bf16.gmra.mxu0 %v2176
        %v2314 = vpop.f32.mrf.mxu0
        %v2315 = vadd.f32 0.0, %v2314
        %v2316 = vpop.f32.mrf.mxu0
        %v2317 = vpop.f32.mrf.mxu0
        %v2318 = vadd.f32 0.0, %v2317
        %v2319 = vpop.f32.mrf.mxu0
        %2320 = vmatprep.mubr.bf16.mxu0 0
        %2321 = vmatmul.mubr.bf16.gmra.mxu0 %v2177
        %v2322 = vpop.f32.mrf.mxu0
        %v2323 = vadd.f32 0.0, %v2322
        %v2324 = vpop.f32.mrf.mxu0
        %v2325 = vpop.f32.mrf.mxu0
        %v2326 = vadd.f32 0.0, %v2325
        %v2327 = vpop.f32.mrf.mxu0
        %2328 = vmatprep.mubr.bf16.mxu0 0
        %2329 = vmatmul.mubr.bf16.gmra.mxu0 %v2178
        %v2330 = vpop.f32.mrf.mxu0
        %v2331 = vadd.f32 0.0, %v2330
        %v2332 = vpop.f32.mrf.mxu0
        %v2333 = vpop.f32.mrf.mxu0
        %v2334 = vadd.f32 0.0, %v2333
        %v2335 = vpop.f32.mrf.mxu0
        %2336 = vmatprep.mubr.bf16.mxu0 0
        %2337 = vmatmul.mubr.bf16.gmra.mxu0 %v2179
        %v2338 = vpop.f32.mrf.mxu0
        %v2339 = vadd.f32 0.0, %v2338
        %v2340 = vpop.f32.mrf.mxu0
        %v2341 = vpop.f32.mrf.mxu0
        %v2342 = vadd.f32 0.0, %v2341
        %v2343 = vpop.f32.mrf.mxu0
        %2344 = vmatprep.mubr.bf16.mxu0 0
        %2345 = vmatmul.mubr.bf16.gmra.mxu0 %v2180
        %v2346 = vpop.f32.mrf.mxu0
        %v2347 = vadd.f32 0.0, %v2346
        %v2348 = vpop.f32.mrf.mxu0
        %v2349 = vpop.f32.mrf.mxu0
        %v2350 = vadd.f32 0.0, %v2349
        %v2351 = vpop.f32.mrf.mxu0
        %2352 = vmatprep.mubr.bf16.mxu0 0
        %2353 = vmatmul.mubr.bf16.gmra.mxu0 %v2181
        %v2354 = vpop.f32.mrf.mxu0
        %v2355 = vadd.f32 0.0, %v2354
        %v2356 = vpop.f32.mrf.mxu0
        %v2357 = vpop.f32.mrf.mxu0
        %v2358 = vadd.f32 0.0, %v2357
        %v2359 = vpop.f32.mrf.mxu0
        %2360 = vmatprep.mubr.bf16.mxu0 0
        %2361 = vmatmul.mubr.bf16.gmra.mxu0 %v2182
        %v2362 = vpop.f32.mrf.mxu0
        %v2363 = vadd.f32 0.0, %v2362
        %v2364 = vpop.f32.mrf.mxu0
        %v2365 = vpop.f32.mrf.mxu0
        %v2366 = vadd.f32 0.0, %v2365
        %v2367 = vpop.f32.mrf.mxu0
        %2368 = vmatprep.mubr.bf16.mxu0 0
        %2369 = vmatmul.mubr.bf16.gmra.mxu0 %v2183
        %v2370 = vpop.f32.mrf.mxu0
        %v2371 = vadd.f32 0.0, %v2370
        %v2372 = vpop.f32.mrf.mxu0
        %v2373 = vpop.f32.mrf.mxu0
        %v2374 = vadd.f32 0.0, %v2373
        %v2375 = vpop.f32.mrf.mxu0
        %2376 = vmatprep.mubr.bf16.mxu0 0
        %2377 = vmatmul.mubr.bf16.gmra.mxu0 %v2184
        %v2378 = vpop.f32.mrf.mxu0
        %v2379 = vadd.f32 0.0, %v2378
        %v2380 = vpop.f32.mrf.mxu0
        %v2381 = vpop.f32.mrf.mxu0
        %v2382 = vadd.f32 0.0, %v2381
        %v2383 = vpop.f32.mrf.mxu0
        %2384 = vmatprep.mubr.bf16.mxu0 0
        %2385 = vmatmul.mubr.bf16.gmra.mxu0 %v2185
        %v2386 = vpop.f32.mrf.mxu0
        %v2387 = vadd.f32 0.0, %v2386
        %v2388 = vpop.f32.mrf.mxu0
        %v2389 = vpop.f32.mrf.mxu0
        %v2390 = vpop.f32.mrf.mxu0
        %2391 = vdwg.mxu0
        %v2392 = vadd.f32 %v2186, %v2307
        %v2393 = vadd.f32 %v2187, %v2310
        %v2394 = vadd.f32 %v2188, %v2315
        %v2395 = vadd.f32 %v2189, %v2318
        %v2396 = vadd.f32 %v2190, %v2323
        %v2397 = vadd.f32 %v2191, %v2326
        %v2398 = vadd.f32 %v2192, %v2331
        %v2399 = vadd.f32 %v2193, %v2334
        %v2400 = vadd.f32 %v2194, %v2339
        %v2401 = vadd.f32 %v2195, %v2342
        %v2402 = vadd.f32 %v2196, %v2347
        %v2403 = vadd.f32 %v2197, %v2350
        %v2404 = vadd.f32 %v2198, %v2355
        %v2405 = vadd.f32 %v2199, %v2358
        %v2406 = vadd.f32 %v2200, %v2363
        %v2407 = vadd.f32 %v2201, %v2366
        %v2408 = vadd.f32 %v2202, %v2371
        %v2409 = vadd.f32 %v2203, %v2374
        %v2410 = vadd.f32 %v2204, %v2379
        %v2411 = vadd.f32 %v2205, %v2382
        %v2412 = vadd.f32 %v2206, %v2387
        %2413 = vst [vmem:[#allocation2] sm:$0xff] %v2392
        %2414 = vst [vmem:[#allocation2 + $0x8] sm:$0xff] %v2393
        %2415 = vst [vmem:[#allocation2 + $0x10] sm:$0xff] %v2394
        %2416 = vst [vmem:[#allocation2 + $0x18] sm:$0xff] %v2395
        %2417 = vst [vmem:[#allocation2 + $0x20] sm:$0xff] %v2396
        %2418 = vst [vmem:[#allocation2 + $0x28] sm:$0xff] %v2397
        %2419 = vst [vmem:[#allocation2 + $0x30] sm:$0xff] %v2398
        %2420 = vst [vmem:[#allocation2 + $0x38] sm:$0xff] %v2399
        %2421 = vst [vmem:[#allocation2 + $0x40] sm:$0xff] %v2400
        %2422 = vst [vmem:[#allocation2 + $0x48] sm:$0xff] %v2401
        %2423 = vst [vmem:[#allocation2 + $0x50] sm:$0xff] %v2402
        %2424 = vst [vmem:[#allocation2 + $0x58] sm:$0xff] %v2403
        %2425 = vst [vmem:[#allocation2 + $0x60] sm:$0xff] %v2404
        %2426 = vst [vmem:[#allocation2 + $0x68] sm:$0xff] %v2405
        %2427 = vst [vmem:[#allocation2 + $0x70] sm:$0xff] %v2406
        %2428 = vst [vmem:[#allocation2 + $0x78] sm:$0xff] %v2407
        %2429 = vst [vmem:[#allocation2 + $0x80] sm:$0xff] %v2408
        %2430 = vst [vmem:[#allocation2 + $0x88] sm:$0xff] %v2409
        %2431 = vst [vmem:[#allocation2 + $0x90] sm:$0xff] %v2410
        %2432 = vst [vmem:[#allocation2 + $0x98] sm:$0xff] %v2411
        %2433 = vst [vmem:[#allocation2 + $0xa0] sm:$0x3f] %v2412
        %v2434 = vld [vmem:[%s967 + $0x10] sm:$0xff]
        %v2435 = vld [vmem:[%s967 + $0x18] sm:$0xff]
        %v2436 = vld [vmem:[%s967 + $0x20] sm:$0xff]
        %v2437 = vld [vmem:[%s967 + $0x28] sm:$0xff]
        %v2438 = vld [vmem:[%s967 + $0x30] sm:$0xff]
        %v2439 = vld [vmem:[%s967 + $0x38] sm:$0xff]
        %v2440 = vld [vmem:[%s967 + $0x40] sm:$0xff]
        %v2441 = vld [vmem:[%s967 + $0x48] sm:$0xff]
        %v2442 = vld [vmem:[%s967 + $0x50] sm:$0xff]
        %v2443 = vld [vmem:[%s967 + $0x58] sm:$0xff]
        %v2444 = vld [vmem:[%s967 + $0x60] sm:$0xff]
        %v2445 = vld [vmem:[%s967 + $0x68] sm:$0xff]
        %v2446 = vld [vmem:[%s967 + $0x70] sm:$0xff]
        %v2447 = vld [vmem:[%s967 + $0x78] sm:$0xff]
        %v2448 = vld [vmem:[%s967 + $0x80] sm:$0xff]
        %v2449 = vld [vmem:[%s967 + $0x88] sm:$0xff]
        %v2450 = vld [vmem:[%s967 + $0x90] sm:$0xff]
        %v2451 = vld [vmem:[%s967 + $0x98] sm:$0xff]
        %v2452 = vld [vmem:[%s967 + $0xa0] sm:$0xff]
        %v2453 = vld [vmem:[%s967 + $0xa8] sm:$0xff]
        %v2454 = vld [vmem:[%s967 + $0xb0] sm:$0x3f]
        %v2455 = vpack.c.bf16 %v2435, %v2434
        %v2456 = vpack.c.bf16 %v2437, %v2436
        %v2457 = vpack.c.bf16 %v2439, %v2438
        %v2458 = vpack.c.bf16 %v2441, %v2440
        %v2459 = vpack.c.bf16 %v2443, %v2442
        %v2460 = vpack.c.bf16 %v2445, %v2444
        %v2461 = vpack.c.bf16 %v2447, %v2446
        %v2462 = vpack.c.bf16 %v2449, %v2448
        %v2463 = vpack.c.bf16 %v2451, %v2450
        %v2464 = vpack.c.bf16 %v2453, %v2452
        %v2465 = vpack.c.bf16 %v2454, %v2454
        %v2466 = vld [vmem:[#allocation2] sm:$0xff]
        %v2467 = vld [vmem:[#allocation2 + $0x8] sm:$0xff]
        %v2468 = vld [vmem:[#allocation2 + $0x10] sm:$0xff]
        %v2469 = vld [vmem:[#allocation2 + $0x18] sm:$0xff]
        %v2470 = vld [vmem:[#allocation2 + $0x20] sm:$0xff]
        %v2471 = vld [vmem:[#allocation2 + $0x28] sm:$0xff]
        %v2472 = vld [vmem:[#allocation2 + $0x30] sm:$0xff]
        %v2473 = vld [vmem:[#allocation2 + $0x38] sm:$0xff]
        %v2474 = vld [vmem:[#allocation2 + $0x40] sm:$0xff]
        %v2475 = vld [vmem:[#allocation2 + $0x48] sm:$0xff]
        %v2476 = vld [vmem:[#allocation2 + $0x50] sm:$0xff]
        %v2477 = vld [vmem:[#allocation2 + $0x58] sm:$0xff]
        %v2478 = vld [vmem:[#allocation2 + $0x60] sm:$0xff]
        %v2479 = vld [vmem:[#allocation2 + $0x68] sm:$0xff]
        %v2480 = vld [vmem:[#allocation2 + $0x70] sm:$0xff]
        %v2481 = vld [vmem:[#allocation2 + $0x78] sm:$0xff]
        %v2482 = vld [vmem:[#allocation2 + $0x80] sm:$0xff]
        %v2483 = vld [vmem:[#allocation2 + $0x88] sm:$0xff]
        %v2484 = vld [vmem:[#allocation2 + $0x90] sm:$0xff]
        %v2485 = vld [vmem:[#allocation2 + $0x98] sm:$0xff]
        %v2486 = vld [vmem:[#allocation2 + $0xa0] sm:$0x3f]
        %s2487 = scalar_lea.vmem %s974, 320 [#allocation4]
        %v2488 = vld [vmem:[%s2487] sm:$0xf]
        %v2489 = vld [vmem:[%s2487 + $0x4] sm:$0xf]
        %v2490 = vld [vmem:[%s2487 + $0x8] sm:$0xf]
        %v2491 = vld [vmem:[%s2487 + $0xc] sm:$0xf]
        %v2492 = vld [vmem:[%s2487 + $0x10] sm:$0xf]
        %v2493 = vld [vmem:[%s2487 + $0x14] sm:$0xf]
        %v2494 = vld [vmem:[%s2487 + $0x18] sm:$0xf]
        %v2495 = vld [vmem:[%s2487 + $0x1c] sm:$0xf]
        %v2496 = vld [vmem:[%s2487 + $0x20] sm:$0xf]
        %v2497 = vld [vmem:[%s2487 + $0x24] sm:$0xf]
        %v2498 = vld [vmem:[%s2487 + $0x28] sm:$0xf]
        %v2499 = vld [vmem:[%s2487 + $0x2c] sm:$0xf]
        %v2500 = vld [vmem:[%s2487 + $0x30] sm:$0xf]
        %v2501 = vld [vmem:[%s2487 + $0x34] sm:$0xf]
        %v2502 = vld [vmem:[%s2487 + $0x38] sm:$0xf]
        %v2503 = vld [vmem:[%s2487 + $0x3c] sm:$0xf]
        %v2520 = vunpack.c.l.b16 %v2488
        %v2521 = vunpack.c.l.b16 %v2489
        %v2522 = vunpack.c.l.b16 %v2490
        %v2523 = vunpack.c.l.b16 %v2491
        %v2524 = vunpack.c.l.b16 %v2492
        %v2525 = vunpack.c.l.b16 %v2493
        %v2526 = vunpack.c.l.b16 %v2494
        %v2527 = vunpack.c.l.b16 %v2495
        %v2528 = vunpack.c.l.b16 %v2496
        %v2529 = vunpack.c.l.b16 %v2497
        %v2530 = vunpack.c.l.b16 %v2498
        %v2531 = vunpack.c.l.b16 %v2499
        %v2532 = vunpack.c.l.b16 %v2500
        %v2533 = vunpack.c.l.b16 %v2501
        %v2534 = vunpack.c.l.b16 %v2502
        %v2535 = vunpack.c.l.b16 %v2503
        %v2536 = vpack.c.b16 %v2521, %v2520
        %v2537 = vpack.c.b16 %v2523, %v2522
        %v2538 = vpack.c.b16 %v2525, %v2524
        %v2539 = vpack.c.b16 %v2527, %v2526
        %v2540 = vpack.c.b16 %v2529, %v2528
        %v2541 = vpack.c.b16 %v2531, %v2530
        %v2542 = vpack.c.b16 %v2533, %v2532
        %v2543 = vpack.c.b16 %v2535, %v2534
        %2552 = vmatprep.subr.bf16.mxu0 0
        %2553 = vmatpush1.bf16.msra.mxu0 %v2543
        %2554 = vmatprep.subr.bf16.mxu0 0
        %2555 = vmatpush1.bf16.msra.mxu0 %v2542
        %2556 = vmatprep.subr.bf16.mxu0 0
        %2557 = vmatpush1.bf16.msra.mxu0 %v2541
        %2558 = vmatprep.subr.bf16.mxu0 0
        %2559 = vmatpush1.bf16.msra.mxu0 %v2540
        %2560 = vmatprep.subr.bf16.mxu0 0
        %2561 = vmatpush1.bf16.msra.mxu0 %v2539
        %2562 = vmatprep.subr.bf16.mxu0 0
        %2563 = vmatpush1.bf16.msra.mxu0 %v2538
        %2564 = vmatprep.subr.bf16.mxu0 0
        %2565 = vmatpush1.bf16.msra.mxu0 %v2537
        %2566 = vmatprep.subr.bf16.mxu0 0
        %2567 = vmatpush1.bf16.msra.mxu0 %v2536
        %2568 = vmatprep.subr.bf16.mxu0 0
        %2569 = vmatpush2.bf16.msra.mxu0 0
        %2570 = vmatprep.subr.bf16.mxu0 0
        %2571 = vmatpush2.bf16.msra.mxu0 0
        %2572 = vmatprep.subr.bf16.mxu0 0
        %2573 = vmatpush2.bf16.msra.mxu0 0
        %2574 = vmatprep.subr.bf16.mxu0 0
        %2575 = vmatpush2.bf16.msra.mxu0 0
        %2576 = vmatprep.subr.bf16.mxu0 0
        %2577 = vmatpush2.bf16.msra.mxu0 0
        %2578 = vmatprep.subr.bf16.mxu0 0
        %2579 = vmatpush2.bf16.msra.mxu0 0
        %2580 = vmatprep.subr.bf16.mxu0 0
        %2581 = vmatpush2.bf16.msra.mxu0 0
        %2582 = vmatprep.subr.bf16.mxu0 0
        %2583 = vmatpush2.bf16.msra.mxu0 0
        %2584 = vmatprep.mubr.bf16.mxu0 0
        %2585 = vmatmul.mubr.bf16.gmra.mxu0 %v2455
        %v2586 = vpop.f32.mrf.mxu0
        %v2587 = vadd.f32 0.0, %v2586
        %v2588 = vpop.f32.mrf.mxu0
        %v2589 = vpop.f32.mrf.mxu0
        %v2590 = vadd.f32 0.0, %v2589
        %v2591 = vpop.f32.mrf.mxu0
        %2592 = vmatprep.mubr.bf16.mxu0 0
        %2593 = vmatmul.mubr.bf16.gmra.mxu0 %v2456
        %v2594 = vpop.f32.mrf.mxu0
        %v2595 = vadd.f32 0.0, %v2594
        %v2596 = vpop.f32.mrf.mxu0
        %v2597 = vpop.f32.mrf.mxu0
        %v2598 = vadd.f32 0.0, %v2597
        %v2599 = vpop.f32.mrf.mxu0
        %2600 = vmatprep.mubr.bf16.mxu0 0
        %2601 = vmatmul.mubr.bf16.gmra.mxu0 %v2457
        %v2602 = vpop.f32.mrf.mxu0
        %v2603 = vadd.f32 0.0, %v2602
        %v2604 = vpop.f32.mrf.mxu0
        %v2605 = vpop.f32.mrf.mxu0
        %v2606 = vadd.f32 0.0, %v2605
        %v2607 = vpop.f32.mrf.mxu0
        %2608 = vmatprep.mubr.bf16.mxu0 0
        %2609 = vmatmul.mubr.bf16.gmra.mxu0 %v2458
        %v2610 = vpop.f32.mrf.mxu0
        %v2611 = vadd.f32 0.0, %v2610
        %v2612 = vpop.f32.mrf.mxu0
        %v2613 = vpop.f32.mrf.mxu0
        %v2614 = vadd.f32 0.0, %v2613
        %v2615 = vpop.f32.mrf.mxu0
        %2616 = vmatprep.mubr.bf16.mxu0 0
        %2617 = vmatmul.mubr.bf16.gmra.mxu0 %v2459
        %v2618 = vpop.f32.mrf.mxu0
        %v2619 = vadd.f32 0.0, %v2618
        %v2620 = vpop.f32.mrf.mxu0
        %v2621 = vpop.f32.mrf.mxu0
        %v2622 = vadd.f32 0.0, %v2621
        %v2623 = vpop.f32.mrf.mxu0
        %2624 = vmatprep.mubr.bf16.mxu0 0
        %2625 = vmatmul.mubr.bf16.gmra.mxu0 %v2460
        %v2626 = vpop.f32.mrf.mxu0
        %v2627 = vadd.f32 0.0, %v2626
        %v2628 = vpop.f32.mrf.mxu0
        %v2629 = vpop.f32.mrf.mxu0
        %v2630 = vadd.f32 0.0, %v2629
        %v2631 = vpop.f32.mrf.mxu0
        %2632 = vmatprep.mubr.bf16.mxu0 0
        %2633 = vmatmul.mubr.bf16.gmra.mxu0 %v2461
        %v2634 = vpop.f32.mrf.mxu0
        %v2635 = vadd.f32 0.0, %v2634
        %v2636 = vpop.f32.mrf.mxu0
        %v2637 = vpop.f32.mrf.mxu0
        %v2638 = vadd.f32 0.0, %v2637
        %v2639 = vpop.f32.mrf.mxu0
        %2640 = vmatprep.mubr.bf16.mxu0 0
        %2641 = vmatmul.mubr.bf16.gmra.mxu0 %v2462
        %v2642 = vpop.f32.mrf.mxu0
        %v2643 = vadd.f32 0.0, %v2642
        %v2644 = vpop.f32.mrf.mxu0
        %v2645 = vpop.f32.mrf.mxu0
        %v2646 = vadd.f32 0.0, %v2645
        %v2647 = vpop.f32.mrf.mxu0
        %2648 = vmatprep.mubr.bf16.mxu0 0
        %2649 = vmatmul.mubr.bf16.gmra.mxu0 %v2463
        %v2650 = vpop.f32.mrf.mxu0
        %v2651 = vadd.f32 0.0, %v2650
        %v2652 = vpop.f32.mrf.mxu0
        %v2653 = vpop.f32.mrf.mxu0
        %v2654 = vadd.f32 0.0, %v2653
        %v2655 = vpop.f32.mrf.mxu0
        %2656 = vmatprep.mubr.bf16.mxu0 0
        %2657 = vmatmul.mubr.bf16.gmra.mxu0 %v2464
        %v2658 = vpop.f32.mrf.mxu0
        %v2659 = vadd.f32 0.0, %v2658
        %v2660 = vpop.f32.mrf.mxu0
        %v2661 = vpop.f32.mrf.mxu0
        %v2662 = vadd.f32 0.0, %v2661
        %v2663 = vpop.f32.mrf.mxu0
        %2664 = vmatprep.mubr.bf16.mxu0 0
        %2665 = vmatmul.mubr.bf16.gmra.mxu0 %v2465
        %v2666 = vpop.f32.mrf.mxu0
        %v2667 = vadd.f32 0.0, %v2666
        %v2668 = vpop.f32.mrf.mxu0
        %v2669 = vpop.f32.mrf.mxu0
        %v2670 = vpop.f32.mrf.mxu0
        %2671 = vdwg.mxu0
        %v2672 = vadd.f32 %v2466, %v2587
        %v2673 = vadd.f32 %v2467, %v2590
        %v2674 = vadd.f32 %v2468, %v2595
        %v2675 = vadd.f32 %v2469, %v2598
        %v2676 = vadd.f32 %v2470, %v2603
        %v2677 = vadd.f32 %v2471, %v2606
        %v2678 = vadd.f32 %v2472, %v2611
        %v2679 = vadd.f32 %v2473, %v2614
        %v2680 = vadd.f32 %v2474, %v2619
        %v2681 = vadd.f32 %v2475, %v2622
        %v2682 = vadd.f32 %v2476, %v2627
        %v2683 = vadd.f32 %v2477, %v2630
        %v2684 = vadd.f32 %v2478, %v2635
        %v2685 = vadd.f32 %v2479, %v2638
        %v2686 = vadd.f32 %v2480, %v2643
        %v2687 = vadd.f32 %v2481, %v2646
        %v2688 = vadd.f32 %v2482, %v2651
        %v2689 = vadd.f32 %v2483, %v2654
        %v2690 = vadd.f32 %v2484, %v2659
        %v2691 = vadd.f32 %v2485, %v2662
        %v2692 = vadd.f32 %v2486, %v2667
        %2693 = vst [vmem:[#allocation2] sm:$0xff] %v2672
        %2694 = vst [vmem:[#allocation2 + $0x8] sm:$0xff] %v2673
        %2695 = vst [vmem:[#allocation2 + $0x10] sm:$0xff] %v2674
        %2696 = vst [vmem:[#allocation2 + $0x18] sm:$0xff] %v2675
        %2697 = vst [vmem:[#allocation2 + $0x20] sm:$0xff] %v2676
        %2698 = vst [vmem:[#allocation2 + $0x28] sm:$0xff] %v2677
        %2699 = vst [vmem:[#allocation2 + $0x30] sm:$0xff] %v2678
        %2700 = vst [vmem:[#allocation2 + $0x38] sm:$0xff] %v2679
        %2701 = vst [vmem:[#allocation2 + $0x40] sm:$0xff] %v2680
        %2702 = vst [vmem:[#allocation2 + $0x48] sm:$0xff] %v2681
        %2703 = vst [vmem:[#allocation2 + $0x50] sm:$0xff] %v2682
        %2704 = vst [vmem:[#allocation2 + $0x58] sm:$0xff] %v2683
        %2705 = vst [vmem:[#allocation2 + $0x60] sm:$0xff] %v2684
        %2706 = vst [vmem:[#allocation2 + $0x68] sm:$0xff] %v2685
        %2707 = vst [vmem:[#allocation2 + $0x70] sm:$0xff] %v2686
        %2708 = vst [vmem:[#allocation2 + $0x78] sm:$0xff] %v2687
        %2709 = vst [vmem:[#allocation2 + $0x80] sm:$0xff] %v2688
        %2710 = vst [vmem:[#allocation2 + $0x88] sm:$0xff] %v2689
        %2711 = vst [vmem:[#allocation2 + $0x90] sm:$0xff] %v2690
        %2712 = vst [vmem:[#allocation2 + $0x98] sm:$0xff] %v2691
        %2713 = vst [vmem:[#allocation2 + $0xa0] sm:$0x3f] %v2692
        %v2714 = vld [vmem:[%s967 + $0x1c] sm:$0xff]
        %v2715 = vld [vmem:[%s967 + $0x24] sm:$0xff]
        %v2716 = vld [vmem:[%s967 + $0x2c] sm:$0xff]
        %v2717 = vld [vmem:[%s967 + $0x34] sm:$0xff]
        %v2718 = vld [vmem:[%s967 + $0x3c] sm:$0xff]
        %v2719 = vld [vmem:[%s967 + $0x44] sm:$0xff]
        %v2720 = vld [vmem:[%s967 + $0x4c] sm:$0xff]
        %v2721 = vld [vmem:[%s967 + $0x54] sm:$0xff]
        %v2722 = vld [vmem:[%s967 + $0x5c] sm:$0xff]
        %v2723 = vld [vmem:[%s967 + $0x64] sm:$0xff]
        %v2724 = vld [vmem:[%s967 + $0x6c] sm:$0xff]
        %v2725 = vld [vmem:[%s967 + $0x74] sm:$0xff]
        %v2726 = vld [vmem:[%s967 + $0x7c] sm:$0xff]
        %v2727 = vld [vmem:[%s967 + $0x84] sm:$0xff]
        %v2728 = vld [vmem:[%s967 + $0x8c] sm:$0xff]
        %v2729 = vld [vmem:[%s967 + $0x94] sm:$0xff]
        %v2730 = vld [vmem:[%s967 + $0x9c] sm:$0xff]
        %v2731 = vld [vmem:[%s967 + $0xa4] sm:$0xff]
        %v2732 = vld [vmem:[%s967 + $0xac] sm:$0xff]
        %v2733 = vld [vmem:[%s967 + $0xb4] sm:$0xff]
        %v2734 = vld [vmem:[%s967 + $0xbc] sm:$0x3f]
        %v2735 = vpack.c.bf16 %v2715, %v2714
        %v2736 = vpack.c.bf16 %v2717, %v2716
        %v2737 = vpack.c.bf16 %v2719, %v2718
        %v2738 = vpack.c.bf16 %v2721, %v2720
        %v2739 = vpack.c.bf16 %v2723, %v2722
        %v2740 = vpack.c.bf16 %v2725, %v2724
        %v2741 = vpack.c.bf16 %v2727, %v2726
        %v2742 = vpack.c.bf16 %v2729, %v2728
        %v2743 = vpack.c.bf16 %v2731, %v2730
        %v2744 = vpack.c.bf16 %v2733, %v2732
        %v2745 = vpack.c.bf16 %v2734, %v2734
        %v2746 = vld [vmem:[#allocation2] sm:$0xff]
        %v2747 = vld [vmem:[#allocation2 + $0x8] sm:$0xff]
        %v2748 = vld [vmem:[#allocation2 + $0x10] sm:$0xff]
        %v2749 = vld [vmem:[#allocation2 + $0x18] sm:$0xff]
        %v2750 = vld [vmem:[#allocation2 + $0x20] sm:$0xff]
        %v2751 = vld [vmem:[#allocation2 + $0x28] sm:$0xff]
        %v2752 = vld [vmem:[#allocation2 + $0x30] sm:$0xff]
        %v2753 = vld [vmem:[#allocation2 + $0x38] sm:$0xff]
        %v2754 = vld [vmem:[#allocation2 + $0x40] sm:$0xff]
        %v2755 = vld [vmem:[#allocation2 + $0x48] sm:$0xff]
        %v2756 = vld [vmem:[#allocation2 + $0x50] sm:$0xff]
        %v2757 = vld [vmem:[#allocation2 + $0x58] sm:$0xff]
        %v2758 = vld [vmem:[#allocation2 + $0x60] sm:$0xff]
        %v2759 = vld [vmem:[#allocation2 + $0x68] sm:$0xff]
        %v2760 = vld [vmem:[#allocation2 + $0x70] sm:$0xff]
        %v2761 = vld [vmem:[#allocation2 + $0x78] sm:$0xff]
        %v2762 = vld [vmem:[#allocation2 + $0x80] sm:$0xff]
        %v2763 = vld [vmem:[#allocation2 + $0x88] sm:$0xff]
        %v2764 = vld [vmem:[#allocation2 + $0x90] sm:$0xff]
        %v2765 = vld [vmem:[#allocation2 + $0x98] sm:$0xff]
        %v2766 = vld [vmem:[#allocation2 + $0xa0] sm:$0x3f]
        %s2767 = scalar_lea.vmem %s974, 384 [#allocation4]
        %v2768 = vld [vmem:[%s2767] sm:$0xf]
        %v2769 = vld [vmem:[%s2767 + $0x4] sm:$0xf]
        %v2770 = vld [vmem:[%s2767 + $0x8] sm:$0xf]
        %v2771 = vld [vmem:[%s2767 + $0xc] sm:$0xf]
        %v2772 = vld [vmem:[%s2767 + $0x10] sm:$0xf]
        %v2773 = vld [vmem:[%s2767 + $0x14] sm:$0xf]
        %v2774 = vld [vmem:[%s2767 + $0x18] sm:$0xf]
        %v2775 = vld [vmem:[%s2767 + $0x1c] sm:$0xf]
        %v2776 = vld [vmem:[%s2767 + $0x20] sm:$0xf]
        %v2777 = vld [vmem:[%s2767 + $0x24] sm:$0xf]
        %v2778 = vld [vmem:[%s2767 + $0x28] sm:$0xf]
        %v2779 = vld [vmem:[%s2767 + $0x2c] sm:$0xf]
        %v2780 = vld [vmem:[%s2767 + $0x30] sm:$0xf]
        %v2781 = vld [vmem:[%s2767 + $0x34] sm:$0xf]
        %v2782 = vld [vmem:[%s2767 + $0x38] sm:$0xf]
        %v2783 = vld [vmem:[%s2767 + $0x3c] sm:$0xf]
        %v2800 = vunpack.c.l.b16 %v2768
        %v2801 = vunpack.c.l.b16 %v2769
        %v2802 = vunpack.c.l.b16 %v2770
        %v2803 = vunpack.c.l.b16 %v2771
        %v2804 = vunpack.c.l.b16 %v2772
        %v2805 = vunpack.c.l.b16 %v2773
        %v2806 = vunpack.c.l.b16 %v2774
        %v2807 = vunpack.c.l.b16 %v2775
        %v2808 = vunpack.c.l.b16 %v2776
        %v2809 = vunpack.c.l.b16 %v2777
        %v2810 = vunpack.c.l.b16 %v2778
        %v2811 = vunpack.c.l.b16 %v2779
        %v2812 = vunpack.c.l.b16 %v2780
        %v2813 = vunpack.c.l.b16 %v2781
        %v2814 = vunpack.c.l.b16 %v2782
        %v2815 = vunpack.c.l.b16 %v2783
        %v2816 = vpack.c.b16 %v2801, %v2800
        %v2817 = vpack.c.b16 %v2803, %v2802
        %v2818 = vpack.c.b16 %v2805, %v2804
        %v2819 = vpack.c.b16 %v2807, %v2806
        %v2820 = vpack.c.b16 %v2809, %v2808
        %v2821 = vpack.c.b16 %v2811, %v2810
        %v2822 = vpack.c.b16 %v2813, %v2812
        %v2823 = vpack.c.b16 %v2815, %v2814
        %2832 = vmatprep.subr.bf16.mxu0 0
        %2833 = vmatpush1.bf16.msra.mxu0 %v2823
        %2834 = vmatprep.subr.bf16.mxu0 0
        %2835 = vmatpush1.bf16.msra.mxu0 %v2822
        %2836 = vmatprep.subr.bf16.mxu0 0
        %2837 = vmatpush1.bf16.msra.mxu0 %v2821
        %2838 = vmatprep.subr.bf16.mxu0 0
        %2839 = vmatpush1.bf16.msra.mxu0 %v2820
        %2840 = vmatprep.subr.bf16.mxu0 0
        %2841 = vmatpush1.bf16.msra.mxu0 %v2819
        %2842 = vmatprep.subr.bf16.mxu0 0
        %2843 = vmatpush1.bf16.msra.mxu0 %v2818
        %2844 = vmatprep.subr.bf16.mxu0 0
        %2845 = vmatpush1.bf16.msra.mxu0 %v2817
        %2846 = vmatprep.subr.bf16.mxu0 0
        %2847 = vmatpush1.bf16.msra.mxu0 %v2816
        %2848 = vmatprep.subr.bf16.mxu0 0
        %2849 = vmatpush2.bf16.msra.mxu0 0
        %2850 = vmatprep.subr.bf16.mxu0 0
        %2851 = vmatpush2.bf16.msra.mxu0 0
        %2852 = vmatprep.subr.bf16.mxu0 0
        %2853 = vmatpush2.bf16.msra.mxu0 0
        %2854 = vmatprep.subr.bf16.mxu0 0
        %2855 = vmatpush2.bf16.msra.mxu0 0
        %2856 = vmatprep.subr.bf16.mxu0 0
        %2857 = vmatpush2.bf16.msra.mxu0 0
        %2858 = vmatprep.subr.bf16.mxu0 0
        %2859 = vmatpush2.bf16.msra.mxu0 0
        %2860 = vmatprep.subr.bf16.mxu0 0
        %2861 = vmatpush2.bf16.msra.mxu0 0
        %2862 = vmatprep.subr.bf16.mxu0 0
        %2863 = vmatpush2.bf16.msra.mxu0 0
        %2864 = vmatprep.mubr.bf16.mxu0 0
        %2865 = vmatmul.mubr.bf16.gmra.mxu0 %v2735
        %v2866 = vpop.f32.mrf.mxu0
        %v2867 = vadd.f32 0.0, %v2866
        %v2868 = vpop.f32.mrf.mxu0
        %v2869 = vpop.f32.mrf.mxu0
        %v2870 = vadd.f32 0.0, %v2869
        %v2871 = vpop.f32.mrf.mxu0
        %2872 = vmatprep.mubr.bf16.mxu0 0
        %2873 = vmatmul.mubr.bf16.gmra.mxu0 %v2736
        %v2874 = vpop.f32.mrf.mxu0
        %v2875 = vadd.f32 0.0, %v2874
        %v2876 = vpop.f32.mrf.mxu0
        %v2877 = vpop.f32.mrf.mxu0
        %v2878 = vadd.f32 0.0, %v2877
        %v2879 = vpop.f32.mrf.mxu0
        %2880 = vmatprep.mubr.bf16.mxu0 0
        %2881 = vmatmul.mubr.bf16.gmra.mxu0 %v2737
        %v2882 = vpop.f32.mrf.mxu0
        %v2883 = vadd.f32 0.0, %v2882
        %v2884 = vpop.f32.mrf.mxu0
        %v2885 = vpop.f32.mrf.mxu0
        %v2886 = vadd.f32 0.0, %v2885
        %v2887 = vpop.f32.mrf.mxu0
        %2888 = vmatprep.mubr.bf16.mxu0 0
        %2889 = vmatmul.mubr.bf16.gmra.mxu0 %v2738
        %v2890 = vpop.f32.mrf.mxu0
        %v2891 = vadd.f32 0.0, %v2890
        %v2892 = vpop.f32.mrf.mxu0
        %v2893 = vpop.f32.mrf.mxu0
        %v2894 = vadd.f32 0.0, %v2893
        %v2895 = vpop.f32.mrf.mxu0
        %2896 = vmatprep.mubr.bf16.mxu0 0
        %2897 = vmatmul.mubr.bf16.gmra.mxu0 %v2739
        %v2898 = vpop.f32.mrf.mxu0
        %v2899 = vadd.f32 0.0, %v2898
        %v2900 = vpop.f32.mrf.mxu0
        %v2901 = vpop.f32.mrf.mxu0
        %v2902 = vadd.f32 0.0, %v2901
        %v2903 = vpop.f32.mrf.mxu0
        %2904 = vmatprep.mubr.bf16.mxu0 0
        %2905 = vmatmul.mubr.bf16.gmra.mxu0 %v2740
        %v2906 = vpop.f32.mrf.mxu0
        %v2907 = vadd.f32 0.0, %v2906
        %v2908 = vpop.f32.mrf.mxu0
        %v2909 = vpop.f32.mrf.mxu0
        %v2910 = vadd.f32 0.0, %v2909
        %v2911 = vpop.f32.mrf.mxu0
        %2912 = vmatprep.mubr.bf16.mxu0 0
        %2913 = vmatmul.mubr.bf16.gmra.mxu0 %v2741
        %v2914 = vpop.f32.mrf.mxu0
        %v2915 = vadd.f32 0.0, %v2914
        %v2916 = vpop.f32.mrf.mxu0
        %v2917 = vpop.f32.mrf.mxu0
        %v2918 = vadd.f32 0.0, %v2917
        %v2919 = vpop.f32.mrf.mxu0
        %2920 = vmatprep.mubr.bf16.mxu0 0
        %2921 = vmatmul.mubr.bf16.gmra.mxu0 %v2742
        %v2922 = vpop.f32.mrf.mxu0
        %v2923 = vadd.f32 0.0, %v2922
        %v2924 = vpop.f32.mrf.mxu0
        %v2925 = vpop.f32.mrf.mxu0
        %v2926 = vadd.f32 0.0, %v2925
        %v2927 = vpop.f32.mrf.mxu0
        %2928 = vmatprep.mubr.bf16.mxu0 0
        %2929 = vmatmul.mubr.bf16.gmra.mxu0 %v2743
        %v2930 = vpop.f32.mrf.mxu0
        %v2931 = vadd.f32 0.0, %v2930
        %v2932 = vpop.f32.mrf.mxu0
        %v2933 = vpop.f32.mrf.mxu0
        %v2934 = vadd.f32 0.0, %v2933
        %v2935 = vpop.f32.mrf.mxu0
        %2936 = vmatprep.mubr.bf16.mxu0 0
        %2937 = vmatmul.mubr.bf16.gmra.mxu0 %v2744
        %v2938 = vpop.f32.mrf.mxu0
        %v2939 = vadd.f32 0.0, %v2938
        %v2940 = vpop.f32.mrf.mxu0
        %v2941 = vpop.f32.mrf.mxu0
        %v2942 = vadd.f32 0.0, %v2941
        %v2943 = vpop.f32.mrf.mxu0
        %2944 = vmatprep.mubr.bf16.mxu0 0
        %2945 = vmatmul.mubr.bf16.gmra.mxu0 %v2745
        %v2946 = vpop.f32.mrf.mxu0
        %v2947 = vadd.f32 0.0, %v2946
        %v2948 = vpop.f32.mrf.mxu0
        %v2949 = vpop.f32.mrf.mxu0
        %v2950 = vpop.f32.mrf.mxu0
        %2951 = vdwg.mxu0
        %v2952 = vadd.f32 %v2746, %v2867
        %v2953 = vadd.f32 %v2747, %v2870
        %v2954 = vadd.f32 %v2748, %v2875
        %v2955 = vadd.f32 %v2749, %v2878
        %v2956 = vadd.f32 %v2750, %v2883
        %v2957 = vadd.f32 %v2751, %v2886
        %v2958 = vadd.f32 %v2752, %v2891
        %v2959 = vadd.f32 %v2753, %v2894
        %v2960 = vadd.f32 %v2754, %v2899
        %v2961 = vadd.f32 %v2755, %v2902
        %v2962 = vadd.f32 %v2756, %v2907
        %v2963 = vadd.f32 %v2757, %v2910
        %v2964 = vadd.f32 %v2758, %v2915
        %v2965 = vadd.f32 %v2759, %v2918
        %v2966 = vadd.f32 %v2760, %v2923
        %v2967 = vadd.f32 %v2761, %v2926
        %v2968 = vadd.f32 %v2762, %v2931
        %v2969 = vadd.f32 %v2763, %v2934
        %v2970 = vadd.f32 %v2764, %v2939
        %v2971 = vadd.f32 %v2765, %v2942
        %v2972 = vadd.f32 %v2766, %v2947
        %2973 = vst [vmem:[#allocation2] sm:$0xff] %v2952
        %2974 = vst [vmem:[#allocation2 + $0x8] sm:$0xff] %v2953
        %2975 = vst [vmem:[#allocation2 + $0x10] sm:$0xff] %v2954
        %2976 = vst [vmem:[#allocation2 + $0x18] sm:$0xff] %v2955
        %2977 = vst [vmem:[#allocation2 + $0x20] sm:$0xff] %v2956
        %2978 = vst [vmem:[#allocation2 + $0x28] sm:$0xff] %v2957
        %2979 = vst [vmem:[#allocation2 + $0x30] sm:$0xff] %v2958
        %2980 = vst [vmem:[#allocation2 + $0x38] sm:$0xff] %v2959
        %2981 = vst [vmem:[#allocation2 + $0x40] sm:$0xff] %v2960
        %2982 = vst [vmem:[#allocation2 + $0x48] sm:$0xff] %v2961
        %2983 = vst [vmem:[#allocation2 + $0x50] sm:$0xff] %v2962
        %2984 = vst [vmem:[#allocation2 + $0x58] sm:$0xff] %v2963
        %2985 = vst [vmem:[#allocation2 + $0x60] sm:$0xff] %v2964
        %2986 = vst [vmem:[#allocation2 + $0x68] sm:$0xff] %v2965
        %2987 = vst [vmem:[#allocation2 + $0x70] sm:$0xff] %v2966
        %2988 = vst [vmem:[#allocation2 + $0x78] sm:$0xff] %v2967
        %2989 = vst [vmem:[#allocation2 + $0x80] sm:$0xff] %v2968
        %2990 = vst [vmem:[#allocation2 + $0x88] sm:$0xff] %v2969
        %2991 = vst [vmem:[#allocation2 + $0x90] sm:$0xff] %v2970
        %2992 = vst [vmem:[#allocation2 + $0x98] sm:$0xff] %v2971
        %2993 = vst [vmem:[#allocation2 + $0xa0] sm:$0x3f] %v2972
        %v2994 = vld [vmem:[%s967 + $0x1d] sm:$0xff]
        %v2995 = vld [vmem:[%s967 + $0x25] sm:$0xff]
        %v2996 = vld [vmem:[%s967 + $0x2d] sm:$0xff]
        %v2997 = vld [vmem:[%s967 + $0x35] sm:$0xff]
        %v2998 = vld [vmem:[%s967 + $0x3d] sm:$0xff]
        %v2999 = vld [vmem:[%s967 + $0x45] sm:$0xff]
        %v3000 = vld [vmem:[%s967 + $0x4d] sm:$0xff]
        %v3001 = vld [vmem:[%s967 + $0x55] sm:$0xff]
        %v3002 = vld [vmem:[%s967 + $0x5d] sm:$0xff]
        %v3003 = vld [vmem:[%s967 + $0x65] sm:$0xff]
        %v3004 = vld [vmem:[%s967 + $0x6d] sm:$0xff]
        %v3005 = vld [vmem:[%s967 + $0x75] sm:$0xff]
        %v3006 = vld [vmem:[%s967 + $0x7d] sm:$0xff]
        %v3007 = vld [vmem:[%s967 + $0x85] sm:$0xff]
        %v3008 = vld [vmem:[%s967 + $0x8d] sm:$0xff]
        %v3009 = vld [vmem:[%s967 + $0x95] sm:$0xff]
        %v3010 = vld [vmem:[%s967 + $0x9d] sm:$0xff]
        %v3011 = vld [vmem:[%s967 + $0xa5] sm:$0xff]
        %v3012 = vld [vmem:[%s967 + $0xad] sm:$0xff]
        %v3013 = vld [vmem:[%s967 + $0xb5] sm:$0xff]
        %v3014 = vld [vmem:[%s967 + $0xbd] sm:$0x3f]
        %v3015 = vpack.c.bf16 %v2995, %v2994
        %v3016 = vpack.c.bf16 %v2997, %v2996
        %v3017 = vpack.c.bf16 %v2999, %v2998
        %v3018 = vpack.c.bf16 %v3001, %v3000
        %v3019 = vpack.c.bf16 %v3003, %v3002
        %v3020 = vpack.c.bf16 %v3005, %v3004
        %v3021 = vpack.c.bf16 %v3007, %v3006
        %v3022 = vpack.c.bf16 %v3009, %v3008
        %v3023 = vpack.c.bf16 %v3011, %v3010
        %v3024 = vpack.c.bf16 %v3013, %v3012
        %v3025 = vpack.c.bf16 %v3014, %v3014
        %v3026 = vld [vmem:[#allocation2] sm:$0xff]
        %v3027 = vld [vmem:[#allocation2 + $0x8] sm:$0xff]
        %v3028 = vld [vmem:[#allocation2 + $0x10] sm:$0xff]
        %v3029 = vld [vmem:[#allocation2 + $0x18] sm:$0xff]
        %v3030 = vld [vmem:[#allocation2 + $0x20] sm:$0xff]
        %v3031 = vld [vmem:[#allocation2 + $0x28] sm:$0xff]
        %v3032 = vld [vmem:[#allocation2 + $0x30] sm:$0xff]
        %v3033 = vld [vmem:[#allocation2 + $0x38] sm:$0xff]
        %v3034 = vld [vmem:[#allocation2 + $0x40] sm:$0xff]
        %v3035 = vld [vmem:[#allocation2 + $0x48] sm:$0xff]
        %v3036 = vld [vmem:[#allocation2 + $0x50] sm:$0xff]
        %v3037 = vld [vmem:[#allocation2 + $0x58] sm:$0xff]
        %v3038 = vld [vmem:[#allocation2 + $0x60] sm:$0xff]
        %v3039 = vld [vmem:[#allocation2 + $0x68] sm:$0xff]
        %v3040 = vld [vmem:[#allocation2 + $0x70] sm:$0xff]
        %v3041 = vld [vmem:[#allocation2 + $0x78] sm:$0xff]
        %v3042 = vld [vmem:[#allocation2 + $0x80] sm:$0xff]
        %v3043 = vld [vmem:[#allocation2 + $0x88] sm:$0xff]
        %v3044 = vld [vmem:[#allocation2 + $0x90] sm:$0xff]
        %v3045 = vld [vmem:[#allocation2 + $0x98] sm:$0xff]
        %v3046 = vld [vmem:[#allocation2 + $0xa0] sm:$0x3f]
        %s3047 = scalar_lea.vmem %s974, 448 [#allocation4]
        %v3048 = vld [vmem:[%s3047] sm:$0xf]
        %v3049 = vld [vmem:[%s3047 + $0x4] sm:$0xf]
        %v3050 = vld [vmem:[%s3047 + $0x8] sm:$0xf]
        %v3051 = vld [vmem:[%s3047 + $0xc] sm:$0xf]
        %v3052 = vld [vmem:[%s3047 + $0x10] sm:$0xf]
        %v3053 = vld [vmem:[%s3047 + $0x14] sm:$0xf]
        %v3054 = vld [vmem:[%s3047 + $0x18] sm:$0xf]
        %v3055 = vld [vmem:[%s3047 + $0x1c] sm:$0xf]
        %v3056 = vld [vmem:[%s3047 + $0x20] sm:$0xf]
        %v3057 = vld [vmem:[%s3047 + $0x24] sm:$0xf]
        %v3058 = vld [vmem:[%s3047 + $0x28] sm:$0xf]
        %v3059 = vld [vmem:[%s3047 + $0x2c] sm:$0xf]
        %v3060 = vld [vmem:[%s3047 + $0x30] sm:$0xf]
        %v3061 = vld [vmem:[%s3047 + $0x34] sm:$0xf]
        %v3062 = vld [vmem:[%s3047 + $0x38] sm:$0xf]
        %v3063 = vld [vmem:[%s3047 + $0x3c] sm:$0xf]
        %v3080 = vunpack.c.l.b16 %v3048
        %v3081 = vunpack.c.l.b16 %v3049
        %v3082 = vunpack.c.l.b16 %v3050
        %v3083 = vunpack.c.l.b16 %v3051
        %v3084 = vunpack.c.l.b16 %v3052
        %v3085 = vunpack.c.l.b16 %v3053
        %v3086 = vunpack.c.l.b16 %v3054
        %v3087 = vunpack.c.l.b16 %v3055
        %v3088 = vunpack.c.l.b16 %v3056
        %v3089 = vunpack.c.l.b16 %v3057
        %v3090 = vunpack.c.l.b16 %v3058
        %v3091 = vunpack.c.l.b16 %v3059
        %v3092 = vunpack.c.l.b16 %v3060
        %v3093 = vunpack.c.l.b16 %v3061
        %v3094 = vunpack.c.l.b16 %v3062
        %v3095 = vunpack.c.l.b16 %v3063
        %v3096 = vpack.c.b16 %v3081, %v3080
        %v3097 = vpack.c.b16 %v3083, %v3082
        %v3098 = vpack.c.b16 %v3085, %v3084
        %v3099 = vpack.c.b16 %v3087, %v3086
        %v3100 = vpack.c.b16 %v3089, %v3088
        %v3101 = vpack.c.b16 %v3091, %v3090
        %v3102 = vpack.c.b16 %v3093, %v3092
        %v3103 = vpack.c.b16 %v3095, %v3094
        %3112 = vmatprep.subr.bf16.mxu0 0
        %3113 = vmatpush1.bf16.msra.mxu0 %v3103
        %3114 = vmatprep.subr.bf16.mxu0 0
        %3115 = vmatpush1.bf16.msra.mxu0 %v3102
        %3116 = vmatprep.subr.bf16.mxu0 0
        %3117 = vmatpush1.bf16.msra.mxu0 %v3101
        %3118 = vmatprep.subr.bf16.mxu0 0
        %3119 = vmatpush1.bf16.msra.mxu0 %v3100
        %3120 = vmatprep.subr.bf16.mxu0 0
        %3121 = vmatpush1.bf16.msra.mxu0 %v3099
        %3122 = vmatprep.subr.bf16.mxu0 0
        %3123 = vmatpush1.bf16.msra.mxu0 %v3098
        %3124 = vmatprep.subr.bf16.mxu0 0
        %3125 = vmatpush1.bf16.msra.mxu0 %v3097
        %3126 = vmatprep.subr.bf16.mxu0 0
        %3127 = vmatpush1.bf16.msra.mxu0 %v3096
        %3128 = vmatprep.subr.bf16.mxu0 0
        %3129 = vmatpush2.bf16.msra.mxu0 0
        %3130 = vmatprep.subr.bf16.mxu0 0
        %3131 = vmatpush2.bf16.msra.mxu0 0
        %3132 = vmatprep.subr.bf16.mxu0 0
        %3133 = vmatpush2.bf16.msra.mxu0 0
        %3134 = vmatprep.subr.bf16.mxu0 0
        %3135 = vmatpush2.bf16.msra.mxu0 0
        %3136 = vmatprep.subr.bf16.mxu0 0
        %3137 = vmatpush2.bf16.msra.mxu0 0
        %3138 = vmatprep.subr.bf16.mxu0 0
        %3139 = vmatpush2.bf16.msra.mxu0 0
        %3140 = vmatprep.subr.bf16.mxu0 0
        %3141 = vmatpush2.bf16.msra.mxu0 0
        %3142 = vmatprep.subr.bf16.mxu0 0
        %3143 = vmatpush2.bf16.msra.mxu0 0
        %3144 = vmatprep.mubr.bf16.mxu0 0
        %3145 = vmatmul.mubr.bf16.gmra.mxu0 %v3015
        %v3146 = vpop.f32.mrf.mxu0
        %v3147 = vadd.f32 0.0, %v3146
        %v3148 = vpop.f32.mrf.mxu0
        %v3149 = vpop.f32.mrf.mxu0
        %v3150 = vadd.f32 0.0, %v3149
        %v3151 = vpop.f32.mrf.mxu0
        %3152 = vmatprep.mubr.bf16.mxu0 0
        %3153 = vmatmul.mubr.bf16.gmra.mxu0 %v3016
        %v3154 = vpop.f32.mrf.mxu0
        %v3155 = vadd.f32 0.0, %v3154
        %v3156 = vpop.f32.mrf.mxu0
        %v3157 = vpop.f32.mrf.mxu0
        %v3158 = vadd.f32 0.0, %v3157
        %v3159 = vpop.f32.mrf.mxu0
        %3160 = vmatprep.mubr.bf16.mxu0 0
        %3161 = vmatmul.mubr.bf16.gmra.mxu0 %v3017
        %v3162 = vpop.f32.mrf.mxu0
        %v3163 = vadd.f32 0.0, %v3162
        %v3164 = vpop.f32.mrf.mxu0
        %v3165 = vpop.f32.mrf.mxu0
        %v3166 = vadd.f32 0.0, %v3165
        %v3167 = vpop.f32.mrf.mxu0
        %3168 = vmatprep.mubr.bf16.mxu0 0
        %3169 = vmatmul.mubr.bf16.gmra.mxu0 %v3018
        %v3170 = vpop.f32.mrf.mxu0
        %v3171 = vadd.f32 0.0, %v3170
        %v3172 = vpop.f32.mrf.mxu0
        %v3173 = vpop.f32.mrf.mxu0
        %v3174 = vadd.f32 0.0, %v3173
        %v3175 = vpop.f32.mrf.mxu0
        %3176 = vmatprep.mubr.bf16.mxu0 0
        %3177 = vmatmul.mubr.bf16.gmra.mxu0 %v3019
        %v3178 = vpop.f32.mrf.mxu0
        %v3179 = vadd.f32 0.0, %v3178
        %v3180 = vpop.f32.mrf.mxu0
        %v3181 = vpop.f32.mrf.mxu0
        %v3182 = vadd.f32 0.0, %v3181
        %v3183 = vpop.f32.mrf.mxu0
        %3184 = vmatprep.mubr.bf16.mxu0 0
        %3185 = vmatmul.mubr.bf16.gmra.mxu0 %v3020
        %v3186 = vpop.f32.mrf.mxu0
        %v3187 = vadd.f32 0.0, %v3186
        %v3188 = vpop.f32.mrf.mxu0
        %v3189 = vpop.f32.mrf.mxu0
        %v3190 = vadd.f32 0.0, %v3189
        %v3191 = vpop.f32.mrf.mxu0
        %3192 = vmatprep.mubr.bf16.mxu0 0
        %3193 = vmatmul.mubr.bf16.gmra.mxu0 %v3021
        %v3194 = vpop.f32.mrf.mxu0
        %v3195 = vadd.f32 0.0, %v3194
        %v3196 = vpop.f32.mrf.mxu0
        %v3197 = vpop.f32.mrf.mxu0
        %v3198 = vadd.f32 0.0, %v3197
        %v3199 = vpop.f32.mrf.mxu0
        %3200 = vmatprep.mubr.bf16.mxu0 0
        %3201 = vmatmul.mubr.bf16.gmra.mxu0 %v3022
        %v3202 = vpop.f32.mrf.mxu0
        %v3203 = vadd.f32 0.0, %v3202
        %v3204 = vpop.f32.mrf.mxu0
        %v3205 = vpop.f32.mrf.mxu0
        %v3206 = vadd.f32 0.0, %v3205
        %v3207 = vpop.f32.mrf.mxu0
        %3208 = vmatprep.mubr.bf16.mxu0 0
        %3209 = vmatmul.mubr.bf16.gmra.mxu0 %v3023
        %v3210 = vpop.f32.mrf.mxu0
        %v3211 = vadd.f32 0.0, %v3210
        %v3212 = vpop.f32.mrf.mxu0
        %v3213 = vpop.f32.mrf.mxu0
        %v3214 = vadd.f32 0.0, %v3213
        %v3215 = vpop.f32.mrf.mxu0
        %3216 = vmatprep.mubr.bf16.mxu0 0
        %3217 = vmatmul.mubr.bf16.gmra.mxu0 %v3024
        %v3218 = vpop.f32.mrf.mxu0
        %v3219 = vadd.f32 0.0, %v3218
        %v3220 = vpop.f32.mrf.mxu0
        %v3221 = vpop.f32.mrf.mxu0
        %v3222 = vadd.f32 0.0, %v3221
        %v3223 = vpop.f32.mrf.mxu0
        %3224 = vmatprep.mubr.bf16.mxu0 0
        %3225 = vmatmul.mubr.bf16.gmra.mxu0 %v3025
        %v3226 = vpop.f32.mrf.mxu0
        %v3227 = vadd.f32 0.0, %v3226
        %v3228 = vpop.f32.mrf.mxu0
        %v3229 = vpop.f32.mrf.mxu0
        %v3230 = vpop.f32.mrf.mxu0
        %3231 = vdwg.mxu0
        %v3232 = vadd.f32 %v3026, %v3147
        %v3233 = vadd.f32 %v3027, %v3150
        %v3234 = vadd.f32 %v3028, %v3155
        %v3235 = vadd.f32 %v3029, %v3158
        %v3236 = vadd.f32 %v3030, %v3163
        %v3237 = vadd.f32 %v3031, %v3166
        %v3238 = vadd.f32 %v3032, %v3171
        %v3239 = vadd.f32 %v3033, %v3174
        %v3240 = vadd.f32 %v3034, %v3179
        %v3241 = vadd.f32 %v3035, %v3182
        %v3242 = vadd.f32 %v3036, %v3187
        %v3243 = vadd.f32 %v3037, %v3190
        %v3244 = vadd.f32 %v3038, %v3195
        %v3245 = vadd.f32 %v3039, %v3198
        %v3246 = vadd.f32 %v3040, %v3203
        %v3247 = vadd.f32 %v3041, %v3206
        %v3248 = vadd.f32 %v3042, %v3211
        %v3249 = vadd.f32 %v3043, %v3214
        %v3250 = vadd.f32 %v3044, %v3219
        %v3251 = vadd.f32 %v3045, %v3222
        %v3252 = vadd.f32 %v3046, %v3227
        %3253 = vst [vmem:[#allocation2] sm:$0xff] %v3232
        %3254 = vst [vmem:[#allocation2 + $0x8] sm:$0xff] %v3233
        %3255 = vst [vmem:[#allocation2 + $0x10] sm:$0xff] %v3234
        %3256 = vst [vmem:[#allocation2 + $0x18] sm:$0xff] %v3235
        %3257 = vst [vmem:[#allocation2 + $0x20] sm:$0xff] %v3236
        %3258 = vst [vmem:[#allocation2 + $0x28] sm:$0xff] %v3237
        %3259 = vst [vmem:[#allocation2 + $0x30] sm:$0xff] %v3238
        %3260 = vst [vmem:[#allocation2 + $0x38] sm:$0xff] %v3239
        %3261 = vst [vmem:[#allocation2 + $0x40] sm:$0xff] %v3240
        %3262 = vst [vmem:[#allocation2 + $0x48] sm:$0xff] %v3241
        %3263 = vst [vmem:[#allocation2 + $0x50] sm:$0xff] %v3242
        %3264 = vst [vmem:[#allocation2 + $0x58] sm:$0xff] %v3243
        %3265 = vst [vmem:[#allocation2 + $0x60] sm:$0xff] %v3244
        %3266 = vst [vmem:[#allocation2 + $0x68] sm:$0xff] %v3245
        %3267 = vst [vmem:[#allocation2 + $0x70] sm:$0xff] %v3246
        %3268 = vst [vmem:[#allocation2 + $0x78] sm:$0xff] %v3247
        %3269 = vst [vmem:[#allocation2 + $0x80] sm:$0xff] %v3248
        %3270 = vst [vmem:[#allocation2 + $0x88] sm:$0xff] %v3249
        %3271 = vst [vmem:[#allocation2 + $0x90] sm:$0xff] %v3250
        %3272 = vst [vmem:[#allocation2 + $0x98] sm:$0xff] %v3251
        %3273 = vst [vmem:[#allocation2 + $0xa0] sm:$0x3f] %v3252
        %v3274 = vld [vmem:[%s967 + $0x1e] sm:$0xff]
        %v3275 = vld [vmem:[%s967 + $0x26] sm:$0xff]
        %v3276 = vld [vmem:[%s967 + $0x2e] sm:$0xff]
        %v3277 = vld [vmem:[%s967 + $0x36] sm:$0xff]
        %v3278 = vld [vmem:[%s967 + $0x3e] sm:$0xff]
        %v3279 = vld [vmem:[%s967 + $0x46] sm:$0xff]
        %v3280 = vld [vmem:[%s967 + $0x4e] sm:$0xff]
        %v3281 = vld [vmem:[%s967 + $0x56] sm:$0xff]
        %v3282 = vld [vmem:[%s967 + $0x5e] sm:$0xff]
        %v3283 = vld [vmem:[%s967 + $0x66] sm:$0xff]
        %v3284 = vld [vmem:[%s967 + $0x6e] sm:$0xff]
        %v3285 = vld [vmem:[%s967 + $0x76] sm:$0xff]
        %v3286 = vld [vmem:[%s967 + $0x7e] sm:$0xff]
        %v3287 = vld [vmem:[%s967 + $0x86] sm:$0xff]
        %v3288 = vld [vmem:[%s967 + $0x8e] sm:$0xff]
        %v3289 = vld [vmem:[%s967 + $0x96] sm:$0xff]
        %v3290 = vld [vmem:[%s967 + $0x9e] sm:$0xff]
        %v3291 = vld [vmem:[%s967 + $0xa6] sm:$0xff]
        %v3292 = vld [vmem:[%s967 + $0xae] sm:$0xff]
        %v3293 = vld [vmem:[%s967 + $0xb6] sm:$0xff]
        %v3294 = vld [vmem:[%s967 + $0xbe] sm:$0x3f]
        %v3295 = vpack.c.bf16 %v3275, %v3274
        %v3296 = vpack.c.bf16 %v3277, %v3276
        %v3297 = vpack.c.bf16 %v3279, %v3278
        %v3298 = vpack.c.bf16 %v3281, %v3280
        %v3299 = vpack.c.bf16 %v3283, %v3282
        %v3300 = vpack.c.bf16 %v3285, %v3284
        %v3301 = vpack.c.bf16 %v3287, %v3286
        %v3302 = vpack.c.bf16 %v3289, %v3288
        %v3303 = vpack.c.bf16 %v3291, %v3290
        %v3304 = vpack.c.bf16 %v3293, %v3292
        %v3305 = vpack.c.bf16 %v3294, %v3294
        %v3306 = vld [vmem:[#allocation2] sm:$0xff]
        %v3307 = vld [vmem:[#allocation2 + $0x8] sm:$0xff]
        %v3308 = vld [vmem:[#allocation2 + $0x10] sm:$0xff]
        %v3309 = vld [vmem:[#allocation2 + $0x18] sm:$0xff]
        %v3310 = vld [vmem:[#allocation2 + $0x20] sm:$0xff]
        %v3311 = vld [vmem:[#allocation2 + $0x28] sm:$0xff]
        %v3312 = vld [vmem:[#allocation2 + $0x30] sm:$0xff]
        %v3313 = vld [vmem:[#allocation2 + $0x38] sm:$0xff]
        %v3314 = vld [vmem:[#allocation2 + $0x40] sm:$0xff]
        %v3315 = vld [vmem:[#allocation2 + $0x48] sm:$0xff]
        %v3316 = vld [vmem:[#allocation2 + $0x50] sm:$0xff]
        %v3317 = vld [vmem:[#allocation2 + $0x58] sm:$0xff]
        %v3318 = vld [vmem:[#allocation2 + $0x60] sm:$0xff]
        %v3319 = vld [vmem:[#allocation2 + $0x68] sm:$0xff]
        %v3320 = vld [vmem:[#allocation2 + $0x70] sm:$0xff]
        %v3321 = vld [vmem:[#allocation2 + $0x78] sm:$0xff]
        %v3322 = vld [vmem:[#allocation2 + $0x80] sm:$0xff]
        %v3323 = vld [vmem:[#allocation2 + $0x88] sm:$0xff]
        %v3324 = vld [vmem:[#allocation2 + $0x90] sm:$0xff]
        %v3325 = vld [vmem:[#allocation2 + $0x98] sm:$0xff]
        %v3326 = vld [vmem:[#allocation2 + $0xa0] sm:$0x3f]
        %s3327 = scalar_lea.vmem %s974, 512 [#allocation4]
        %v3328 = vld [vmem:[%s3327] sm:$0xf]
        %v3329 = vld [vmem:[%s3327 + $0x4] sm:$0xf]
        %v3330 = vld [vmem:[%s3327 + $0x8] sm:$0xf]
        %v3331 = vld [vmem:[%s3327 + $0xc] sm:$0xf]
        %v3332 = vld [vmem:[%s3327 + $0x10] sm:$0xf]
        %v3333 = vld [vmem:[%s3327 + $0x14] sm:$0xf]
        %v3334 = vld [vmem:[%s3327 + $0x18] sm:$0xf]
        %v3335 = vld [vmem:[%s3327 + $0x1c] sm:$0xf]
        %v3336 = vld [vmem:[%s3327 + $0x20] sm:$0xf]
        %v3337 = vld [vmem:[%s3327 + $0x24] sm:$0xf]
        %v3338 = vld [vmem:[%s3327 + $0x28] sm:$0xf]
        %v3339 = vld [vmem:[%s3327 + $0x2c] sm:$0xf]
        %v3340 = vld [vmem:[%s3327 + $0x30] sm:$0xf]
        %v3341 = vld [vmem:[%s3327 + $0x34] sm:$0xf]
        %v3342 = vld [vmem:[%s3327 + $0x38] sm:$0xf]
        %v3343 = vld [vmem:[%s3327 + $0x3c] sm:$0xf]
        %v3360 = vunpack.c.l.b16 %v3328
        %v3361 = vunpack.c.l.b16 %v3329
        %v3362 = vunpack.c.l.b16 %v3330
        %v3363 = vunpack.c.l.b16 %v3331
        %v3364 = vunpack.c.l.b16 %v3332
        %v3365 = vunpack.c.l.b16 %v3333
        %v3366 = vunpack.c.l.b16 %v3334
        %v3367 = vunpack.c.l.b16 %v3335
        %v3368 = vunpack.c.l.b16 %v3336
        %v3369 = vunpack.c.l.b16 %v3337
        %v3370 = vunpack.c.l.b16 %v3338
        %v3371 = vunpack.c.l.b16 %v3339
        %v3372 = vunpack.c.l.b16 %v3340
        %v3373 = vunpack.c.l.b16 %v3341
        %v3374 = vunpack.c.l.b16 %v3342
        %v3375 = vunpack.c.l.b16 %v3343
        %v3376 = vpack.c.b16 %v3361, %v3360
        %v3377 = vpack.c.b16 %v3363, %v3362
        %v3378 = vpack.c.b16 %v3365, %v3364
        %v3379 = vpack.c.b16 %v3367, %v3366
        %v3380 = vpack.c.b16 %v3369, %v3368
        %v3381 = vpack.c.b16 %v3371, %v3370
        %v3382 = vpack.c.b16 %v3373, %v3372
        %v3383 = vpack.c.b16 %v3375, %v3374
        %3392 = vmatprep.subr.bf16.mxu0 0
        %3393 = vmatpush1.bf16.msra.mxu0 %v3383
        %3394 = vmatprep.subr.bf16.mxu0 0
        %3395 = vmatpush1.bf16.msra.mxu0 %v3382
        %3396 = vmatprep.subr.bf16.mxu0 0
        %3397 = vmatpush1.bf16.msra.mxu0 %v3381
        %3398 = vmatprep.subr.bf16.mxu0 0
        %3399 = vmatpush1.bf16.msra.mxu0 %v3380
        %3400 = vmatprep.subr.bf16.mxu0 0
        %3401 = vmatpush1.bf16.msra.mxu0 %v3379
        %3402 = vmatprep.subr.bf16.mxu0 0
        %3403 = vmatpush1.bf16.msra.mxu0 %v3378
        %3404 = vmatprep.subr.bf16.mxu0 0
        %3405 = vmatpush1.bf16.msra.mxu0 %v3377
        %3406 = vmatprep.subr.bf16.mxu0 0
        %3407 = vmatpush1.bf16.msra.mxu0 %v3376
        %3408 = vmatprep.subr.bf16.mxu0 0
        %3409 = vmatpush2.bf16.msra.mxu0 0
        %3410 = vmatprep.subr.bf16.mxu0 0
        %3411 = vmatpush2.bf16.msra.mxu0 0
        %3412 = vmatprep.subr.bf16.mxu0 0
        %3413 = vmatpush2.bf16.msra.mxu0 0
        %3414 = vmatprep.subr.bf16.mxu0 0
        %3415 = vmatpush2.bf16.msra.mxu0 0
        %3416 = vmatprep.subr.bf16.mxu0 0
        %3417 = vmatpush2.bf16.msra.mxu0 0
        %3418 = vmatprep.subr.bf16.mxu0 0
        %3419 = vmatpush2.bf16.msra.mxu0 0
        %3420 = vmatprep.subr.bf16.mxu0 0
        %3421 = vmatpush2.bf16.msra.mxu0 0
        %3422 = vmatprep.subr.bf16.mxu0 0
        %3423 = vmatpush2.bf16.msra.mxu0 0
        %3424 = vmatprep.mubr.bf16.mxu0 0
        %3425 = vmatmul.mubr.bf16.gmra.mxu0 %v3295
        %v3426 = vpop.f32.mrf.mxu0
        %v3427 = vadd.f32 0.0, %v3426
        %v3428 = vpop.f32.mrf.mxu0
        %v3429 = vpop.f32.mrf.mxu0
        %v3430 = vadd.f32 0.0, %v3429
        %v3431 = vpop.f32.mrf.mxu0
        %3432 = vmatprep.mubr.bf16.mxu0 0
        %3433 = vmatmul.mubr.bf16.gmra.mxu0 %v3296
        %v3434 = vpop.f32.mrf.mxu0
        %v3435 = vadd.f32 0.0, %v3434
        %v3436 = vpop.f32.mrf.mxu0
        %v3437 = vpop.f32.mrf.mxu0
        %v3438 = vadd.f32 0.0, %v3437
        %v3439 = vpop.f32.mrf.mxu0
        %3440 = vmatprep.mubr.bf16.mxu0 0
        %3441 = vmatmul.mubr.bf16.gmra.mxu0 %v3297
        %v3442 = vpop.f32.mrf.mxu0
        %v3443 = vadd.f32 0.0, %v3442
        %v3444 = vpop.f32.mrf.mxu0
        %v3445 = vpop.f32.mrf.mxu0
        %v3446 = vadd.f32 0.0, %v3445
        %v3447 = vpop.f32.mrf.mxu0
        %3448 = vmatprep.mubr.bf16.mxu0 0
        %3449 = vmatmul.mubr.bf16.gmra.mxu0 %v3298
        %v3450 = vpop.f32.mrf.mxu0
        %v3451 = vadd.f32 0.0, %v3450
        %v3452 = vpop.f32.mrf.mxu0
        %v3453 = vpop.f32.mrf.mxu0
        %v3454 = vadd.f32 0.0, %v3453
        %v3455 = vpop.f32.mrf.mxu0
        %3456 = vmatprep.mubr.bf16.mxu0 0
        %3457 = vmatmul.mubr.bf16.gmra.mxu0 %v3299
        %v3458 = vpop.f32.mrf.mxu0
        %v3459 = vadd.f32 0.0, %v3458
        %v3460 = vpop.f32.mrf.mxu0
        %v3461 = vpop.f32.mrf.mxu0
        %v3462 = vadd.f32 0.0, %v3461
        %v3463 = vpop.f32.mrf.mxu0
        %3464 = vmatprep.mubr.bf16.mxu0 0
        %3465 = vmatmul.mubr.bf16.gmra.mxu0 %v3300
        %v3466 = vpop.f32.mrf.mxu0
        %v3467 = vadd.f32 0.0, %v3466
        %v3468 = vpop.f32.mrf.mxu0
        %v3469 = vpop.f32.mrf.mxu0
        %v3470 = vadd.f32 0.0, %v3469
        %v3471 = vpop.f32.mrf.mxu0
        %3472 = vmatprep.mubr.bf16.mxu0 0
        %3473 = vmatmul.mubr.bf16.gmra.mxu0 %v3301
        %v3474 = vpop.f32.mrf.mxu0
        %v3475 = vadd.f32 0.0, %v3474
        %v3476 = vpop.f32.mrf.mxu0
        %v3477 = vpop.f32.mrf.mxu0
        %v3478 = vadd.f32 0.0, %v3477
        %v3479 = vpop.f32.mrf.mxu0
        %3480 = vmatprep.mubr.bf16.mxu0 0
        %3481 = vmatmul.mubr.bf16.gmra.mxu0 %v3302
        %v3482 = vpop.f32.mrf.mxu0
        %v3483 = vadd.f32 0.0, %v3482
        %v3484 = vpop.f32.mrf.mxu0
        %v3485 = vpop.f32.mrf.mxu0
        %v3486 = vadd.f32 0.0, %v3485
        %v3487 = vpop.f32.mrf.mxu0
        %3488 = vmatprep.mubr.bf16.mxu0 0
        %3489 = vmatmul.mubr.bf16.gmra.mxu0 %v3303
        %v3490 = vpop.f32.mrf.mxu0
        %v3491 = vadd.f32 0.0, %v3490
        %v3492 = vpop.f32.mrf.mxu0
        %v3493 = vpop.f32.mrf.mxu0
        %v3494 = vadd.f32 0.0, %v3493
        %v3495 = vpop.f32.mrf.mxu0
        %3496 = vmatprep.mubr.bf16.mxu0 0
        %3497 = vmatmul.mubr.bf16.gmra.mxu0 %v3304
        %v3498 = vpop.f32.mrf.mxu0
        %v3499 = vadd.f32 0.0, %v3498
        %v3500 = vpop.f32.mrf.mxu0
        %v3501 = vpop.f32.mrf.mxu0
        %v3502 = vadd.f32 0.0, %v3501
        %v3503 = vpop.f32.mrf.mxu0
        %3504 = vmatprep.mubr.bf16.mxu0 0
        %3505 = vmatmul.mubr.bf16.gmra.mxu0 %v3305
        %v3506 = vpop.f32.mrf.mxu0
        %v3507 = vadd.f32 0.0, %v3506
        %v3508 = vpop.f32.mrf.mxu0
        %v3509 = vpop.f32.mrf.mxu0
        %v3510 = vpop.f32.mrf.mxu0
        %3511 = vdwg.mxu0
        %v3512 = vadd.f32 %v3306, %v3427
        %v3513 = vadd.f32 %v3307, %v3430
        %v3514 = vadd.f32 %v3308, %v3435
        %v3515 = vadd.f32 %v3309, %v3438
        %v3516 = vadd.f32 %v3310, %v3443
        %v3517 = vadd.f32 %v3311, %v3446
        %v3518 = vadd.f32 %v3312, %v3451
        %v3519 = vadd.f32 %v3313, %v3454
        %v3520 = vadd.f32 %v3314, %v3459
        %v3521 = vadd.f32 %v3315, %v3462
        %v3522 = vadd.f32 %v3316, %v3467
        %v3523 = vadd.f32 %v3317, %v3470
        %v3524 = vadd.f32 %v3318, %v3475
        %v3525 = vadd.f32 %v3319, %v3478
        %v3526 = vadd.f32 %v3320, %v3483
        %v3527 = vadd.f32 %v3321, %v3486
        %v3528 = vadd.f32 %v3322, %v3491
        %v3529 = vadd.f32 %v3323, %v3494
        %v3530 = vadd.f32 %v3324, %v3499
        %v3531 = vadd.f32 %v3325, %v3502
        %v3532 = vadd.f32 %v3326, %v3507
        %3533 = vst [vmem:[#allocation2] sm:$0xff] %v3512
        %3534 = vst [vmem:[#allocation2 + $0x8] sm:$0xff] %v3513
        %3535 = vst [vmem:[#allocation2 + $0x10] sm:$0xff] %v3514
        %3536 = vst [vmem:[#allocation2 + $0x18] sm:$0xff] %v3515
        %3537 = vst [vmem:[#allocation2 + $0x20] sm:$0xff] %v3516
        %3538 = vst [vmem:[#allocation2 + $0x28] sm:$0xff] %v3517
        %3539 = vst [vmem:[#allocation2 + $0x30] sm:$0xff] %v3518
        %3540 = vst [vmem:[#allocation2 + $0x38] sm:$0xff] %v3519
        %3541 = vst [vmem:[#allocation2 + $0x40] sm:$0xff] %v3520
        %3542 = vst [vmem:[#allocation2 + $0x48] sm:$0xff] %v3521
        %3543 = vst [vmem:[#allocation2 + $0x50] sm:$0xff] %v3522
        %3544 = vst [vmem:[#allocation2 + $0x58] sm:$0xff] %v3523
        %3545 = vst [vmem:[#allocation2 + $0x60] sm:$0xff] %v3524
        %3546 = vst [vmem:[#allocation2 + $0x68] sm:$0xff] %v3525
        %3547 = vst [vmem:[#allocation2 + $0x70] sm:$0xff] %v3526
        %3548 = vst [vmem:[#allocation2 + $0x78] sm:$0xff] %v3527
        %3549 = vst [vmem:[#allocation2 + $0x80] sm:$0xff] %v3528
        %3550 = vst [vmem:[#allocation2 + $0x88] sm:$0xff] %v3529
        %3551 = vst [vmem:[#allocation2 + $0x90] sm:$0xff] %v3530
        %3552 = vst [vmem:[#allocation2 + $0x98] sm:$0xff] %v3531
        %3553 = vst [vmem:[#allocation2 + $0xa0] sm:$0x3f] %v3532
        %p3554 = scmp.eq.s32.totalorder %s21, 4
        // Predicated region
        $region124: #{segmentation_decoder_forward.3} parent=110 // pred_check
          %p3555 = pneg %p3554
        $region125: #{segmentation_decoder_forward.3} parent=110 // pred_check_branch
          %3557 = sbr.rel (%p3555) target = $region127
        $region126: #{segmentation_decoder_forward.3} parent=110 // pred_region
          %v3558 = vld [vmem:[#allocation2] sm:$0xff]
          %v3559 = vld [vmem:[#allocation2 + $0x8] sm:$0xff]
          %v3560 = vld [vmem:[#allocation2 + $0x10] sm:$0xff]
          %v3561 = vld [vmem:[#allocation2 + $0x18] sm:$0xff]
          %v3562 = vld [vmem:[#allocation2 + $0x20] sm:$0xff]
          %v3563 = vld [vmem:[#allocation2 + $0x28] sm:$0xff]
          %v3564 = vld [vmem:[#allocation2 + $0x30] sm:$0xff]
          %v3565 = vld [vmem:[#allocation2 + $0x38] sm:$0xff]
          %v3566 = vld [vmem:[#allocation2 + $0x40] sm:$0xff]
          %v3567 = vld [vmem:[#allocation2 + $0x48] sm:$0xff]
          %v3568 = vld [vmem:[#allocation2 + $0x50] sm:$0xff]
          %v3569 = vld [vmem:[#allocation2 + $0x58] sm:$0xff]
          %v3570 = vld [vmem:[#allocation2 + $0x60] sm:$0xff]
          %v3571 = vld [vmem:[#allocation2 + $0x68] sm:$0xff]
          %v3572 = vld [vmem:[#allocation2 + $0x70] sm:$0xff]
          %v3573 = vld [vmem:[#allocation2 + $0x78] sm:$0xff]
          %v3574 = vld [vmem:[#allocation2 + $0x80] sm:$0xff]
          %v3575 = vld [vmem:[#allocation2 + $0x88] sm:$0xff]
          %v3576 = vld [vmem:[#allocation2 + $0x90] sm:$0xff]
          %v3577 = vld [vmem:[#allocation2 + $0x98] sm:$0xff]
          %v3578 = vld [vmem:[#allocation2 + $0xa0] sm:$0x3f]
          %v3579 = vld [vmem:[%s2] sm:$0x1]
          %v3581 = vlaneseq
          %v3582 = vshrl.u32 %v3581, 7
          %v3583 = vsub.s32 0, %v3582
          %v3584 = vrot.slane %v3579, %v3583
          %v3586 = vadd.f32 %v3558, %v3584
          %v3587 = vadd.f32 %v3559, %v3584
          %v3588 = vadd.f32 %v3560, %v3584
          %v3589 = vadd.f32 %v3561, %v3584
          %v3590 = vadd.f32 %v3562, %v3584
          %v3591 = vadd.f32 %v3563, %v3584
          %v3592 = vadd.f32 %v3564, %v3584
          %v3593 = vadd.f32 %v3565, %v3584
          %v3594 = vadd.f32 %v3566, %v3584
          %v3595 = vadd.f32 %v3567, %v3584
          %v3596 = vadd.f32 %v3568, %v3584
          %v3597 = vadd.f32 %v3569, %v3584
          %v3598 = vadd.f32 %v3570, %v3584
          %v3599 = vadd.f32 %v3571, %v3584
          %v3600 = vadd.f32 %v3572, %v3584
          %v3601 = vadd.f32 %v3573, %v3584
          %v3602 = vadd.f32 %v3574, %v3584
          %v3603 = vadd.f32 %v3575, %v3584
          %v3604 = vadd.f32 %v3576, %v3584
          %v3605 = vadd.f32 %v3577, %v3584
          %v3606 = vadd.f32 %v3578, %v3584
          %v3607 = vmax.f32 %v3586, 0.0
          %v3608 = vmax.f32 %v3587, 0.0
          %v3609 = vmax.f32 %v3588, 0.0
          %v3610 = vmax.f32 %v3589, 0.0
          %v3611 = vmax.f32 %v3590, 0.0
          %v3612 = vmax.f32 %v3591, 0.0
          %v3613 = vmax.f32 %v3592, 0.0
          %v3614 = vmax.f32 %v3593, 0.0
          %v3615 = vmax.f32 %v3594, 0.0
          %v3616 = vmax.f32 %v3595, 0.0
          %v3617 = vmax.f32 %v3596, 0.0
          %v3618 = vmax.f32 %v3597, 0.0
          %v3619 = vmax.f32 %v3598, 0.0
          %v3620 = vmax.f32 %v3599, 0.0
          %v3621 = vmax.f32 %v3600, 0.0
          %v3622 = vmax.f32 %v3601, 0.0
          %v3623 = vmax.f32 %v3602, 0.0
          %v3624 = vmax.f32 %v3603, 0.0
          %v3625 = vmax.f32 %v3604, 0.0
          %v3626 = vmax.f32 %v3605, 0.0
          %v3627 = vmax.f32 %v3606, 0.0
          %v3628 = vpack.c.bf16 %v3608, %v3607
          %v3629 = vpack.c.bf16 %v3610, %v3609
          %v3630 = vpack.c.bf16 %v3612, %v3611
          %v3631 = vpack.c.bf16 %v3614, %v3613
          %v3632 = vpack.c.bf16 %v3616, %v3615
          %v3633 = vpack.c.bf16 %v3618, %v3617
          %v3634 = vpack.c.bf16 %v3620, %v3619
          %v3635 = vpack.c.bf16 %v3622, %v3621
          %v3636 = vpack.c.bf16 %v3624, %v3623
          %v3637 = vpack.c.bf16 %v3626, %v3625
          %v3638 = vpack.c.bf16 %v3627, %v3627
          %v3639 = vld [vmem:[%s3] sm:$0xf]
          %v3640 = vld [vmem:[%s3 + $0x4] sm:$0xf]
          %v3641 = vld [vmem:[%s3 + $0x8] sm:$0xf]
          %v3642 = vld [vmem:[%s3 + $0xc] sm:$0xf]
          %v3643 = vld [vmem:[%s3 + $0x10] sm:$0xf]
          %v3644 = vld [vmem:[%s3 + $0x14] sm:$0xf]
          %v3645 = vld [vmem:[%s3 + $0x18] sm:$0xf]
          %v3646 = vld [vmem:[%s3 + $0x1c] sm:$0xf]
          %v3647 = vld [vmem:[%s3 + $0x20] sm:$0xf]
          %v3648 = vld [vmem:[%s3 + $0x24] sm:$0xf]
          %v3649 = vld [vmem:[%s3 + $0x28] sm:$0xf]
          %v3650 = vld [vmem:[%s3 + $0x2c] sm:$0xf]
          %v3651 = vld [vmem:[%s3 + $0x30] sm:$0xf]
          %v3652 = vld [vmem:[%s3 + $0x34] sm:$0xf]
          %v3653 = vld [vmem:[%s3 + $0x38] sm:$0xf]
          %v3654 = vld [vmem:[%s3 + $0x3c] sm:$0xf]
          %v3655 = vld [vmem:[%s4] sm:$0x1]
          %v3657 = vlaneseq
          %v3658 = vshrl.u32 %v3657, 7
          %v3659 = vsub.s32 0, %v3658
          %v3660 = vrot.slane %v3655, %v3659
          %v3678 = vunpack.c.l.b16 %v3639
          %v3679 = vunpack.c.l.b16 %v3640
          %v3680 = vunpack.c.l.b16 %v3641
          %v3681 = vunpack.c.l.b16 %v3642
          %v3682 = vunpack.c.l.b16 %v3643
          %v3683 = vunpack.c.l.b16 %v3644
          %v3684 = vunpack.c.l.b16 %v3645
          %v3685 = vunpack.c.l.b16 %v3646
          %v3686 = vunpack.c.l.b16 %v3647
          %v3687 = vunpack.c.l.b16 %v3648
          %v3688 = vunpack.c.l.b16 %v3649
          %v3689 = vunpack.c.l.b16 %v3650
          %v3690 = vunpack.c.l.b16 %v3651
          %v3691 = vunpack.c.l.b16 %v3652
          %v3692 = vunpack.c.l.b16 %v3653
          %v3693 = vunpack.c.l.b16 %v3654
          %v3694 = vpack.c.b16 %v3679, %v3678
          %v3695 = vpack.c.b16 %v3681, %v3680
          %v3696 = vpack.c.b16 %v3683, %v3682
          %v3697 = vpack.c.b16 %v3685, %v3684
          %v3698 = vpack.c.b16 %v3687, %v3686
          %v3699 = vpack.c.b16 %v3689, %v3688
          %v3700 = vpack.c.b16 %v3691, %v3690
          %v3701 = vpack.c.b16 %v3693, %v3692
          %3710 = vmatprep.subr.bf16.mxu0 0
          %3711 = vmatpush1.bf16.msra.mxu0 %v3701
          %3712 = vmatprep.subr.bf16.mxu0 0
          %3713 = vmatpush1.bf16.msra.mxu0 %v3700
          %3714 = vmatprep.subr.bf16.mxu0 0
          %3715 = vmatpush1.bf16.msra.mxu0 %v3699
          %3716 = vmatprep.subr.bf16.mxu0 0
          %3717 = vmatpush1.bf16.msra.mxu0 %v3698
          %3718 = vmatprep.subr.bf16.mxu0 0
          %3719 = vmatpush1.bf16.msra.mxu0 %v3697
          %3720 = vmatprep.subr.bf16.mxu0 0
          %3721 = vmatpush1.bf16.msra.mxu0 %v3696
          %3722 = vmatprep.subr.bf16.mxu0 0
          %3723 = vmatpush1.bf16.msra.mxu0 %v3695
          %3724 = vmatprep.subr.bf16.mxu0 0
          %3725 = vmatpush1.bf16.msra.mxu0 %v3694
          %3726 = vmatprep.subr.bf16.mxu0 0
          %3727 = vmatpush2.bf16.msra.mxu0 0
          %3728 = vmatprep.subr.bf16.mxu0 0
          %3729 = vmatpush2.bf16.msra.mxu0 0
          %3730 = vmatprep.subr.bf16.mxu0 0
          %3731 = vmatpush2.bf16.msra.mxu0 0
          %3732 = vmatprep.subr.bf16.mxu0 0
          %3733 = vmatpush2.bf16.msra.mxu0 0
          %3734 = vmatprep.subr.bf16.mxu0 0
          %3735 = vmatpush2.bf16.msra.mxu0 0
          %3736 = vmatprep.subr.bf16.mxu0 0
          %3737 = vmatpush2.bf16.msra.mxu0 0
          %3738 = vmatprep.subr.bf16.mxu0 0
          %3739 = vmatpush2.bf16.msra.mxu0 0
          %3740 = vmatprep.subr.bf16.mxu0 0
          %3741 = vmatpush2.bf16.msra.mxu0 0
          %3742 = vmatprep.mubr.bf16.mxu0 0
          %3743 = vmatmul.mubr.bf16.gmra.mxu0 %v3628
          %v3744 = vpop.f32.mrf.mxu0
          %v3745 = vadd.f32 %v3660, %v3744
          %v3746 = vpop.f32.mrf.mxu0
          %v3747 = vpop.f32.mrf.mxu0
          %v3748 = vadd.f32 %v3660, %v3747
          %v3749 = vpop.f32.mrf.mxu0
          %3750 = vmatprep.mubr.bf16.mxu0 0
          %3751 = vmatmul.mubr.bf16.gmra.mxu0 %v3629
          %v3752 = vpop.f32.mrf.mxu0
          %v3753 = vadd.f32 %v3660, %v3752
          %v3754 = vpop.f32.mrf.mxu0
          %v3755 = vpop.f32.mrf.mxu0
          %v3756 = vadd.f32 %v3660, %v3755
          %v3757 = vpop.f32.mrf.mxu0
          %3758 = vmatprep.mubr.bf16.mxu0 0
          %3759 = vmatmul.mubr.bf16.gmra.mxu0 %v3630
          %v3760 = vpop.f32.mrf.mxu0
          %v3761 = vadd.f32 %v3660, %v3760
          %v3762 = vpop.f32.mrf.mxu0
          %v3763 = vpop.f32.mrf.mxu0
          %v3764 = vadd.f32 %v3660, %v3763
          %v3765 = vpop.f32.mrf.mxu0
          %3766 = vmatprep.mubr.bf16.mxu0 0
          %3767 = vmatmul.mubr.bf16.gmra.mxu0 %v3631
          %v3768 = vpop.f32.mrf.mxu0
          %v3769 = vadd.f32 %v3660, %v3768
          %v3770 = vpop.f32.mrf.mxu0
          %v3771 = vpop.f32.mrf.mxu0
          %v3772 = vadd.f32 %v3660, %v3771
          %v3773 = vpop.f32.mrf.mxu0
          %3774 = vmatprep.mubr.bf16.mxu0 0
          %3775 = vmatmul.mubr.bf16.gmra.mxu0 %v3632
          %v3776 = vpop.f32.mrf.mxu0
          %v3777 = vadd.f32 %v3660, %v3776
          %v3778 = vpop.f32.mrf.mxu0
          %v3779 = vpop.f32.mrf.mxu0
          %v3780 = vadd.f32 %v3660, %v3779
          %v3781 = vpop.f32.mrf.mxu0
          %3782 = vmatprep.mubr.bf16.mxu0 0
          %3783 = vmatmul.mubr.bf16.gmra.mxu0 %v3633
          %v3784 = vpop.f32.mrf.mxu0
          %v3785 = vadd.f32 %v3660, %v3784
          %v3786 = vpop.f32.mrf.mxu0
          %v3787 = vpop.f32.mrf.mxu0
          %v3788 = vadd.f32 %v3660, %v3787
          %v3789 = vpop.f32.mrf.mxu0
          %3790 = vmatprep.mubr.bf16.mxu0 0
          %3791 = vmatmul.mubr.bf16.gmra.mxu0 %v3634
          %v3792 = vpop.f32.mrf.mxu0
          %v3793 = vadd.f32 %v3660, %v3792
          %v3794 = vpop.f32.mrf.mxu0
          %v3795 = vpop.f32.mrf.mxu0
          %v3796 = vadd.f32 %v3660, %v3795
          %v3797 = vpop.f32.mrf.mxu0
          %3798 = vmatprep.mubr.bf16.mxu0 0
          %3799 = vmatmul.mubr.bf16.gmra.mxu0 %v3635
          %v3800 = vpop.f32.mrf.mxu0
          %v3801 = vadd.f32 %v3660, %v3800
          %v3802 = vpop.f32.mrf.mxu0
          %v3803 = vpop.f32.mrf.mxu0
          %v3804 = vadd.f32 %v3660, %v3803
          %v3805 = vpop.f32.mrf.mxu0
          %3806 = vmatprep.mubr.bf16.mxu0 0
          %3807 = vmatmul.mubr.bf16.gmra.mxu0 %v3636
          %v3808 = vpop.f32.mrf.mxu0
          %v3809 = vadd.f32 %v3660, %v3808
          %v3810 = vpop.f32.mrf.mxu0
          %v3811 = vpop.f32.mrf.mxu0
          %v3812 = vadd.f32 %v3660, %v3811
          %v3813 = vpop.f32.mrf.mxu0
          %3814 = vmatprep.mubr.bf16.mxu0 0
          %3815 = vmatmul.mubr.bf16.gmra.mxu0 %v3637
          %v3816 = vpop.f32.mrf.mxu0
          %v3817 = vadd.f32 %v3660, %v3816
          %v3818 = vpop.f32.mrf.mxu0
          %v3819 = vpop.f32.mrf.mxu0
          %v3820 = vadd.f32 %v3660, %v3819
          %v3821 = vpop.f32.mrf.mxu0
          %3822 = vmatprep.mubr.bf16.mxu0 0
          %3823 = vmatmul.mubr.bf16.gmra.mxu0 %v3638
          %v3824 = vpop.f32.mrf.mxu0
          %v3825 = vadd.f32 %v3660, %v3824
          %v3826 = vpop.f32.mrf.mxu0
          %v3827 = vpop.f32.mrf.mxu0
          %v3828 = vpop.f32.mrf.mxu0
          %3829 = vdwg.mxu0
          %3830 = vmax.xlane.f32.xlu0 %v3745
          %v3831 = vpop.xlane.xlu0 %3830
          %3832 = vmax.xlane.f32.xlu0 %v3748
          %v3833 = vpop.xlane.xlu0 %3832
          %3834 = vmax.xlane.f32.xlu0 %v3753
          %v3835 = vpop.xlane.xlu0 %3834
          %3836 = vmax.xlane.f32.xlu0 %v3756
          %v3837 = vpop.xlane.xlu0 %3836
          %3838 = vmax.xlane.f32.xlu0 %v3761
          %v3839 = vpop.xlane.xlu0 %3838
          %3840 = vmax.xlane.f32.xlu0 %v3764
          %v3841 = vpop.xlane.xlu0 %3840
          %3842 = vmax.xlane.f32.xlu0 %v3769
          %v3843 = vpop.xlane.xlu0 %3842
          %3844 = vmax.xlane.f32.xlu0 %v3772
          %v3845 = vpop.xlane.xlu0 %3844
          %3846 = vmax.xlane.f32.xlu0 %v3777
          %v3847 = vpop.xlane.xlu0 %3846
          %3848 = vmax.xlane.f32.xlu0 %v3780
          %v3849 = vpop.xlane.xlu0 %3848
          %3850 = vmax.xlane.f32.xlu0 %v3785
          %v3851 = vpop.xlane.xlu0 %3850
          %3852 = vmax.xlane.f32.xlu0 %v3788
          %v3853 = vpop.xlane.xlu0 %3852
          %3854 = vmax.xlane.f32.xlu0 %v3793
          %v3855 = vpop.xlane.xlu0 %3854
          %3856 = vmax.xlane.f32.xlu0 %v3796
          %v3857 = vpop.xlane.xlu0 %3856
          %3858 = vmax.xlane.f32.xlu0 %v3801
          %v3859 = vpop.xlane.xlu0 %3858
          %3860 = vmax.xlane.f32.xlu0 %v3804
          %v3861 = vpop.xlane.xlu0 %3860
          %3862 = vmax.xlane.f32.xlu0 %v3809
          %v3863 = vpop.xlane.xlu0 %3862
          %3864 = vmax.xlane.f32.xlu0 %v3812
          %v3865 = vpop.xlane.xlu0 %3864
          %3866 = vmax.xlane.f32.xlu0 %v3817
          %v3867 = vpop.xlane.xlu0 %3866
          %3868 = vmax.xlane.f32.xlu0 %v3820
          %v3869 = vpop.xlane.xlu0 %3868
          %vm3870 = vcmask 1045504
          %v3871 = vsel %vm3870, %v3825, -inf
          %3872 = vmax.xlane.f32.xlu0 %v3871
          %v3873 = vpop.xlane.xlu0 %3872
          %v3874 = vsub.f32 %v3745, %v3831
          %v3875 = vsub.f32 %v3748, %v3833
          %v3876 = vsub.f32 %v3753, %v3835
          %v3877 = vsub.f32 %v3756, %v3837
          %v3878 = vsub.f32 %v3761, %v3839
          %v3879 = vsub.f32 %v3764, %v3841
          %v3880 = vsub.f32 %v3769, %v3843
          %v3881 = vsub.f32 %v3772, %v3845
          %v3882 = vsub.f32 %v3777, %v3847
          %v3883 = vsub.f32 %v3780, %v3849
          %v3884 = vsub.f32 %v3785, %v3851
          %v3885 = vsub.f32 %v3788, %v3853
          %v3886 = vsub.f32 %v3793, %v3855
          %v3887 = vsub.f32 %v3796, %v3857
          %v3888 = vsub.f32 %v3801, %v3859
          %v3889 = vsub.f32 %v3804, %v3861
          %v3890 = vsub.f32 %v3809, %v3863
          %v3891 = vsub.f32 %v3812, %v3865
          %v3892 = vsub.f32 %v3817, %v3867
          %v3893 = vsub.f32 %v3820, %v3869
          %v3894 = vsub.f32 %v3825, %v3873
          %v3895 = vmul.f32 %v3874, 1.442695
          %v3896 = vpow.pop %v3895
          %v3897 = vmul.f32 %v3875, 1.442695
          %v3898 = vpow.pop %v3897
          %v3899 = vmul.f32 %v3876, 1.442695
          %v3900 = vpow.pop %v3899
          %v3901 = vmul.f32 %v3877, 1.442695
          %v3902 = vpow.pop %v3901
          %v3903 = vmul.f32 %v3878, 1.442695
          %v3904 = vpow.pop %v3903
          %v3905 = vmul.f32 %v3879, 1.442695
          %v3906 = vpow.pop %v3905
          %v3907 = vmul.f32 %v3880, 1.442695
          %v3908 = vpow.pop %v3907
          %v3909 = vmul.f32 %v3881, 1.442695
          %v3910 = vpow.pop %v3909
          %v3911 = vmul.f32 %v3882, 1.442695
          %v3912 = vpow.pop %v3911
          %v3913 = vmul.f32 %v3883, 1.442695
          %v3914 = vpow.pop %v3913
          %v3915 = vmul.f32 %v3884, 1.442695
          %v3916 = vpow.pop %v3915
          %v3917 = vmul.f32 %v3885, 1.442695
          %v3918 = vpow.pop %v3917
          %v3919 = vmul.f32 %v3886, 1.442695
          %v3920 = vpow.pop %v3919
          %v3921 = vmul.f32 %v3887, 1.442695
          %v3922 = vpow.pop %v3921
          %v3923 = vmul.f32 %v3888, 1.442695
          %v3924 = vpow.pop %v3923
          %v3925 = vmul.f32 %v3889, 1.442695
          %v3926 = vpow.pop %v3925
          %v3927 = vmul.f32 %v3890, 1.442695
          %v3928 = vpow.pop %v3927
          %v3929 = vmul.f32 %v3891, 1.442695
          %v3930 = vpow.pop %v3929
          %v3931 = vmul.f32 %v3892, 1.442695
          %v3932 = vpow.pop %v3931
          %v3933 = vmul.f32 %v3893, 1.442695
          %v3934 = vpow.pop %v3933
          %v3935 = vmul.f32 %v3894, 1.442695
          %v3936 = vpow.pop %v3935
          %3937 = vadd.xlane.f32.xlu0 %v3896
          %v3938 = vpop.xlane.xlu0 %3937
          %3939 = vadd.xlane.f32.xlu0 %v3898
          %v3940 = vpop.xlane.xlu0 %3939
          %3941 = vadd.xlane.f32.xlu0 %v3900
          %v3942 = vpop.xlane.xlu0 %3941
          %3943 = vadd.xlane.f32.xlu0 %v3902
          %v3944 = vpop.xlane.xlu0 %3943
          %3945 = vadd.xlane.f32.xlu0 %v3904
          %v3946 = vpop.xlane.xlu0 %3945
          %3947 = vadd.xlane.f32.xlu0 %v3906
          %v3948 = vpop.xlane.xlu0 %3947
          %3949 = vadd.xlane.f32.xlu0 %v3908
          %v3950 = vpop.xlane.xlu0 %3949
          %3951 = vadd.xlane.f32.xlu0 %v3910
          %v3952 = vpop.xlane.xlu0 %3951
          %3953 = vadd.xlane.f32.xlu0 %v3912
          %v3954 = vpop.xlane.xlu0 %3953
          %3955 = vadd.xlane.f32.xlu0 %v3914
          %v3956 = vpop.xlane.xlu0 %3955
          %3957 = vadd.xlane.f32.xlu0 %v3916
          %v3958 = vpop.xlane.xlu0 %3957
          %3959 = vadd.xlane.f32.xlu0 %v3918
          %v3960 = vpop.xlane.xlu0 %3959
          %3961 = vadd.xlane.f32.xlu0 %v3920
          %v3962 = vpop.xlane.xlu0 %3961
          %3963 = vadd.xlane.f32.xlu0 %v3922
          %v3964 = vpop.xlane.xlu0 %3963
          %3965 = vadd.xlane.f32.xlu0 %v3924
          %v3966 = vpop.xlane.xlu0 %3965
          %3967 = vadd.xlane.f32.xlu0 %v3926
          %v3968 = vpop.xlane.xlu0 %3967
          %3969 = vadd.xlane.f32.xlu0 %v3928
          %v3970 = vpop.xlane.xlu0 %3969
          %3971 = vadd.xlane.f32.xlu0 %v3930
          %v3972 = vpop.xlane.xlu0 %3971
          %3973 = vadd.xlane.f32.xlu0 %v3932
          %v3974 = vpop.xlane.xlu0 %3973
          %3975 = vadd.xlane.f32.xlu0 %v3934
          %v3976 = vpop.xlane.xlu0 %3975
          %v3977 = vsel %vm3870, %v3936, 0.0
          %3978 = vadd.xlane.f32.xlu0 %v3977
          %v3979 = vpop.xlane.xlu0 %3978
          %v3980 = vlog2.pop %v3938
          %v3981 = vmul.f32 %v3980, 0.6931472
          %v3982 = vlog2.pop %v3940
          %v3983 = vmul.f32 %v3982, 0.6931472
          %v3984 = vlog2.pop %v3942
          %v3985 = vmul.f32 %v3984, 0.6931472
          %v3986 = vlog2.pop %v3944
          %v3987 = vmul.f32 %v3986, 0.6931472
          %v3988 = vlog2.pop %v3946
          %v3989 = vmul.f32 %v3988, 0.6931472
          %v3990 = vlog2.pop %v3948
          %v3991 = vmul.f32 %v3990, 0.6931472
          %v3992 = vlog2.pop %v3950
          %v3993 = vmul.f32 %v3992, 0.6931472
          %v3994 = vlog2.pop %v3952
          %v3995 = vmul.f32 %v3994, 0.6931472
          %v3996 = vlog2.pop %v3954
          %v3997 = vmul.f32 %v3996, 0.6931472
          %v3998 = vlog2.pop %v3956
          %v3999 = vmul.f32 %v3998, 0.6931472
          %v4000 = vlog2.pop %v3958
          %v4001 = vmul.f32 %v4000, 0.6931472
          %v4002 = vlog2.pop %v3960
          %v4003 = vmul.f32 %v4002, 0.6931472
          %v4004 = vlog2.pop %v3962
          %v4005 = vmul.f32 %v4004, 0.6931472
          %v4006 = vlog2.pop %v3964
          %v4007 = vmul.f32 %v4006, 0.6931472
          %v4008 = vlog2.pop %v3966
          %v4009 = vmul.f32 %v4008, 0.6931472
          %v4010 = vlog2.pop %v3968
          %v4011 = vmul.f32 %v4010, 0.6931472
          %v4012 = vlog2.pop %v3970
          %v4013 = vmul.f32 %v4012, 0.6931472
          %v4014 = vlog2.pop %v3972
          %v4015 = vmul.f32 %v4014, 0.6931472
          %v4016 = vlog2.pop %v3974
          %v4017 = vmul.f32 %v4016, 0.6931472
          %v4018 = vlog2.pop %v3976
          %v4019 = vmul.f32 %v4018, 0.6931472
          %v4020 = vlog2.pop %v3979
          %v4021 = vmul.f32 %v4020, 0.6931472
          %v4022 = vsub.f32 %v3874, %v3981
          %v4023 = vsub.f32 %v3875, %v3983
          %v4024 = vsub.f32 %v3876, %v3985
          %v4025 = vsub.f32 %v3877, %v3987
          %v4026 = vsub.f32 %v3878, %v3989
          %v4027 = vsub.f32 %v3879, %v3991
          %v4028 = vsub.f32 %v3880, %v3993
          %v4029 = vsub.f32 %v3881, %v3995
          %v4030 = vsub.f32 %v3882, %v3997
          %v4031 = vsub.f32 %v3883, %v3999
          %v4032 = vsub.f32 %v3884, %v4001
          %v4033 = vsub.f32 %v3885, %v4003
          %v4034 = vsub.f32 %v3886, %v4005
          %v4035 = vsub.f32 %v3887, %v4007
          %v4036 = vsub.f32 %v3888, %v4009
          %v4037 = vsub.f32 %v3889, %v4011
          %v4038 = vsub.f32 %v3890, %v4013
          %v4039 = vsub.f32 %v3891, %v4015
          %v4040 = vsub.f32 %v3892, %v4017
          %v4041 = vsub.f32 %v3893, %v4019
          %v4042 = vsub.f32 %v3894, %v4021
          %4043 = vst [vmem:[%s1008] sm:$0xff] %v4022
          %4044 = vst [vmem:[%s1008 + $0x8] sm:$0xff] %v4023
          %4045 = vst [vmem:[%s1008 + $0x10] sm:$0xff] %v4024
          %4046 = vst [vmem:[%s1008 + $0x18] sm:$0xff] %v4025
          %4047 = vst [vmem:[%s1008 + $0x20] sm:$0xff] %v4026
          %4048 = vst [vmem:[%s1008 + $0x28] sm:$0xff] %v4027
          %4049 = vst [vmem:[%s1008 + $0x30] sm:$0xff] %v4028
          %4050 = vst [vmem:[%s1008 + $0x38] sm:$0xff] %v4029
          %4051 = vst [vmem:[%s1008 + $0x40] sm:$0xff] %v4030
          %4052 = vst [vmem:[%s1008 + $0x48] sm:$0xff] %v4031
          %4053 = vst [vmem:[%s1008 + $0x50] sm:$0xff] %v4032
          %4054 = vst [vmem:[%s1008 + $0x58] sm:$0xff] %v4033
          %4055 = vst [vmem:[%s1008 + $0x60] sm:$0xff] %v4034
          %4056 = vst [vmem:[%s1008 + $0x68] sm:$0xff] %v4035
          %4057 = vst [vmem:[%s1008 + $0x70] sm:$0xff] %v4036
          %4058 = vst [vmem:[%s1008 + $0x78] sm:$0xff] %v4037
          %4059 = vst [vmem:[%s1008 + $0x80] sm:$0xff] %v4038
          %4060 = vst [vmem:[%s1008 + $0x88] sm:$0xff] %v4039
          %4061 = vst [vmem:[%s1008 + $0x90] sm:$0xff] %v4040
          %4062 = vst [vmem:[%s1008 + $0x98] sm:$0xff] %v4041
          %4063 = vst [vmem:[%s1008 + $0xa0] sm:$0x3f] %v4042
        $region127: #{segmentation_decoder_forward.3} parent=110 // pred_fallthru
          _
        %p4064 = scmp.lt.s32.totalorder %s20, 1
        %s4065 = scalar_select %p4064, %s20, 1
        %s4066 = smul.addr %s4065, 21
        %s4067 = smul.addr %s4066, 8
        %s4068 = scalar_lea.vmem %s5, %s4067
        // Predicated region
        $region128: #{segmentation_decoder_forward.3} parent=110 // pred_check
          %p4069 = pneg %p163
        $region129: #{segmentation_decoder_forward.3} parent=110 // pred_check_branch
          %4071 = sbr.rel (%p4069) target = $region131
        $region130: #{segmentation_decoder_forward.3} parent=110 // pred_region
          _
        $region131: #{segmentation_decoder_forward.3} parent=110 // pred_fallthru
          _
      $region111: #{segmentation_decoder_forward.3} parent=5 // pred_fallthru
        _
      %p4072 = scmp.le.s32.totalorder 2, %s11
      // Predicated region
      $region132: #{segmentation_decoder_forward.3} parent=5 // pred_check
        %p4073 = pneg %p4072
      $region133: #{segmentation_decoder_forward.3} parent=5 // pred_check_branch
        %4075 = sbr.rel (%p4073) target = $region135
      $region134: #{segmentation_decoder_forward.3} parent=5 // pred_region
        %s4076 = ssub.s32 %s11, 2
        // Predicated region
        $region136: #{segmentation_decoder_forward.3} parent=134 // pred_check
          %p4077 = pneg %p169
        $region137: #{segmentation_decoder_forward.3} parent=134 // pred_check_branch
          %4079 = sbr.rel (%p4077) target = $region139
        $region138: #{segmentation_decoder_forward.3} parent=134 // pred_region
          %p4080 = scmp.lt.s32.totalorder %s22, 1
          %s4081 = scalar_select %p4080, %s22, 1
          %s4082 = smul.addr %s4081, 21
          %s4083 = smul.addr %s4082, 8
          %s4084 = scalar_lea.vmem %s5, %s4083
        $region139: #{segmentation_decoder_forward.3} parent=134 // pred_fallthru
          _
      $region135: #{segmentation_decoder_forward.3} parent=5 // pred_fallthru
        _
    $region6: #{segmentation_decoder_forward.3} parent=1 // loop_footer
      %s15 = sadd.s32 1, %s11
    $region7: #{segmentation_decoder_forward.3} parent=1 // loop_footer_branch
      %10 = sbr.rel target = $region3
    $region8: #{segmentation_decoder_forward.3} parent=1 // loop_exit
      _

</llo_original>
